<compile_context>
chip_gen: v5e
topology: v5e:2x2
jax: 0.10.0
libtpu: 0.0.40
codegen_flags: <defaults>
</compile_context>

<pallas_src>
import functools

import jax
import jax.numpy as jnp
from jax.experimental import pallas as pl
from jax.experimental.pallas import tpu as pltpu


# ----------------------------------------------------------------------------
# Fused kernel.
#
# Data layout inside the kernel: activations are (C, P1) where P1 = N*Hp*Wp is
# the zero-padded spatial volume flattened onto the lane axis (Hp = H+2).
# A 3x3 tap at offset (di, dj) is just the lane-shifted slice [G+s : G+s+P1]
# of a zero-guarded buffer (s = (di-1)*Wp + (dj-1)), so the stride-1 conv is
# nine (C, C) x (C, P1) MXU dots.  The stride-2 conv reuses the same code and
# then picks its output centers with one 0/1 selection matmul (exact in bf16).
# The 2x2-stride-2 deconv is four (C, C) x (C, M2) dots, one per kernel tap.
# ----------------------------------------------------------------------------
def _image_block_kernel(x_ref, w1_ref, w2_ref, w3_ref, sel_ref, mask_ref, p_ref,
                        o_ref, buf_ref, *, C, P1, G, Wp, PADW, n1, n2, n3, eps):
    f32 = jnp.float32
    bf16 = jnp.bfloat16

    # packed per-channel parameters: [conv1_b, conv2_b, deconv_b, gamma, beta]
    b1 = p_ref[:, 0:1]
    b2 = p_ref[:, 1:2]
    b3 = p_ref[:, 2:3]
    gamma = p_ref[:, 3:4]
    beta = p_ref[:, 4:5]
    mask = mask_ref[...]                                     # (1, P1), 1 on interior

    # centered 3x3 tap shifts in the flattened (n, h_pad, w_pad) lane layout
    shifts = [(di - 1) * Wp + (dj - 1) for di in range(3) for dj in range(3)]

    def conv3x3(src_ref, w_ref):
        # stride-1 3x3 conv evaluated at every padded position -> (C, P1) f32
        acc = None
        for t, s in enumerate(shifts):
            tap = src_ref[:, G + s:G + s + P1].astype(bf16)  # (C, P1) bf16
            part = jnp.dot(w_ref[t], tap, preferred_element_type=f32)
            acc = part if acc is None else acc + part
        return acc

    def bn_relu(y, msk, count):
        # BatchNorm2d (training mode, biased variance) + ReLU, per channel (row)
        inv = 1.0 / count
        if msk is None:
            mu = jnp.sum(y, axis=1, keepdims=True) * inv
            d = y - mu
            var = jnp.sum(d * d, axis=1, keepdims=True) * inv
        else:
            mu = jnp.sum(y * msk, axis=1, keepdims=True) * inv
            d = y - mu
            var = jnp.sum(d * d * msk, axis=1, keepdims=True) * inv
        out = jnp.maximum(gamma * d * jax.lax.rsqrt(var + eps) + beta, 0.0)
        return out if msk is None else out * msk             # re-zero the padding

    # ---- layer 1: Conv2d(C, C, 3, 3, stride 1, pad 1) + BN + ReLU -------------
    a1 = bn_relu(conv3x3(x_ref, w1_ref) + b1, mask, n1)      # (C, P1)

    # stash in a zero-guarded VMEM buffer so layer 2 can take shifted tap slices
    buf_ref[...] = jnp.zeros((C, PADW), f32)
    buf_ref[:, G:G + P1] = a1                                # G is lane-aligned

    # ---- layer 2: Conv2d(C, C, 3, 3, stride 2, pad 1) + BN + ReLU -------------
    full2 = conv3x3(buf_ref, w2_ref)                         # conv at every position
    y2 = jnp.dot(full2.astype(bf16), sel_ref[...],           # pick stride-2 centers
                 preferred_element_type=f32) + b2            # (C, M2)
    a2 = bn_relu(y2, None, n2)

    # ---- layer 3: ConvTranspose2d(C, C, 2, 2, stride 2) + BN + ReLU -----------
    a2b = a2.astype(bf16)
    pre = [jnp.dot(w3_ref[t], a2b, preferred_element_type=f32) + b3
           for t in range(4)]                                # 4 x (C, M2)
    inv = 1.0 / n3
    mu = sum(jnp.sum(p, axis=1, keepdims=True) for p in pre) * inv
    cen = [p - mu for p in pre]
    var = sum(jnp.sum(c * c, axis=1, keepdims=True) for c in cen) * inv
    inv_std = jax.lax.rsqrt(var + eps)
    for t in range(4):
        o_ref[t] = jnp.maximum(gamma * cen[t] * inv_std + beta,
                               0.0).astype(o_ref.dtype)


# ----------------------------------------------------------------------------
# Wrapper: cheap layout plumbing only (transpose/pad/flatten of the raw input,
# per-tap weight matrices, interior mask, stride-2 selection matrix, packed
# per-channel params, and the final un-flatten of the deconv output).
# ----------------------------------------------------------------------------
def image_block_forward(x_nchw, params, eps=1e-5):
    N, C, H, W = x_nchw.shape
    assert H % 2 == 0 and W % 2 == 0, "even spatial dims required"
    Hp, Wp = H + 2, W + 2
    P1 = N * Hp * Wp
    G = ((Wp + 1 + 127) // 128) * 128            # lane-aligned guard >= max |tap shift|
    PADW = ((P1 + 2 * G + 127) // 128) * 128     # zero-guarded, lane-padded width
    Ho, Wo = H // 2, W // 2
    M2 = N * Ho * Wo

    f32, bf16 = jnp.float32, jnp.bfloat16

    # channel-major, spatially zero-padded, flattened, zero-guarded input (bf16)
    xp = jnp.pad(jnp.transpose(x_nchw, (1, 0, 2, 3)),
                 ((0, 0), (0, 0), (1, 1), (1, 1)))           # (C, N, Hp, Wp)
    x_ext = jnp.pad(xp.reshape(C, P1),
                    ((0, 0), (G, PADW - P1 - G))).astype(bf16)

    # per-tap (C_out, C_in) weight matrices
    w1k = jnp.transpose(params["conv1_w"], (2, 3, 0, 1)).reshape(9, C, C).astype(bf16)
    w2k = jnp.transpose(params["conv2_w"], (2, 3, 0, 1)).reshape(9, C, C).astype(bf16)
    w3k = jnp.transpose(params["deconv_w"], (2, 3, 1, 0)).reshape(4, C, C).astype(bf16)

    # interior (= non zero-padding) mask in the flattened padded layout
    mh = (jnp.arange(Hp) >= 1) & (jnp.arange(Hp) <= H)
    mw = (jnp.arange(Wp) >= 1) & (jnp.arange(Wp) <= W)
    m2d = (mh[:, None] & mw[None, :]).astype(f32)
    mask = jnp.broadcast_to(m2d[None], (N, Hp, Wp)).reshape(1, P1)

    # 0/1 matrix selecting the stride-2 conv output centers (exact in bf16)
    p_sel = (jnp.arange(N)[:, None, None] * Hp * Wp
             + (2 * jnp.arange(Ho)[None, :, None] + 1) * Wp
             + (2 * jnp.arange(Wo)[None, None, :] + 1)).reshape(M2)
    sel = jax.nn.one_hot(p_sel, P1, dtype=f32).T.astype(bf16)      # (P1, M2)

    # packed per-channel parameters
    pvec = jnp.stack([params["conv1_b"], params["conv2_b"], params["deconv_b"],
                      params["bn_gamma"], params["bn_beta"]], axis=1).astype(f32)

    kernel = functools.partial(
        _image_block_kernel, C=C, P1=P1, G=G, Wp=Wp, PADW=PADW,
        n1=float(N * H * W), n2=float(M2), n3=float(4 * M2), eps=float(eps))

    out_k = pl.pallas_call(
        kernel,
        out_shape=jax.ShapeDtypeStruct((4, C, M2), f32),
        grid=(1,),
        in_specs=[
            pl.BlockSpec((C, PADW), lambda i: (0, 0)),
            pl.BlockSpec((9, C, C), lambda i: (0, 0, 0)),
            pl.BlockSpec((9, C, C), lambda i: (0, 0, 0)),
            pl.BlockSpec((4, C, C), lambda i: (0, 0, 0)),
            pl.BlockSpec((P1, M2), lambda i: (0, 0)),
            pl.BlockSpec((1, P1), lambda i: (0, 0)),
            pl.BlockSpec((C, 5), lambda i: (0, 0)),
        ],
        out_specs=pl.BlockSpec((4, C, M2), lambda i: (0, 0, 0)),
        scratch_shapes=[pltpu.VMEM((C, PADW), f32)],
        compiler_params=pltpu.CompilerParams(
            dimension_semantics=("arbitrary",)),
    )(x_ext, w1k, w2k, w3k, sel, mask, pvec)

    # (kh, kw, c, n, ho, wo) -> (n, c, 2*ho+kh, 2*wo+kw)  (pure layout plumbing)
    out = (out_k.reshape(2, 2, C, N, Ho, Wo)
                .transpose(3, 2, 4, 0, 5, 1)
                .reshape(N, C, H, W))
    return out


# ----------------------------------------------------------------------------
# Pure-JAX f32 reference (ground truth for the sanity check).
# ----------------------------------------------------------------------------
def image_block_reference(x, params, eps=1e-5):
    def conv(x, w, b, stride):
        y = jax.lax.conv_general_dilated(
            x, w, (stride, stride), ((1, 1), (1, 1)),
            dimension_numbers=("NCHW", "OIHW", "NCHW"),
            precision=jax.lax.Precision.HIGHEST)
        return y + b[None, :, None, None]

    def bn_relu(y, gamma, beta):
        mu = jnp.mean(y, axis=(0, 2, 3), keepdims=True)
        var = jnp.mean((y - mu) ** 2, axis=(0, 2, 3), keepdims=True)
        z = gamma[None, :, None, None] * (y - mu) / jnp.sqrt(var + eps) \
            + beta[None, :, None, None]
        return jnp.maximum(z, 0.0)

    g, b = params["bn_gamma"], params["bn_beta"]
    y = bn_relu(conv(x, params["conv1_w"], params["conv1_b"], 1), g, b)
    y = bn_relu(conv(y, params["conv2_w"], params["conv2_b"], 2), g, b)
    # ConvTranspose2d(C, C, 2, 2, stride=2): out[n,o,2h+j,2w+k] = sum_i y[n,i,h,w]*W[i,o,j,k]+b[o]
    N, C, H2, W2 = y.shape
    yd = jnp.einsum("nihw,iojk->nohjwk", y, params["deconv_w"],
                    precision=jax.lax.Precision.HIGHEST)
    yd = yd.reshape(N, C, 2 * H2, 2 * W2) + params["deconv_b"][None, :, None, None]
    return bn_relu(yd, g, b)


# ----------------------------------------------------------------------------
def init_params(key, C):
    ks = jax.random.split(key, 6)
    scale3 = 1.0 / jnp.sqrt(C * 9.0)
    scale2 = 1.0 / jnp.sqrt(C * 4.0)
    return {
        "conv1_w": jax.random.uniform(ks[0], (C, C, 3, 3), jnp.float32, -scale3, scale3),
        "conv1_b": jax.random.uniform(ks[1], (C,), jnp.float32, -scale3, scale3),
        "conv2_w": jax.random.uniform(ks[2], (C, C, 3, 3), jnp.float32, -scale3, scale3),
        "conv2_b": jax.random.uniform(ks[3], (C,), jnp.float32, -scale3, scale3),
        "deconv_w": jax.random.uniform(ks[4], (C, C, 2, 2), jnp.float32, -scale2, scale2),
        "deconv_b": jax.random.uniform(ks[5], (C,), jnp.float32, -scale2, scale2),
        "bn_gamma": jnp.ones((C,), jnp.float32),
        "bn_beta": jnp.zeros((C,), jnp.float32),
    }


if __name__ == "__main__":
    key = jax.random.PRNGKey(0)
    k_x, k_p = jax.random.split(key)

    N, C, H, W = 2, 4, 16, 16
    x = jax.random.normal(k_x, (N, C, H, W), jnp.float32)
    params = init_params(k_p, C)

    fwd = jax.jit(image_block_forward)
    out = jax.block_until_ready(fwd(x, params))
    assert out.shape == (N, C, H, W), out.shape
    assert bool(jnp.all(jnp.isfinite(out)))

    ref = jax.block_until_ready(image_block_reference(x, params))
    # The kernel feeds the MXU bf16 operands (per perf review).  Three chained,
    # batch-renormalized conv layers with bf16 matmul inputs land at a few 1e-3
    # typical / ~1e-2 worst-case elementwise error vs. the f32 HIGHEST reference.
    err = jnp.abs(out - ref)
    assert float(jnp.mean(err)) < 1e-2, float(jnp.mean(err))
    assert jnp.allclose(out, ref, atol=3e-2, rtol=3e-2), float(jnp.max(err))

    print("KERNEL_OK")
</pallas_src>

<mosaic_0001>
module attributes {stable_mosaic.version = 11 : i64} {
  func.func @_image_block_kernel(%arg0: i32, %arg1: memref<4x1024xbf16, #tpu.memory_space<vmem>>, %arg2: memref<9x4x4xbf16, #tpu.memory_space<vmem>>, %arg3: memref<9x4x4xbf16, #tpu.memory_space<vmem>>, %arg4: memref<4x4x4xbf16, #tpu.memory_space<vmem>>, %arg5: memref<648x128xbf16, #tpu.memory_space<vmem>>, %arg6: memref<1x648xf32, #tpu.memory_space<vmem>>, %arg7: memref<4x5xf32, #tpu.memory_space<vmem>>, %arg8: memref<4x4x128xf32, #tpu.memory_space<vmem>>, %arg9: memref<4x1024xf32, #tpu.memory_space<vmem>>) attributes {dimension_semantics = [#tpu.dimension_semantics<arbitrary>], iteration_bounds = array<i64: 1>, scalar_prefetch = 0 : i64, scratch_operands = 1 : i64, tpu.core_type = #tpu.core_type<tc>, window_params = [{pipeline_mode = #tpu.pipeline_mode<synchronous>, transform_indices = @transform_0, window_bounds = array<i64: 4, 1024>}, {pipeline_mode = #tpu.pipeline_mode<synchronous>, transform_indices = @transform_1, window_bounds = array<i64: 9, 4, 4>}, {pipeline_mode = #tpu.pipeline_mode<synchronous>, transform_indices = @transform_2, window_bounds = array<i64: 9, 4, 4>}, {pipeline_mode = #tpu.pipeline_mode<synchronous>, transform_indices = @transform_3, window_bounds = array<i64: 4, 4, 4>}, {pipeline_mode = #tpu.pipeline_mode<synchronous>, transform_indices = @transform_4, window_bounds = array<i64: 648, 128>}, {pipeline_mode = #tpu.pipeline_mode<synchronous>, transform_indices = @transform_5, window_bounds = array<i64: 1, 648>}, {pipeline_mode = #tpu.pipeline_mode<synchronous>, transform_indices = @transform_6, window_bounds = array<i64: 4, 5>}, {pipeline_mode = #tpu.pipeline_mode<synchronous>, transform_indices = @transform_7, window_bounds = array<i64: 4, 4, 128>}]} {
    %c0 = arith.constant 0 : index
    %c0_0 = arith.constant 0 : index
    %0 = vector.load %arg7[%c0, %c0_0] : memref<4x5xf32, #tpu.memory_space<vmem>>, vector<4x1xf32>
    %c0_1 = arith.constant 0 : index
    %c1 = arith.constant 1 : index
    %1 = vector.load %arg7[%c0_1, %c1] : memref<4x5xf32, #tpu.memory_space<vmem>>, vector<4x1xf32>
    %c0_2 = arith.constant 0 : index
    %c2 = arith.constant 2 : index
    %2 = vector.load %arg7[%c0_2, %c2] : memref<4x5xf32, #tpu.memory_space<vmem>>, vector<4x1xf32>
    %c0_3 = arith.constant 0 : index
    %c3 = arith.constant 3 : index
    %3 = vector.load %arg7[%c0_3, %c3] : memref<4x5xf32, #tpu.memory_space<vmem>>, vector<4x1xf32>
    %c0_4 = arith.constant 0 : index
    %c4 = arith.constant 4 : index
    %4 = vector.load %arg7[%c0_4, %c4] : memref<4x5xf32, #tpu.memory_space<vmem>>, vector<4x1xf32>
    %c0_5 = arith.constant 0 : index
    %c0_6 = arith.constant 0 : index
    %5 = vector.load %arg6[%c0_5, %c0_6] : memref<1x648xf32, #tpu.memory_space<vmem>>, vector<1x648xf32>
    %c0_7 = arith.constant 0 : index
    %c109 = arith.constant 109 : index
    %6 = vector.load %arg1[%c0_7, %c109] : memref<4x1024xbf16, #tpu.memory_space<vmem>>, vector<4x648xbf16>
    %c0_8 = arith.constant 0 : index
    %c0_9 = arith.constant 0 : index
    %c0_10 = arith.constant 0 : index
    %7 = vector.load %arg2[%c0_8, %c0_9, %c0_10] : memref<9x4x4xbf16, #tpu.memory_space<vmem>>, vector<1x4x4xbf16>
    %8 = vector.shape_cast %7 : vector<1x4x4xbf16> to vector<4x4xbf16>
    %cst = arith.constant dense<0.000000e+00> : vector<4x648xf32>
    %9 = tpu.matmul %8, %6, %cst {dimension_numbers = #tpu.dot_dimension_numbers<[1], [0], [0], [1], [0, 0, 1, 1], [], []>} : vector<4x4xbf16>, vector<4x648xbf16>, vector<4x648xf32> -> vector<4x648xf32>
    %c0_11 = arith.constant 0 : index
    %c110 = arith.constant 110 : index
    %10 = vector.load %arg1[%c0_11, %c110] : memref<4x1024xbf16, #tpu.memory_space<vmem>>, vector<4x648xbf16>
    %c1_12 = arith.constant 1 : index
    %c0_13 = arith.constant 0 : index
    %c0_14 = arith.constant 0 : index
    %11 = vector.load %arg2[%c1_12, %c0_13, %c0_14] : memref<9x4x4xbf16, #tpu.memory_space<vmem>>, vector<1x4x4xbf16>
    %12 = vector.shape_cast %11 : vector<1x4x4xbf16> to vector<4x4xbf16>
    %cst_15 = arith.constant dense<0.000000e+00> : vector<4x648xf32>
    %13 = tpu.matmul %12, %10, %cst_15 {dimension_numbers = #tpu.dot_dimension_numbers<[1], [0], [0], [1], [0, 0, 1, 1], [], []>} : vector<4x4xbf16>, vector<4x648xbf16>, vector<4x648xf32> -> vector<4x648xf32>
    %14 = arith.addf %9, %13 : vector<4x648xf32>
    %c0_16 = arith.constant 0 : index
    %c111 = arith.constant 111 : index
    %15 = vector.load %arg1[%c0_16, %c111] : memref<4x1024xbf16, #tpu.memory_space<vmem>>, vector<4x648xbf16>
    %c2_17 = arith.constant 2 : index
    %c0_18 = arith.constant 0 : index
    %c0_19 = arith.constant 0 : index
    %16 = vector.load %arg2[%c2_17, %c0_18, %c0_19] : memref<9x4x4xbf16, #tpu.memory_space<vmem>>, vector<1x4x4xbf16>
    %17 = vector.shape_cast %16 : vector<1x4x4xbf16> to vector<4x4xbf16>
    %cst_20 = arith.constant dense<0.000000e+00> : vector<4x648xf32>
    %18 = tpu.matmul %17, %15, %cst_20 {dimension_numbers = #tpu.dot_dimension_numbers<[1], [0], [0], [1], [0, 0, 1, 1], [], []>} : vector<4x4xbf16>, vector<4x648xbf16>, vector<4x648xf32> -> vector<4x648xf32>
    %19 = arith.addf %14, %18 : vector<4x648xf32>
    %c0_21 = arith.constant 0 : index
    %c127 = arith.constant 127 : index
    %20 = vector.load %arg1[%c0_21, %c127] : memref<4x1024xbf16, #tpu.memory_space<vmem>>, vector<4x648xbf16>
    %c3_22 = arith.constant 3 : index
    %c0_23 = arith.constant 0 : index
    %c0_24 = arith.constant 0 : index
    %21 = vector.load %arg2[%c3_22, %c0_23, %c0_24] : memref<9x4x4xbf16, #tpu.memory_space<vmem>>, vector<1x4x4xbf16>
    %22 = vector.shape_cast %21 : vector<1x4x4xbf16> to vector<4x4xbf16>
    %cst_25 = arith.constant dense<0.000000e+00> : vector<4x648xf32>
    %23 = tpu.matmul %22, %20, %cst_25 {dimension_numbers = #tpu.dot_dimension_numbers<[1], [0], [0], [1], [0, 0, 1, 1], [], []>} : vector<4x4xbf16>, vector<4x648xbf16>, vector<4x648xf32> -> vector<4x648xf32>
    %24 = arith.addf %19, %23 : vector<4x648xf32>
    %c0_26 = arith.constant 0 : index
    %c128 = arith.constant 128 : index
    %25 = vector.load %arg1[%c0_26, %c128] : memref<4x1024xbf16, #tpu.memory_space<vmem>>, vector<4x648xbf16>
    %c4_27 = arith.constant 4 : index
    %c0_28 = arith.constant 0 : index
    %c0_29 = arith.constant 0 : index
    %26 = vector.load %arg2[%c4_27, %c0_28, %c0_29] : memref<9x4x4xbf16, #tpu.memory_space<vmem>>, vector<1x4x4xbf16>
    %27 = vector.shape_cast %26 : vector<1x4x4xbf16> to vector<4x4xbf16>
    %cst_30 = arith.constant dense<0.000000e+00> : vector<4x648xf32>
    %28 = tpu.matmul %27, %25, %cst_30 {dimension_numbers = #tpu.dot_dimension_numbers<[1], [0], [0], [1], [0, 0, 1, 1], [], []>} : vector<4x4xbf16>, vector<4x648xbf16>, vector<4x648xf32> -> vector<4x648xf32>
    %29 = arith.addf %24, %28 : vector<4x648xf32>
    %c0_31 = arith.constant 0 : index
    %c129 = arith.constant 129 : index
    %30 = vector.load %arg1[%c0_31, %c129] : memref<4x1024xbf16, #tpu.memory_space<vmem>>, vector<4x648xbf16>
    %c5 = arith.constant 5 : index
    %c0_32 = arith.constant 0 : index
    %c0_33 = arith.constant 0 : index
    %31 = vector.load %arg2[%c5, %c0_32, %c0_33] : memref<9x4x4xbf16, #tpu.memory_space<vmem>>, vector<1x4x4xbf16>
    %32 = vector.shape_cast %31 : vector<1x4x4xbf16> to vector<4x4xbf16>
    %cst_34 = arith.constant dense<0.000000e+00> : vector<4x648xf32>
    %33 = tpu.matmul %32, %30, %cst_34 {dimension_numbers = #tpu.dot_dimension_numbers<[1], [0], [0], [1], [0, 0, 1, 1], [], []>} : vector<4x4xbf16>, vector<4x648xbf16>, vector<4x648xf32> -> vector<4x648xf32>
    %34 = arith.addf %29, %33 : vector<4x648xf32>
    %c0_35 = arith.constant 0 : index
    %c145 = arith.constant 145 : index
    %35 = vector.load %arg1[%c0_35, %c145] : memref<4x1024xbf16, #tpu.memory_space<vmem>>, vector<4x648xbf16>
    %c6 = arith.constant 6 : index
    %c0_36 = arith.constant 0 : index
    %c0_37 = arith.constant 0 : index
    %36 = vector.load %arg2[%c6, %c0_36, %c0_37] : memref<9x4x4xbf16, #tpu.memory_space<vmem>>, vector<1x4x4xbf16>
    %37 = vector.shape_cast %36 : vector<1x4x4xbf16> to vector<4x4xbf16>
    %cst_38 = arith.constant dense<0.000000e+00> : vector<4x648xf32>
    %38 = tpu.matmul %37, %35, %cst_38 {dimension_numbers = #tpu.dot_dimension_numbers<[1], [0], [0], [1], [0, 0, 1, 1], [], []>} : vector<4x4xbf16>, vector<4x648xbf16>, vector<4x648xf32> -> vector<4x648xf32>
    %39 = arith.addf %34, %38 : vector<4x648xf32>
    %c0_39 = arith.constant 0 : index
    %c146 = arith.constant 146 : index
    %40 = vector.load %arg1[%c0_39, %c146] : memref<4x1024xbf16, #tpu.memory_space<vmem>>, vector<4x648xbf16>
    %c7 = arith.constant 7 : index
    %c0_40 = arith.constant 0 : index
    %c0_41 = arith.constant 0 : index
    %41 = vector.load %arg2[%c7, %c0_40, %c0_41] : memref<9x4x4xbf16, #tpu.memory_space<vmem>>, vector<1x4x4xbf16>
    %42 = vector.shape_cast %41 : vector<1x4x4xbf16> to vector<4x4xbf16>
    %cst_42 = arith.constant dense<0.000000e+00> : vector<4x648xf32>
    %43 = tpu.matmul %42, %40, %cst_42 {dimension_numbers = #tpu.dot_dimension_numbers<[1], [0], [0], [1], [0, 0, 1, 1], [], []>} : vector<4x4xbf16>, vector<4x648xbf16>, vector<4x648xf32> -> vector<4x648xf32>
    %44 = arith.addf %39, %43 : vector<4x648xf32>
    %c0_43 = arith.constant 0 : index
    %c147 = arith.constant 147 : index
    %45 = vector.load %arg1[%c0_43, %c147] : memref<4x1024xbf16, #tpu.memory_space<vmem>>, vector<4x648xbf16>
    %c8 = arith.constant 8 : index
    %c0_44 = arith.constant 0 : index
    %c0_45 = arith.constant 0 : index
    %46 = vector.load %arg2[%c8, %c0_44, %c0_45] : memref<9x4x4xbf16, #tpu.memory_space<vmem>>, vector<1x4x4xbf16>
    %47 = vector.shape_cast %46 : vector<1x4x4xbf16> to vector<4x4xbf16>
    %cst_46 = arith.constant dense<0.000000e+00> : vector<4x648xf32>
    %48 = tpu.matmul %47, %45, %cst_46 {dimension_numbers = #tpu.dot_dimension_numbers<[1], [0], [0], [1], [0, 0, 1, 1], [], []>} : vector<4x4xbf16>, vector<4x648xbf16>, vector<4x648xf32> -> vector<4x648xf32>
    %49 = arith.addf %44, %48 : vector<4x648xf32>
    %50 = vector.broadcast %0 : vector<4x1xf32> to vector<4x648xf32>
    %51 = arith.addf %49, %50 : vector<4x648xf32>
    %52 = vector.broadcast %5 : vector<1x648xf32> to vector<4x648xf32>
    %53 = arith.mulf %51, %52 : vector<4x648xf32>
    %cst_47 = arith.constant dense<0.000000e+00> : vector<4xf32>
    %54 = vector.multi_reduction <add>, %53, %cst_47 [1] : vector<4x648xf32> to vector<4xf32>
    %55 = vector.shape_cast %54 : vector<4xf32> to vector<4x1xf32>
    %cst_48 = arith.constant 0.001953125 : f32
    %56 = vector.broadcast %cst_48 : f32 to vector<4x1xf32>
    %57 = arith.mulf %55, %56 : vector<4x1xf32>
    %58 = vector.broadcast %57 : vector<4x1xf32> to vector<4x648xf32>
    %59 = arith.subf %51, %58 : vector<4x648xf32>
    %60 = arith.mulf %59, %59 : vector<4x648xf32>
    %61 = vector.broadcast %5 : vector<1x648xf32> to vector<4x648xf32>
    %62 = arith.mulf %60, %61 : vector<4x648xf32>
    %cst_49 = arith.constant dense<0.000000e+00> : vector<4xf32>
    %63 = vector.multi_reduction <add>, %62, %cst_49 [1] : vector<4x648xf32> to vector<4xf32>
    %64 = vector.shape_cast %63 : vector<4xf32> to vector<4x1xf32>
    %cst_50 = arith.constant 0.001953125 : f32
    %65 = vector.broadcast %cst_50 : f32 to vector<4x1xf32>
    %66 = arith.mulf %64, %65 : vector<4x1xf32>
    %67 = vector.broadcast %3 : vector<4x1xf32> to vector<4x648xf32>
    %68 = arith.mulf %67, %59 : vector<4x648xf32>
    %cst_51 = arith.constant 9.99999974E-6 : f32
    %69 = vector.broadcast %cst_51 : f32 to vector<4x1xf32>
    %70 = arith.addf %66, %69 : vector<4x1xf32>
    %71 = math.rsqrt %70 : vector<4x1xf32>
    %72 = vector.broadcast %71 : vector<4x1xf32> to vector<4x648xf32>
    %73 = arith.mulf %68, %72 : vector<4x648xf32>
    %74 = vector.broadcast %4 : vector<4x1xf32> to vector<4x648xf32>
    %75 = arith.addf %73, %74 : vector<4x648xf32>
    %cst_52 = arith.constant 0.000000e+00 : f32
    %76 = vector.broadcast %cst_52 : f32 to vector<4x648xf32>
    %77 = arith.maximumf %75, %76 : vector<4x648xf32>
    %78 = vector.broadcast %5 : vector<1x648xf32> to vector<4x648xf32>
    %79 = arith.mulf %77, %78 : vector<4x648xf32>
    %cst_53 = arith.constant 0.000000e+00 : f32
    %80 = vector.broadcast %cst_53 : f32 to vector<4x1024xf32>
    %c0_54 = arith.constant 0 : index
    %c0_55 = arith.constant 0 : index
    %81 = vector.load %arg9[%c0_54, %c0_55] : memref<4x1024xf32, #tpu.memory_space<vmem>>, vector<4x1024xf32>
    tpu.vector_store %arg9[%c0_54, %c0_55], %80 {strides = array<i32>} : memref<4x1024xf32, #tpu.memory_space<vmem>>, vector<4x1024xf32>,
    %c0_56 = arith.constant 0 : index
    %c128_57 = arith.constant 128 : index
    %82 = vector.load %arg9[%c0_56, %c128_57] : memref<4x1024xf32, #tpu.memory_space<vmem>>, vector<4x648xf32>
    tpu.vector_store %arg9[%c0_56, %c128_57], %79 {strides = array<i32>} : memref<4x1024xf32, #tpu.memory_space<vmem>>, vector<4x648xf32>,
    %c0_58 = arith.constant 0 : index
    %c109_59 = arith.constant 109 : index
    %83 = vector.load %arg9[%c0_58, %c109_59] : memref<4x1024xf32, #tpu.memory_space<vmem>>, vector<4x648xf32>
    %84 = arith.truncf %83 : vector<4x648xf32> to vector<4x648xbf16>
    %c0_60 = arith.constant 0 : index
    %c0_61 = arith.constant 0 : index
    %c0_62 = arith.constant 0 : index
    %85 = vector.load %arg3[%c0_60, %c0_61, %c0_62] : memref<9x4x4xbf16, #tpu.memory_space<vmem>>, vector<1x4x4xbf16>
    %86 = vector.shape_cast %85 : vector<1x4x4xbf16> to vector<4x4xbf16>
    %cst_63 = arith.constant dense<0.000000e+00> : vector<4x648xf32>
    %87 = tpu.matmul %86, %84, %cst_63 {dimension_numbers = #tpu.dot_dimension_numbers<[1], [0], [0], [1], [0, 0, 1, 1], [], []>} : vector<4x4xbf16>, vector<4x648xbf16>, vector<4x648xf32> -> vector<4x648xf32>
    %c0_64 = arith.constant 0 : index
    %c110_65 = arith.constant 110 : index
    %88 = vector.load %arg9[%c0_64, %c110_65] : memref<4x1024xf32, #tpu.memory_space<vmem>>, vector<4x648xf32>
    %89 = arith.truncf %88 : vector<4x648xf32> to vector<4x648xbf16>
    %c1_66 = arith.constant 1 : index
    %c0_67 = arith.constant 0 : index
    %c0_68 = arith.constant 0 : index
    %90 = vector.load %arg3[%c1_66, %c0_67, %c0_68] : memref<9x4x4xbf16, #tpu.memory_space<vmem>>, vector<1x4x4xbf16>
    %91 = vector.shape_cast %90 : vector<1x4x4xbf16> to vector<4x4xbf16>
    %cst_69 = arith.constant dense<0.000000e+00> : vector<4x648xf32>
    %92 = tpu.matmul %91, %89, %cst_69 {dimension_numbers = #tpu.dot_dimension_numbers<[1], [0], [0], [1], [0, 0, 1, 1], [], []>} : vector<4x4xbf16>, vector<4x648xbf16>, vector<4x648xf32> -> vector<4x648xf32>
    %93 = arith.addf %87, %92 : vector<4x648xf32>
    %c0_70 = arith.constant 0 : index
    %c111_71 = arith.constant 111 : index
    %94 = vector.load %arg9[%c0_70, %c111_71] : memref<4x1024xf32, #tpu.memory_space<vmem>>, vector<4x648xf32>
    %95 = arith.truncf %94 : vector<4x648xf32> to vector<4x648xbf16>
    %c2_72 = arith.constant 2 : index
    %c0_73 = arith.constant 0 : index
    %c0_74 = arith.constant 0 : index
    %96 = vector.load %arg3[%c2_72, %c0_73, %c0_74] : memref<9x4x4xbf16, #tpu.memory_space<vmem>>, vector<1x4x4xbf16>
    %97 = vector.shape_cast %96 : vector<1x4x4xbf16> to vector<4x4xbf16>
    %cst_75 = arith.constant dense<0.000000e+00> : vector<4x648xf32>
    %98 = tpu.matmul %97, %95, %cst_75 {dimension_numbers = #tpu.dot_dimension_numbers<[1], [0], [0], [1], [0, 0, 1, 1], [], []>} : vector<4x4xbf16>, vector<4x648xbf16>, vector<4x648xf32> -> vector<4x648xf32>
    %99 = arith.addf %93, %98 : vector<4x648xf32>
    %c0_76 = arith.constant 0 : index
    %c127_77 = arith.constant 127 : index
    %100 = vector.load %arg9[%c0_76, %c127_77] : memref<4x1024xf32, #tpu.memory_space<vmem>>, vector<4x648xf32>
    %101 = arith.truncf %100 : vector<4x648xf32> to vector<4x648xbf16>
    %c3_78 = arith.constant 3 : index
    %c0_79 = arith.constant 0 : index
    %c0_80 = arith.constant 0 : index
    %102 = vector.load %arg3[%c3_78, %c0_79, %c0_80] : memref<9x4x4xbf16, #tpu.memory_space<vmem>>, vector<1x4x4xbf16>
    %103 = vector.shape_cast %102 : vector<1x4x4xbf16> to vector<4x4xbf16>
    %cst_81 = arith.constant dense<0.000000e+00> : vector<4x648xf32>
    %104 = tpu.matmul %103, %101, %cst_81 {dimension_numbers = #tpu.dot_dimension_numbers<[1], [0], [0], [1], [0, 0, 1, 1], [], []>} : vector<4x4xbf16>, vector<4x648xbf16>, vector<4x648xf32> -> vector<4x648xf32>
    %105 = arith.addf %99, %104 : vector<4x648xf32>
    %c0_82 = arith.constant 0 : index
    %c128_83 = arith.constant 128 : index
    %106 = vector.load %arg9[%c0_82, %c128_83] : memref<4x1024xf32, #tpu.memory_space<vmem>>, vector<4x648xf32>
    %107 = arith.truncf %106 : vector<4x648xf32> to vector<4x648xbf16>
    %c4_84 = arith.constant 4 : index
    %c0_85 = arith.constant 0 : index
    %c0_86 = arith.constant 0 : index
    %108 = vector.load %arg3[%c4_84, %c0_85, %c0_86] : memref<9x4x4xbf16, #tpu.memory_space<vmem>>, vector<1x4x4xbf16>
    %109 = vector.shape_cast %108 : vector<1x4x4xbf16> to vector<4x4xbf16>
    %cst_87 = arith.constant dense<0.000000e+00> : vector<4x648xf32>
    %110 = tpu.matmul %109, %107, %cst_87 {dimension_numbers = #tpu.dot_dimension_numbers<[1], [0], [0], [1], [0, 0, 1, 1], [], []>} : vector<4x4xbf16>, vector<4x648xbf16>, vector<4x648xf32> -> vector<4x648xf32>
    %111 = arith.addf %105, %110 : vector<4x648xf32>
    %c0_88 = arith.constant 0 : index
    %c129_89 = arith.constant 129 : index
    %112 = vector.load %arg9[%c0_88, %c129_89] : memref<4x1024xf32, #tpu.memory_space<vmem>>, vector<4x648xf32>
    %113 = arith.truncf %112 : vector<4x648xf32> to vector<4x648xbf16>
    %c5_90 = arith.constant 5 : index
    %c0_91 = arith.constant 0 : index
    %c0_92 = arith.constant 0 : index
    %114 = vector.load %arg3[%c5_90, %c0_91, %c0_92] : memref<9x4x4xbf16, #tpu.memory_space<vmem>>, vector<1x4x4xbf16>
    %115 = vector.shape_cast %114 : vector<1x4x4xbf16> to vector<4x4xbf16>
    %cst_93 = arith.constant dense<0.000000e+00> : vector<4x648xf32>
    %116 = tpu.matmul %115, %113, %cst_93 {dimension_numbers = #tpu.dot_dimension_numbers<[1], [0], [0], [1], [0, 0, 1, 1], [], []>} : vector<4x4xbf16>, vector<4x648xbf16>, vector<4x648xf32> -> vector<4x648xf32>
    %117 = arith.addf %111, %116 : vector<4x648xf32>
    %c0_94 = arith.constant 0 : index
    %c145_95 = arith.constant 145 : index
    %118 = vector.load %arg9[%c0_94, %c145_95] : memref<4x1024xf32, #tpu.memory_space<vmem>>, vector<4x648xf32>
    %119 = arith.truncf %118 : vector<4x648xf32> to vector<4x648xbf16>
    %c6_96 = arith.constant 6 : index
    %c0_97 = arith.constant 0 : index
    %c0_98 = arith.constant 0 : index
    %120 = vector.load %arg3[%c6_96, %c0_97, %c0_98] : memref<9x4x4xbf16, #tpu.memory_space<vmem>>, vector<1x4x4xbf16>
    %121 = vector.shape_cast %120 : vector<1x4x4xbf16> to vector<4x4xbf16>
    %cst_99 = arith.constant dense<0.000000e+00> : vector<4x648xf32>
    %122 = tpu.matmul %121, %119, %cst_99 {dimension_numbers = #tpu.dot_dimension_numbers<[1], [0], [0], [1], [0, 0, 1, 1], [], []>} : vector<4x4xbf16>, vector<4x648xbf16>, vector<4x648xf32> -> vector<4x648xf32>
    %123 = arith.addf %117, %122 : vector<4x648xf32>
    %c0_100 = arith.constant 0 : index
    %c146_101 = arith.constant 146 : index
    %124 = vector.load %arg9[%c0_100, %c146_101] : memref<4x1024xf32, #tpu.memory_space<vmem>>, vector<4x648xf32>
    %125 = arith.truncf %124 : vector<4x648xf32> to vector<4x648xbf16>
    %c7_102 = arith.constant 7 : index
    %c0_103 = arith.constant 0 : index
    %c0_104 = arith.constant 0 : index
    %126 = vector.load %arg3[%c7_102, %c0_103, %c0_104] : memref<9x4x4xbf16, #tpu.memory_space<vmem>>, vector<1x4x4xbf16>
    %127 = vector.shape_cast %126 : vector<1x4x4xbf16> to vector<4x4xbf16>
    %cst_105 = arith.constant dense<0.000000e+00> : vector<4x648xf32>
    %128 = tpu.matmul %127, %125, %cst_105 {dimension_numbers = #tpu.dot_dimension_numbers<[1], [0], [0], [1], [0, 0, 1, 1], [], []>} : vector<4x4xbf16>, vector<4x648xbf16>, vector<4x648xf32> -> vector<4x648xf32>
    %129 = arith.addf %123, %128 : vector<4x648xf32>
    %c0_106 = arith.constant 0 : index
    %c147_107 = arith.constant 147 : index
    %130 = vector.load %arg9[%c0_106, %c147_107] : memref<4x1024xf32, #tpu.memory_space<vmem>>, vector<4x648xf32>
    %131 = arith.truncf %130 : vector<4x648xf32> to vector<4x648xbf16>
    %c8_108 = arith.constant 8 : index
    %c0_109 = arith.constant 0 : index
    %c0_110 = arith.constant 0 : index
    %132 = vector.load %arg3[%c8_108, %c0_109, %c0_110] : memref<9x4x4xbf16, #tpu.memory_space<vmem>>, vector<1x4x4xbf16>
    %133 = vector.shape_cast %132 : vector<1x4x4xbf16> to vector<4x4xbf16>
    %cst_111 = arith.constant dense<0.000000e+00> : vector<4x648xf32>
    %134 = tpu.matmul %133, %131, %cst_111 {dimension_numbers = #tpu.dot_dimension_numbers<[1], [0], [0], [1], [0, 0, 1, 1], [], []>} : vector<4x4xbf16>, vector<4x648xbf16>, vector<4x648xf32> -> vector<4x648xf32>
    %135 = arith.addf %129, %134 : vector<4x648xf32>
    %136 = arith.truncf %135 : vector<4x648xf32> to vector<4x648xbf16>
    %c0_112 = arith.constant 0 : index
    %c0_113 = arith.constant 0 : index
    %137 = vector.load %arg5[%c0_112, %c0_113] : memref<648x128xbf16, #tpu.memory_space<vmem>>, vector<648x128xbf16>
    %cst_114 = arith.constant dense<0.000000e+00> : vector<4x128xf32>
    %138 = tpu.matmul %136, %137, %cst_114 {dimension_numbers = #tpu.dot_dimension_numbers<[1], [0], [0], [1], [0, 0, 1, 1], [], []>} : vector<4x648xbf16>, vector<648x128xbf16>, vector<4x128xf32> -> vector<4x128xf32>
    %139 = vector.broadcast %1 : vector<4x1xf32> to vector<4x128xf32>
    %140 = arith.addf %138, %139 : vector<4x128xf32>
    %cst_115 = arith.constant dense<0.000000e+00> : vector<4xf32>
    %141 = vector.multi_reduction <add>, %140, %cst_115 [1] : vector<4x128xf32> to vector<4xf32>
    %142 = vector.shape_cast %141 : vector<4xf32> to vector<4x1xf32>
    %cst_116 = arith.constant 7.812500e-03 : f32
    %143 = vector.broadcast %cst_116 : f32 to vector<4x1xf32>
    %144 = arith.mulf %142, %143 : vector<4x1xf32>
    %145 = vector.broadcast %144 : vector<4x1xf32> to vector<4x128xf32>
    %146 = arith.subf %140, %145 : vector<4x128xf32>
    %147 = arith.mulf %146, %146 : vector<4x128xf32>
    %cst_117 = arith.constant dense<0.000000e+00> : vector<4xf32>
    %148 = vector.multi_reduction <add>, %147, %cst_117 [1] : vector<4x128xf32> to vector<4xf32>
    %149 = vector.shape_cast %148 : vector<4xf32> to vector<4x1xf32>
    %cst_118 = arith.constant 7.812500e-03 : f32
    %150 = vector.broadcast %cst_118 : f32 to vector<4x1xf32>
    %151 = arith.mulf %149, %150 : vector<4x1xf32>
    %152 = vector.broadcast %3 : vector<4x1xf32> to vector<4x128xf32>
    %153 = arith.mulf %152, %146 : vector<4x128xf32>
    %cst_119 = arith.constant 9.99999974E-6 : f32
    %154 = vector.broadcast %cst_119 : f32 to vector<4x1xf32>
    %155 = arith.addf %151, %154 : vector<4x1xf32>
    %156 = math.rsqrt %155 : vector<4x1xf32>
    %157 = vector.broadcast %156 : vector<4x1xf32> to vector<4x128xf32>
    %158 = arith.mulf %153, %157 : vector<4x128xf32>
    %159 = vector.broadcast %4 : vector<4x1xf32> to vector<4x128xf32>
    %160 = arith.addf %158, %159 : vector<4x128xf32>
    %cst_120 = arith.constant 0.000000e+00 : f32
    %161 = vector.broadcast %cst_120 : f32 to vector<4x128xf32>
    %162 = arith.maximumf %160, %161 : vector<4x128xf32>
    %163 = arith.truncf %162 : vector<4x128xf32> to vector<4x128xbf16>
    %c0_121 = arith.constant 0 : index
    %c0_122 = arith.constant 0 : index
    %c0_123 = arith.constant 0 : index
    %164 = vector.load %arg4[%c0_121, %c0_122, %c0_123] : memref<4x4x4xbf16, #tpu.memory_space<vmem>>, vector<1x4x4xbf16>
    %165 = vector.shape_cast %164 : vector<1x4x4xbf16> to vector<4x4xbf16>
    %cst_124 = arith.constant dense<0.000000e+00> : vector<4x128xf32>
    %166 = tpu.matmul %165, %163, %cst_124 {dimension_numbers = #tpu.dot_dimension_numbers<[1], [0], [0], [1], [0, 0, 1, 1], [], []>} : vector<4x4xbf16>, vector<4x128xbf16>, vector<4x128xf32> -> vector<4x128xf32>
    %167 = vector.broadcast %2 : vector<4x1xf32> to vector<4x128xf32>
    %168 = arith.addf %166, %167 : vector<4x128xf32>
    %c1_125 = arith.constant 1 : index
    %c0_126 = arith.constant 0 : index
    %c0_127 = arith.constant 0 : index
    %169 = vector.load %arg4[%c1_125, %c0_126, %c0_127] : memref<4x4x4xbf16, #tpu.memory_space<vmem>>, vector<1x4x4xbf16>
    %170 = vector.shape_cast %169 : vector<1x4x4xbf16> to vector<4x4xbf16>
    %cst_128 = arith.constant dense<0.000000e+00> : vector<4x128xf32>
    %171 = tpu.matmul %170, %163, %cst_128 {dimension_numbers = #tpu.dot_dimension_numbers<[1], [0], [0], [1], [0, 0, 1, 1], [], []>} : vector<4x4xbf16>, vector<4x128xbf16>, vector<4x128xf32> -> vector<4x128xf32>
    %172 = vector.broadcast %2 : vector<4x1xf32> to vector<4x128xf32>
    %173 = arith.addf %171, %172 : vector<4x128xf32>
    %c2_129 = arith.constant 2 : index
    %c0_130 = arith.constant 0 : index
    %c0_131 = arith.constant 0 : index
    %174 = vector.load %arg4[%c2_129, %c0_130, %c0_131] : memref<4x4x4xbf16, #tpu.memory_space<vmem>>, vector<1x4x4xbf16>
    %175 = vector.shape_cast %174 : vector<1x4x4xbf16> to vector<4x4xbf16>
    %cst_132 = arith.constant dense<0.000000e+00> : vector<4x128xf32>
    %176 = tpu.matmul %175, %163, %cst_132 {dimension_numbers = #tpu.dot_dimension_numbers<[1], [0], [0], [1], [0, 0, 1, 1], [], []>} : vector<4x4xbf16>, vector<4x128xbf16>, vector<4x128xf32> -> vector<4x128xf32>
    %177 = vector.broadcast %2 : vector<4x1xf32> to vector<4x128xf32>
    %178 = arith.addf %176, %177 : vector<4x128xf32>
    %c3_133 = arith.constant 3 : index
    %c0_134 = arith.constant 0 : index
    %c0_135 = arith.constant 0 : index
    %179 = vector.load %arg4[%c3_133, %c0_134, %c0_135] : memref<4x4x4xbf16, #tpu.memory_space<vmem>>, vector<1x4x4xbf16>
    %180 = vector.shape_cast %179 : vector<1x4x4xbf16> to vector<4x4xbf16>
    %cst_136 = arith.constant dense<0.000000e+00> : vector<4x128xf32>
    %181 = tpu.matmul %180, %163, %cst_136 {dimension_numbers = #tpu.dot_dimension_numbers<[1], [0], [0], [1], [0, 0, 1, 1], [], []>} : vector<4x4xbf16>, vector<4x128xbf16>, vector<4x128xf32> -> vector<4x128xf32>
    %182 = vector.broadcast %2 : vector<4x1xf32> to vector<4x128xf32>
    %183 = arith.addf %181, %182 : vector<4x128xf32>
    %cst_137 = arith.constant dense<0.000000e+00> : vector<4xf32>
    %184 = vector.multi_reduction <add>, %168, %cst_137 [1] : vector<4x128xf32> to vector<4xf32>
    %185 = vector.shape_cast %184 : vector<4xf32> to vector<4x1xf32>
    %cst_138 = arith.constant 0.000000e+00 : f32
    %186 = vector.broadcast %cst_138 : f32 to vector<4x1xf32>
    %187 = arith.addf %186, %185 : vector<4x1xf32>
    %cst_139 = arith.constant dense<0.000000e+00> : vector<4xf32>
    %188 = vector.multi_reduction <add>, %173, %cst_139 [1] : vector<4x128xf32> to vector<4xf32>
    %189 = vector.shape_cast %188 : vector<4xf32> to vector<4x1xf32>
    %190 = arith.addf %187, %189 : vector<4x1xf32>
    %cst_140 = arith.constant dense<0.000000e+00> : vector<4xf32>
    %191 = vector.multi_reduction <add>, %178, %cst_140 [1] : vector<4x128xf32> to vector<4xf32>
    %192 = vector.shape_cast %191 : vector<4xf32> to vector<4x1xf32>
    %193 = arith.addf %190, %192 : vector<4x1xf32>
    %cst_141 = arith.constant dense<0.000000e+00> : vector<4xf32>
    %194 = vector.multi_reduction <add>, %183, %cst_141 [1] : vector<4x128xf32> to vector<4xf32>
    %195 = vector.shape_cast %194 : vector<4xf32> to vector<4x1xf32>
    %196 = arith.addf %193, %195 : vector<4x1xf32>
    %cst_142 = arith.constant 0.001953125 : f32
    %197 = vector.broadcast %cst_142 : f32 to vector<4x1xf32>
    %198 = arith.mulf %196, %197 : vector<4x1xf32>
    %199 = vector.broadcast %198 : vector<4x1xf32> to vector<4x128xf32>
    %200 = arith.subf %168, %199 : vector<4x128xf32>
    %201 = vector.broadcast %198 : vector<4x1xf32> to vector<4x128xf32>
    %202 = arith.subf %173, %201 : vector<4x128xf32>
    %203 = vector.broadcast %198 : vector<4x1xf32> to vector<4x128xf32>
    %204 = arith.subf %178, %203 : vector<4x128xf32>
    %205 = vector.broadcast %198 : vector<4x1xf32> to vector<4x128xf32>
    %206 = arith.subf %183, %205 : vector<4x128xf32>
    %207 = arith.mulf %200, %200 : vector<4x128xf32>
    %cst_143 = arith.constant dense<0.000000e+00> : vector<4xf32>
    %208 = vector.multi_reduction <add>, %207, %cst_143 [1] : vector<4x128xf32> to vector<4xf32>
    %209 = vector.shape_cast %208 : vector<4xf32> to vector<4x1xf32>
    %cst_144 = arith.constant 0.000000e+00 : f32
    %210 = vector.broadcast %cst_144 : f32 to vector<4x1xf32>
    %211 = arith.addf %210, %209 : vector<4x1xf32>
    %212 = arith.mulf %202, %202 : vector<4x128xf32>
    %cst_145 = arith.constant dense<0.000000e+00> : vector<4xf32>
    %213 = vector.multi_reduction <add>, %212, %cst_145 [1] : vector<4x128xf32> to vector<4xf32>
    %214 = vector.shape_cast %213 : vector<4xf32> to vector<4x1xf32>
    %215 = arith.addf %211, %214 : vector<4x1xf32>
    %216 = arith.mulf %204, %204 : vector<4x128xf32>
    %cst_146 = arith.constant dense<0.000000e+00> : vector<4xf32>
    %217 = vector.multi_reduction <add>, %216, %cst_146 [1] : vector<4x128xf32> to vector<4xf32>
    %218 = vector.shape_cast %217 : vector<4xf32> to vector<4x1xf32>
    %219 = arith.addf %215, %218 : vector<4x1xf32>
    %220 = arith.mulf %206, %206 : vector<4x128xf32>
    %cst_147 = arith.constant dense<0.000000e+00> : vector<4xf32>
    %221 = vector.multi_reduction <add>, %220, %cst_147 [1] : vector<4x128xf32> to vector<4xf32>
    %222 = vector.shape_cast %221 : vector<4xf32> to vector<4x1xf32>
    %223 = arith.addf %219, %222 : vector<4x1xf32>
    %cst_148 = arith.constant 0.001953125 : f32
    %224 = vector.broadcast %cst_148 : f32 to vector<4x1xf32>
    %225 = arith.mulf %223, %224 : vector<4x1xf32>
    %cst_149 = arith.constant 9.99999974E-6 : f32
    %226 = vector.broadcast %cst_149 : f32 to vector<4x1xf32>
    %227 = arith.addf %225, %226 : vector<4x1xf32>
    %228 = math.rsqrt %227 : vector<4x1xf32>
    %229 = vector.broadcast %3 : vector<4x1xf32> to vector<4x128xf32>
    %230 = arith.mulf %229, %200 : vector<4x128xf32>
    %231 = vector.broadcast %228 : vector<4x1xf32> to vector<4x128xf32>
    %232 = arith.mulf %230, %231 : vector<4x128xf32>
    %233 = vector.broadcast %4 : vector<4x1xf32> to vector<4x128xf32>
    %234 = arith.addf %232, %233 : vector<4x128xf32>
    %cst_150 = arith.constant 0.000000e+00 : f32
    %235 = vector.broadcast %cst_150 : f32 to vector<4x128xf32>
    %236 = arith.maximumf %234, %235 : vector<4x128xf32>
    %c0_151 = arith.constant 0 : index
    %c0_152 = arith.constant 0 : index
    %c0_153 = arith.constant 0 : index
    %237 = vector.load %arg8[%c0_151, %c0_152, %c0_153] : memref<4x4x128xf32, #tpu.memory_space<vmem>>, vector<1x4x128xf32>
    %238 = vector.shape_cast %237 : vector<1x4x128xf32> to vector<4x128xf32>
    %239 = vector.shape_cast %236 : vector<4x128xf32> to vector<1x4x128xf32>
    tpu.vector_store %arg8[%c0_151, %c0_152, %c0_153], %239 {strides = array<i32>} : memref<4x4x128xf32, #tpu.memory_space<vmem>>, vector<1x4x128xf32>,
    %240 = vector.broadcast %3 : vector<4x1xf32> to vector<4x128xf32>
    %241 = arith.mulf %240, %202 : vector<4x128xf32>
    %242 = vector.broadcast %228 : vector<4x1xf32> to vector<4x128xf32>
    %243 = arith.mulf %241, %242 : vector<4x128xf32>
    %244 = vector.broadcast %4 : vector<4x1xf32> to vector<4x128xf32>
    %245 = arith.addf %243, %244 : vector<4x128xf32>
    %cst_154 = arith.constant 0.000000e+00 : f32
    %246 = vector.broadcast %cst_154 : f32 to vector<4x128xf32>
    %247 = arith.maximumf %245, %246 : vector<4x128xf32>
    %c1_155 = arith.constant 1 : index
    %c0_156 = arith.constant 0 : index
    %c0_157 = arith.constant 0 : index
    %248 = vector.load %arg8[%c1_155, %c0_156, %c0_157] : memref<4x4x128xf32, #tpu.memory_space<vmem>>, vector<1x4x128xf32>
    %249 = vector.shape_cast %248 : vector<1x4x128xf32> to vector<4x128xf32>
    %250 = vector.shape_cast %247 : vector<4x128xf32> to vector<1x4x128xf32>
    tpu.vector_store %arg8[%c1_155, %c0_156, %c0_157], %250 {strides = array<i32>} : memref<4x4x128xf32, #tpu.memory_space<vmem>>, vector<1x4x128xf32>,
    %251 = vector.broadcast %3 : vector<4x1xf32> to vector<4x128xf32>
    %252 = arith.mulf %251, %204 : vector<4x128xf32>
    %253 = vector.broadcast %228 : vector<4x1xf32> to vector<4x128xf32>
    %254 = arith.mulf %252, %253 : vector<4x128xf32>
    %255 = vector.broadcast %4 : vector<4x1xf32> to vector<4x128xf32>
    %256 = arith.addf %254, %255 : vector<4x128xf32>
    %cst_158 = arith.constant 0.000000e+00 : f32
    %257 = vector.broadcast %cst_158 : f32 to vector<4x128xf32>
    %258 = arith.maximumf %256, %257 : vector<4x128xf32>
    %c2_159 = arith.constant 2 : index
    %c0_160 = arith.constant 0 : index
    %c0_161 = arith.constant 0 : index
    %259 = vector.load %arg8[%c2_159, %c0_160, %c0_161] : memref<4x4x128xf32, #tpu.memory_space<vmem>>, vector<1x4x128xf32>
    %260 = vector.shape_cast %259 : vector<1x4x128xf32> to vector<4x128xf32>
    %261 = vector.shape_cast %258 : vector<4x128xf32> to vector<1x4x128xf32>
    tpu.vector_store %arg8[%c2_159, %c0_160, %c0_161], %261 {strides = array<i32>} : memref<4x4x128xf32, #tpu.memory_space<vmem>>, vector<1x4x128xf32>,
    %262 = vector.broadcast %3 : vector<4x1xf32> to vector<4x128xf32>
    %263 = arith.mulf %262, %206 : vector<4x128xf32>
    %264 = vector.broadcast %228 : vector<4x1xf32> to vector<4x128xf32>
    %265 = arith.mulf %263, %264 : vector<4x128xf32>
    %266 = vector.broadcast %4 : vector<4x1xf32> to vector<4x128xf32>
    %267 = arith.addf %265, %266 : vector<4x128xf32>
    %cst_162 = arith.constant 0.000000e+00 : f32
    %268 = vector.broadcast %cst_162 : f32 to vector<4x128xf32>
    %269 = arith.maximumf %267, %268 : vector<4x128xf32>
    %c3_163 = arith.constant 3 : index
    %c0_164 = arith.constant 0 : index
    %c0_165 = arith.constant 0 : index
    %270 = vector.load %arg8[%c3_163, %c0_164, %c0_165] : memref<4x4x128xf32, #tpu.memory_space<vmem>>, vector<1x4x128xf32>
    %271 = vector.shape_cast %270 : vector<1x4x128xf32> to vector<4x128xf32>
    %272 = vector.shape_cast %269 : vector<4x128xf32> to vector<1x4x128xf32>
    tpu.vector_store %arg8[%c3_163, %c0_164, %c0_165], %272 {strides = array<i32>} : memref<4x4x128xf32, #tpu.memory_space<vmem>>, vector<1x4x128xf32>,
    return
  }
  func.func @transform_0(%arg0: i32) -> (i32, i32) {
    %c0_i32 = arith.constant 0 : i32
    %c0_i32_0 = arith.constant 0 : i32
    %c0_i32_1 = arith.constant 0 : i32
    return %c0_i32, %c0_i32_0 : i32, i32
  }
  func.func @transform_1(%arg0: i32) -> (i32, i32, i32) {
    %c0_i32 = arith.constant 0 : i32
    %c0_i32_0 = arith.constant 0 : i32
    %c0_i32_1 = arith.constant 0 : i32
    %c0_i32_2 = arith.constant 0 : i32
    return %c0_i32, %c0_i32_0, %c0_i32_1 : i32, i32, i32
  }
  func.func @transform_2(%arg0: i32) -> (i32, i32, i32) {
    %c0_i32 = arith.constant 0 : i32
    %c0_i32_0 = arith.constant 0 : i32
    %c0_i32_1 = arith.constant 0 : i32
    %c0_i32_2 = arith.constant 0 : i32
    return %c0_i32, %c0_i32_0, %c0_i32_1 : i32, i32, i32
  }
  func.func @transform_3(%arg0: i32) -> (i32, i32, i32) {
    %c0_i32 = arith.constant 0 : i32
    %c0_i32_0 = arith.constant 0 : i32
    %c0_i32_1 = arith.constant 0 : i32
    %c0_i32_2 = arith.constant 0 : i32
    return %c0_i32, %c0_i32_0, %c0_i32_1 : i32, i32, i32
  }
  func.func @transform_4(%arg0: i32) -> (i32, i32) {
    %c0_i32 = arith.constant 0 : i32
    %c0_i32_0 = arith.constant 0 : i32
    %c0_i32_1 = arith.constant 0 : i32
    return %c0_i32, %c0_i32_0 : i32, i32
  }
  func.func @transform_5(%arg0: i32) -> (i32, i32) {
    %c0_i32 = arith.constant 0 : i32
    %c0_i32_0 = arith.constant 0 : i32
    %c0_i32_1 = arith.constant 0 : i32
    return %c0_i32, %c0_i32_0 : i32, i32
  }
  func.func @transform_6(%arg0: i32) -> (i32, i32) {
    %c0_i32 = arith.constant 0 : i32
    %c0_i32_0 = arith.constant 0 : i32
    %c0_i32_1 = arith.constant 0 : i32
    return %c0_i32, %c0_i32_0 : i32, i32
  }
  func.func @transform_7(%arg0: i32) -> (i32, i32, i32) {
    %c0_i32 = arith.constant 0 : i32
    %c0_i32_0 = arith.constant 0 : i32
    %c0_i32_1 = arith.constant 0 : i32
    %c0_i32_2 = arith.constant 0 : i32
    return %c0_i32, %c0_i32_0, %c0_i32_1 : i32, i32, i32
  }
}

</mosaic_0001>

<llo_original>
// kernel: image_block_forward.1
$region0: #{image_block_forward.1}
  #allocation0 [shape = 'u32[]', space=smem, size = 0x4, offset = 0x4, fixed_abs, tag = 'smem constant byte address 0x4 - core index']
  #allocation1 [shape = 'u32[72,128]{1,0:T(1,128)}', space=vmem, size = 0x9000, scoped, tag = 'internal scratch']
  #allocation2 [shape = 'f32[4,1024]{1,0:T(4,128)}', space=vmem, size = 0x4000, scoped, tag = 'scratch operand']
  %s0 = inlined_call_operand.vmem [shape: bf16[4,1024], index: 0, kind: input, shape index: {}]
  %s1 = inlined_call_operand.vmem [shape: bf16[9,4,4], index: 1, kind: input, shape index: {}]
  %s2 = inlined_call_operand.vmem [shape: bf16[9,4,4], index: 2, kind: input, shape index: {}]
  %s3 = inlined_call_operand.vmem [shape: bf16[4,4,4], index: 3, kind: input, shape index: {}]
  %s4 = inlined_call_operand.vmem [shape: bf16[648,128], index: 4, kind: input, shape index: {}]
  %s5 = inlined_call_operand.vmem [shape: f32[1,648], index: 5, kind: input, shape index: {}]
  %s6 = inlined_call_operand.vmem [shape: f32[4,5], index: 6, kind: input, shape index: {}]
  %s7 = inlined_call_operand.vmem [shape: f32[4,4,128], index: 7, kind: output, shape index: {}]
  %s8 = sld [smem:[#allocation0]]
  $region38: #{image_block_forward.1} parent=0
    _
  %s10 = ssub.s32 1, %s8
  %s11 = scalar_select 0, %s10, %s8
  // Predicated region
  $region2: #{image_block_forward.1} parent=0 // pred_check
    _
  $region3: #{image_block_forward.1} parent=0 // pred_check_branch
    %13 = sbr.rel (0) target = $region5
  $region4: #{image_block_forward.1} parent=0 // pred_region
    _
  $region5: #{image_block_forward.1} parent=0 // pred_fallthru
    _
  // Predicated region
  $region6: #{image_block_forward.1} parent=0 // pred_check
    _
  $region7: #{image_block_forward.1} parent=0 // pred_check_branch
    %15 = sbr.rel (0) target = $region9
  $region8: #{image_block_forward.1} parent=0 // pred_region
    _
  $region9: #{image_block_forward.1} parent=0 // pred_fallthru
    _
  // Predicated region
  $region10: #{image_block_forward.1} parent=0 // pred_check
    _
  $region11: #{image_block_forward.1} parent=0 // pred_check_branch
    %17 = sbr.rel (0) target = $region13
  $region12: #{image_block_forward.1} parent=0 // pred_region
    _
  $region13: #{image_block_forward.1} parent=0 // pred_fallthru
    _
  // Predicated region
  $region14: #{image_block_forward.1} parent=0 // pred_check
    _
  $region15: #{image_block_forward.1} parent=0 // pred_check_branch
    %19 = sbr.rel (0) target = $region17
  $region16: #{image_block_forward.1} parent=0 // pred_region
    _
  $region17: #{image_block_forward.1} parent=0 // pred_fallthru
    _
  // Predicated region
  $region18: #{image_block_forward.1} parent=0 // pred_check
    _
  $region19: #{image_block_forward.1} parent=0 // pred_check_branch
    %21 = sbr.rel (0) target = $region21
  $region20: #{image_block_forward.1} parent=0 // pred_region
    _
  $region21: #{image_block_forward.1} parent=0 // pred_fallthru
    _
  // Predicated region
  $region22: #{image_block_forward.1} parent=0 // pred_check
    _
  $region23: #{image_block_forward.1} parent=0 // pred_check_branch
    %23 = sbr.rel (0) target = $region25
  $region24: #{image_block_forward.1} parent=0 // pred_region
    _
  $region25: #{image_block_forward.1} parent=0 // pred_fallthru
    _
  // Predicated region
  $region26: #{image_block_forward.1} parent=0 // pred_check
    _
  $region27: #{image_block_forward.1} parent=0 // pred_check_branch
    %25 = sbr.rel (0) target = $region29
  $region28: #{image_block_forward.1} parent=0 // pred_region
    _
  $region29: #{image_block_forward.1} parent=0 // pred_fallthru
    _
  %v27 = vld [vmem:[%s6] sm:$0xf]
  %v28 = vld [vmem:[%s5] sm:$0x3f]
  %v29 = vld [vmem:[%s0] sm:$0xff]
  %v30 = vld [vmem:[%s0 + $0x8] sm:$0xf]
  %v31 = vld [vmem:[%s1] sm:$0x3]
  %s32 = scalar_lea.vmem %s1, 2
  %v33 = vld [vmem:[%s32] sm:$0x3]
  %35 = vst [vmem:[#allocation1] ss:$4 sm:$0xff] %v29
  %s37 = scalar_lea.vmem [#allocation1], 32
  %38 = vst [vmem:[%s37] ss:$4 sm:$0xff] %v30
  %v39 = vld.sshfl [vmem:[#allocation1] sm:$0xff pattern:$0x73625140]
  %v41 = vld.sshfl [vmem:[#allocation1 + $0x8] sm:$0xff pattern:$0x73625140]
  %v43 = vld.sshfl [vmem:[#allocation1 + $0x10] sm:$0xff pattern:$0x73625140]
  %v45 = vld.sshfl [vmem:[#allocation1 + $0x18] sm:$0xff pattern:$0x73625140]
  %v47 = vld.sshfl [vmem:[#allocation1 + $0x20] sm:$0xff pattern:$0x73625140]
  %v49 = vld.sshfl [vmem:[#allocation1 + $0x28] sm:$0xff pattern:$0x73625140]
  %51 = vrot.lane.b32.xlu0 %v39, 18
  %v52 = vpop.permute.xlu0 %51
  %53 = vrot.lane.b32.xlu0 %v41, 18
  %v54 = vpop.permute.xlu0 %53
  %55 = vrot.lane.b32.xlu0 %v43, 18
  %v56 = vpop.permute.xlu0 %55
  %57 = vrot.lane.b32.xlu0 %v45, 18
  %v58 = vpop.permute.xlu0 %57
  %59 = vrot.lane.b32.xlu0 %v47, 18
  %v60 = vpop.permute.xlu0 %59
  %61 = vrot.lane.b32.xlu0 %v49, 18
  %v62 = vpop.permute.xlu0 %61
  %vm63 = vcmask 146432
  %v64 = vsel %vm63, %v52, %v54
  %v65 = vsel %vm63, %v54, %v56
  %v66 = vsel %vm63, %v56, %v58
  %v67 = vsel %vm63, %v58, %v60
  %v68 = vsel %vm63, %v60, %v62
  %vm69 = vcmask 31744
  %v71 = vsel %vm69, %v33, 0
  %vm73 = vcmask 1041408
  %v75 = vsel %vm73, %v64, 0
  %v78 = vsel %vm73, %v65, 0
  %v81 = vsel %vm73, %v66, 0
  %v84 = vsel %vm73, %v67, 0
  %v87 = vsel %vm73, %v68, 0
  %v90 = vsel %vm73, %v62, 0
  %92 = vmatpush.bf16.msra.mxu0 0
  %93 = vmatpush.bf16.msra.mxu0 0
  %94 = vmatpush.bf16.msra.mxu0 0
  %95 = vmatpush.bf16.msra.mxu0 0
  %96 = vmatpush.bf16.msra.mxu0 0
  %97 = vmatpush.bf16.msra.mxu0 0
  %98 = vmatpush.bf16.msra.mxu0 0
  %99 = vmatpush.bf16.msra.mxu0 %v75
  %100 = vmatmul.bf16.gmra.mxu0 %v71
  %v101 = vpop.f32.mrf.mxu0
  %v102 = vadd.f32 0.0, %v101
  %v103 = vpop.f32.mrf.mxu0
  %104 = vdwg.mxu0
  %105 = vmatpush.bf16.msra.mxu0 0
  %106 = vmatpush.bf16.msra.mxu0 0
  %107 = vmatpush.bf16.msra.mxu0 0
  %108 = vmatpush.bf16.msra.mxu0 0
  %109 = vmatpush.bf16.msra.mxu0 0
  %110 = vmatpush.bf16.msra.mxu0 0
  %111 = vmatpush.bf16.msra.mxu0 0
  %112 = vmatpush.bf16.msra.mxu0 %v78
  %113 = vmatmul.bf16.gmra.mxu0 %v71
  %v114 = vpop.f32.mrf.mxu0
  %v115 = vadd.f32 0.0, %v114
  %v116 = vpop.f32.mrf.mxu0
  %117 = vdwg.mxu0
  %118 = vmatpush.bf16.msra.mxu0 0
  %119 = vmatpush.bf16.msra.mxu0 0
  %120 = vmatpush.bf16.msra.mxu0 0
  %121 = vmatpush.bf16.msra.mxu0 0
  %122 = vmatpush.bf16.msra.mxu0 0
  %123 = vmatpush.bf16.msra.mxu0 0
  %124 = vmatpush.bf16.msra.mxu0 0
  %125 = vmatpush.bf16.msra.mxu0 %v81
  %126 = vmatmul.bf16.gmra.mxu0 %v71
  %v127 = vpop.f32.mrf.mxu0
  %v128 = vadd.f32 0.0, %v127
  %v129 = vpop.f32.mrf.mxu0
  %130 = vdwg.mxu0
  %131 = vmatpush.bf16.msra.mxu0 0
  %132 = vmatpush.bf16.msra.mxu0 0
  %133 = vmatpush.bf16.msra.mxu0 0
  %134 = vmatpush.bf16.msra.mxu0 0
  %135 = vmatpush.bf16.msra.mxu0 0
  %136 = vmatpush.bf16.msra.mxu0 0
  %137 = vmatpush.bf16.msra.mxu0 0
  %138 = vmatpush.bf16.msra.mxu0 %v84
  %139 = vmatmul.bf16.gmra.mxu0 %v71
  %v140 = vpop.f32.mrf.mxu0
  %v141 = vadd.f32 0.0, %v140
  %v142 = vpop.f32.mrf.mxu0
  %143 = vdwg.mxu0
  %144 = vmatpush.bf16.msra.mxu0 0
  %145 = vmatpush.bf16.msra.mxu0 0
  %146 = vmatpush.bf16.msra.mxu0 0
  %147 = vmatpush.bf16.msra.mxu0 0
  %148 = vmatpush.bf16.msra.mxu0 0
  %149 = vmatpush.bf16.msra.mxu0 0
  %150 = vmatpush.bf16.msra.mxu0 0
  %151 = vmatpush.bf16.msra.mxu0 %v87
  %152 = vmatmul.bf16.gmra.mxu0 %v71
  %v153 = vpop.f32.mrf.mxu0
  %v154 = vadd.f32 0.0, %v153
  %v155 = vpop.f32.mrf.mxu0
  %156 = vdwg.mxu0
  %157 = vmatpush.bf16.msra.mxu0 0
  %158 = vmatpush.bf16.msra.mxu0 0
  %159 = vmatpush.bf16.msra.mxu0 0
  %160 = vmatpush.bf16.msra.mxu0 0
  %161 = vmatpush.bf16.msra.mxu0 0
  %162 = vmatpush.bf16.msra.mxu0 0
  %163 = vmatpush.bf16.msra.mxu0 0
  %164 = vmatpush.bf16.msra.mxu0 %v90
  %165 = vmatmul.bf16.gmra.mxu0 %v71
  %v166 = vpop.f32.mrf.mxu0
  %v167 = vadd.f32 0.0, %v166
  %v168 = vpop.f32.mrf.mxu0
  %169 = vdwg.mxu0
  %170 = vst [vmem:[#allocation1] ss:$4 sm:$0xff] %v29
  %s171 = scalar_lea.vmem [#allocation1], 32
  %172 = vst [vmem:[%s171] ss:$4 sm:$0xff] %v30
  %v173 = vld.sshfl [vmem:[#allocation1] sm:$0xff pattern:$0x73625140]
  %v175 = vld.sshfl [vmem:[#allocation1 + $0x8] sm:$0xff pattern:$0x73625140]
  %v177 = vld.sshfl [vmem:[#allocation1 + $0x10] sm:$0xff pattern:$0x73625140]
  %v179 = vld.sshfl [vmem:[#allocation1 + $0x18] sm:$0xff pattern:$0x73625140]
  %v181 = vld.sshfl [vmem:[#allocation1 + $0x20] sm:$0xff pattern:$0x73625140]
  %v183 = vld.sshfl [vmem:[#allocation1 + $0x28] sm:$0xff pattern:$0x73625140]
  %185 = vrot.lane.b32.xlu0 %v173, 19
  %v186 = vpop.permute.xlu0 %185
  %187 = vrot.lane.b32.xlu0 %v175, 19
  %v188 = vpop.permute.xlu0 %187
  %189 = vrot.lane.b32.xlu0 %v177, 19
  %v190 = vpop.permute.xlu0 %189
  %191 = vrot.lane.b32.xlu0 %v179, 19
  %v192 = vpop.permute.xlu0 %191
  %193 = vrot.lane.b32.xlu0 %v181, 19
  %v194 = vpop.permute.xlu0 %193
  %195 = vrot.lane.b32.xlu0 %v183, 19
  %v196 = vpop.permute.xlu0 %195
  %vm197 = vcmask 154624
  %v198 = vsel %vm197, %v186, %v188
  %v199 = vsel %vm197, %v188, %v190
  %v200 = vsel %vm197, %v190, %v192
  %v201 = vsel %vm197, %v192, %v194
  %v202 = vsel %vm197, %v194, %v196
  %v204 = vsel %vm69, %v31, 0
  %v207 = vsel %vm73, %v198, 0
  %v210 = vsel %vm73, %v199, 0
  %v213 = vsel %vm73, %v200, 0
  %v216 = vsel %vm73, %v201, 0
  %v219 = vsel %vm73, %v202, 0
  %v222 = vsel %vm73, %v196, 0
  %224 = vmatpush.bf16.msra.mxu0 0
  %225 = vmatpush.bf16.msra.mxu0 0
  %226 = vmatpush.bf16.msra.mxu0 0
  %227 = vmatpush.bf16.msra.mxu0 0
  %228 = vmatpush.bf16.msra.mxu0 0
  %229 = vmatpush.bf16.msra.mxu0 0
  %230 = vmatpush.bf16.msra.mxu0 0
  %231 = vmatpush.bf16.msra.mxu0 %v207
  %232 = vmatmul.bf16.gmra.mxu0 %v204
  %v233 = vpop.f32.mrf.mxu0
  %v234 = vadd.f32 %v102, %v233
  %v235 = vpop.f32.mrf.mxu0
  %236 = vdwg.mxu0
  %237 = vmatpush.bf16.msra.mxu0 0
  %238 = vmatpush.bf16.msra.mxu0 0
  %239 = vmatpush.bf16.msra.mxu0 0
  %240 = vmatpush.bf16.msra.mxu0 0
  %241 = vmatpush.bf16.msra.mxu0 0
  %242 = vmatpush.bf16.msra.mxu0 0
  %243 = vmatpush.bf16.msra.mxu0 0
  %244 = vmatpush.bf16.msra.mxu0 %v210
  %245 = vmatmul.bf16.gmra.mxu0 %v204
  %v246 = vpop.f32.mrf.mxu0
  %v247 = vadd.f32 %v115, %v246
  %v248 = vpop.f32.mrf.mxu0
  %249 = vdwg.mxu0
  %250 = vmatpush.bf16.msra.mxu0 0
  %251 = vmatpush.bf16.msra.mxu0 0
  %252 = vmatpush.bf16.msra.mxu0 0
  %253 = vmatpush.bf16.msra.mxu0 0
  %254 = vmatpush.bf16.msra.mxu0 0
  %255 = vmatpush.bf16.msra.mxu0 0
  %256 = vmatpush.bf16.msra.mxu0 0
  %257 = vmatpush.bf16.msra.mxu0 %v213
  %258 = vmatmul.bf16.gmra.mxu0 %v204
  %v259 = vpop.f32.mrf.mxu0
  %v260 = vadd.f32 %v128, %v259
  %v261 = vpop.f32.mrf.mxu0
  %262 = vdwg.mxu0
  %263 = vmatpush.bf16.msra.mxu0 0
  %264 = vmatpush.bf16.msra.mxu0 0
  %265 = vmatpush.bf16.msra.mxu0 0
  %266 = vmatpush.bf16.msra.mxu0 0
  %267 = vmatpush.bf16.msra.mxu0 0
  %268 = vmatpush.bf16.msra.mxu0 0
  %269 = vmatpush.bf16.msra.mxu0 0
  %270 = vmatpush.bf16.msra.mxu0 %v216
  %271 = vmatmul.bf16.gmra.mxu0 %v204
  %v272 = vpop.f32.mrf.mxu0
  %v273 = vadd.f32 %v141, %v272
  %v274 = vpop.f32.mrf.mxu0
  %275 = vdwg.mxu0
  %276 = vmatpush.bf16.msra.mxu0 0
  %277 = vmatpush.bf16.msra.mxu0 0
  %278 = vmatpush.bf16.msra.mxu0 0
  %279 = vmatpush.bf16.msra.mxu0 0
  %280 = vmatpush.bf16.msra.mxu0 0
  %281 = vmatpush.bf16.msra.mxu0 0
  %282 = vmatpush.bf16.msra.mxu0 0
  %283 = vmatpush.bf16.msra.mxu0 %v219
  %284 = vmatmul.bf16.gmra.mxu0 %v204
  %v285 = vpop.f32.mrf.mxu0
  %v286 = vadd.f32 %v154, %v285
  %v287 = vpop.f32.mrf.mxu0
  %288 = vdwg.mxu0
  %289 = vmatpush.bf16.msra.mxu0 0
  %290 = vmatpush.bf16.msra.mxu0 0
  %291 = vmatpush.bf16.msra.mxu0 0
  %292 = vmatpush.bf16.msra.mxu0 0
  %293 = vmatpush.bf16.msra.mxu0 0
  %294 = vmatpush.bf16.msra.mxu0 0
  %295 = vmatpush.bf16.msra.mxu0 0
  %296 = vmatpush.bf16.msra.mxu0 %v222
  %297 = vmatmul.bf16.gmra.mxu0 %v204
  %v298 = vpop.f32.mrf.mxu0
  %v299 = vadd.f32 %v167, %v298
  %v300 = vpop.f32.mrf.mxu0
  %301 = vdwg.mxu0
  %v302 = vld [vmem:[%s0] sm:$0xff]
  %v303 = vld [vmem:[%s0 + $0x8] sm:$0xf]
  %s304 = scalar_lea.vmem %s1, 4
  %v305 = vld [vmem:[%s304] sm:$0x3]
  %307 = vst [vmem:[#allocation1] ss:$4 sm:$0xff] %v302
  %s309 = scalar_lea.vmem [#allocation1], 32
  %310 = vst [vmem:[%s309] ss:$4 sm:$0xff] %v303
  %v311 = vld.sshfl [vmem:[#allocation1] sm:$0xff pattern:$0x73625140]
  %v313 = vld.sshfl [vmem:[#allocation1 + $0x8] sm:$0xff pattern:$0x73625140]
  %v315 = vld.sshfl [vmem:[#allocation1 + $0x10] sm:$0xff pattern:$0x73625140]
  %v317 = vld.sshfl [vmem:[#allocation1 + $0x18] sm:$0xff pattern:$0x73625140]
  %v319 = vld.sshfl [vmem:[#allocation1 + $0x20] sm:$0xff pattern:$0x73625140]
  %v321 = vld.sshfl [vmem:[#allocation1 + $0x28] sm:$0xff pattern:$0x73625140]
  %323 = vrot.lane.b32.xlu0 %v311, 17
  %v324 = vpop.permute.xlu0 %323
  %325 = vrot.lane.b32.xlu0 %v313, 17
  %v326 = vpop.permute.xlu0 %325
  %327 = vrot.lane.b32.xlu0 %v315, 17
  %v328 = vpop.permute.xlu0 %327
  %329 = vrot.lane.b32.xlu0 %v317, 17
  %v330 = vpop.permute.xlu0 %329
  %331 = vrot.lane.b32.xlu0 %v319, 17
  %v332 = vpop.permute.xlu0 %331
  %333 = vrot.lane.b32.xlu0 %v321, 17
  %v334 = vpop.permute.xlu0 %333
  %vm335 = vcmask 138240
  %v336 = vsel %vm335, %v324, %v326
  %v337 = vsel %vm335, %v326, %v328
  %v338 = vsel %vm335, %v328, %v330
  %v339 = vsel %vm335, %v330, %v332
  %v340 = vsel %vm335, %v332, %v334
  %v342 = vsel %vm69, %v305, 0
  %v345 = vsel %vm73, %v336, 0
  %v348 = vsel %vm73, %v337, 0
  %v351 = vsel %vm73, %v338, 0
  %v354 = vsel %vm73, %v339, 0
  %v357 = vsel %vm73, %v340, 0
  %v360 = vsel %vm73, %v334, 0
  %362 = vmatpush.bf16.msra.mxu0 0
  %363 = vmatpush.bf16.msra.mxu0 0
  %364 = vmatpush.bf16.msra.mxu0 0
  %365 = vmatpush.bf16.msra.mxu0 0
  %366 = vmatpush.bf16.msra.mxu0 0
  %367 = vmatpush.bf16.msra.mxu0 0
  %368 = vmatpush.bf16.msra.mxu0 0
  %369 = vmatpush.bf16.msra.mxu0 %v345
  %370 = vmatmul.bf16.gmra.mxu0 %v342
  %v371 = vpop.f32.mrf.mxu0
  %v372 = vadd.f32 0.0, %v371
  %v373 = vpop.f32.mrf.mxu0
  %374 = vdwg.mxu0
  %375 = vmatpush.bf16.msra.mxu0 0
  %376 = vmatpush.bf16.msra.mxu0 0
  %377 = vmatpush.bf16.msra.mxu0 0
  %378 = vmatpush.bf16.msra.mxu0 0
  %379 = vmatpush.bf16.msra.mxu0 0
  %380 = vmatpush.bf16.msra.mxu0 0
  %381 = vmatpush.bf16.msra.mxu0 0
  %382 = vmatpush.bf16.msra.mxu0 %v348
  %383 = vmatmul.bf16.gmra.mxu0 %v342
  %v384 = vpop.f32.mrf.mxu0
  %v385 = vadd.f32 0.0, %v384
  %v386 = vpop.f32.mrf.mxu0
  %387 = vdwg.mxu0
  %388 = vmatpush.bf16.msra.mxu0 0
  %389 = vmatpush.bf16.msra.mxu0 0
  %390 = vmatpush.bf16.msra.mxu0 0
  %391 = vmatpush.bf16.msra.mxu0 0
  %392 = vmatpush.bf16.msra.mxu0 0
  %393 = vmatpush.bf16.msra.mxu0 0
  %394 = vmatpush.bf16.msra.mxu0 0
  %395 = vmatpush.bf16.msra.mxu0 %v351
  %396 = vmatmul.bf16.gmra.mxu0 %v342
  %v397 = vpop.f32.mrf.mxu0
  %v398 = vadd.f32 0.0, %v397
  %v399 = vpop.f32.mrf.mxu0
  %400 = vdwg.mxu0
  %401 = vmatpush.bf16.msra.mxu0 0
  %402 = vmatpush.bf16.msra.mxu0 0
  %403 = vmatpush.bf16.msra.mxu0 0
  %404 = vmatpush.bf16.msra.mxu0 0
  %405 = vmatpush.bf16.msra.mxu0 0
  %406 = vmatpush.bf16.msra.mxu0 0
  %407 = vmatpush.bf16.msra.mxu0 0
  %408 = vmatpush.bf16.msra.mxu0 %v354
  %409 = vmatmul.bf16.gmra.mxu0 %v342
  %v410 = vpop.f32.mrf.mxu0
  %v411 = vadd.f32 0.0, %v410
  %v412 = vpop.f32.mrf.mxu0
  %413 = vdwg.mxu0
  %414 = vmatpush.bf16.msra.mxu0 0
  %415 = vmatpush.bf16.msra.mxu0 0
  %416 = vmatpush.bf16.msra.mxu0 0
  %417 = vmatpush.bf16.msra.mxu0 0
  %418 = vmatpush.bf16.msra.mxu0 0
  %419 = vmatpush.bf16.msra.mxu0 0
  %420 = vmatpush.bf16.msra.mxu0 0
  %421 = vmatpush.bf16.msra.mxu0 %v357
  %422 = vmatmul.bf16.gmra.mxu0 %v342
  %v423 = vpop.f32.mrf.mxu0
  %v424 = vadd.f32 0.0, %v423
  %v425 = vpop.f32.mrf.mxu0
  %426 = vdwg.mxu0
  %427 = vmatpush.bf16.msra.mxu0 0
  %428 = vmatpush.bf16.msra.mxu0 0
  %429 = vmatpush.bf16.msra.mxu0 0
  %430 = vmatpush.bf16.msra.mxu0 0
  %431 = vmatpush.bf16.msra.mxu0 0
  %432 = vmatpush.bf16.msra.mxu0 0
  %433 = vmatpush.bf16.msra.mxu0 0
  %434 = vmatpush.bf16.msra.mxu0 %v360
  %435 = vmatmul.bf16.gmra.mxu0 %v342
  %v436 = vpop.f32.mrf.mxu0
  %v437 = vadd.f32 0.0, %v436
  %v438 = vpop.f32.mrf.mxu0
  %439 = vdwg.mxu0
  %v440 = vadd.f32 %v234, %v372
  %v441 = vadd.f32 %v247, %v385
  %v442 = vadd.f32 %v260, %v398
  %v443 = vadd.f32 %v273, %v411
  %v444 = vadd.f32 %v286, %v424
  %v445 = vadd.f32 %v299, %v437
  %v446 = vld [vmem:[%s0] sm:$0xff]
  %v447 = vld [vmem:[%s0 + $0x8] sm:$0x3f]
  %s448 = scalar_lea.vmem %s1, 6
  %v449 = vld [vmem:[%s448] sm:$0x3]
  %451 = vst [vmem:[#allocation1] ss:$4 sm:$0xff] %v446
  %s453 = scalar_lea.vmem [#allocation1], 32
  %454 = vst [vmem:[%s453] ss:$4 sm:$0xff] %v447
  %v455 = vld.sshfl [vmem:[#allocation1] sm:$0xff pattern:$0x73625140]
  %v457 = vld.sshfl [vmem:[#allocation1 + $0x8] sm:$0xff pattern:$0x73625140]
  %v459 = vld.sshfl [vmem:[#allocation1 + $0x10] sm:$0xff pattern:$0x73625140]
  %v461 = vld.sshfl [vmem:[#allocation1 + $0x18] sm:$0xff pattern:$0x73625140]
  %v463 = vld.sshfl [vmem:[#allocation1 + $0x20] sm:$0xff pattern:$0x73625140]
  %v465 = vld.sshfl [vmem:[#allocation1 + $0x28] sm:$0xff pattern:$0x73625140]
  %v467 = vld.sshfl [vmem:[#allocation1 + $0x30] sm:$0xff pattern:$0x73625140]
  %469 = vrot.lane.b32.xlu0 %v455, 1
  %v470 = vpop.permute.xlu0 %469
  %471 = vrot.lane.b32.xlu0 %v457, 1
  %v472 = vpop.permute.xlu0 %471
  %473 = vrot.lane.b32.xlu0 %v459, 1
  %v474 = vpop.permute.xlu0 %473
  %475 = vrot.lane.b32.xlu0 %v461, 1
  %v476 = vpop.permute.xlu0 %475
  %477 = vrot.lane.b32.xlu0 %v463, 1
  %v478 = vpop.permute.xlu0 %477
  %479 = vrot.lane.b32.xlu0 %v465, 1
  %v480 = vpop.permute.xlu0 %479
  %481 = vrot.lane.b32.xlu0 %v467, 1
  %v482 = vpop.permute.xlu0 %481
  %vm483 = vcmask 7168
  %v484 = vsel %vm483, %v470, %v472
  %v485 = vsel %vm483, %v472, %v474
  %v486 = vsel %vm483, %v474, %v476
  %v487 = vsel %vm483, %v476, %v478
  %v488 = vsel %vm483, %v478, %v480
  %v489 = vsel %vm483, %v480, %v482
  %v491 = vsel %vm69, %v449, 0
  %v494 = vsel %vm73, %v484, 0
  %v497 = vsel %vm73, %v485, 0
  %v500 = vsel %vm73, %v486, 0
  %v503 = vsel %vm73, %v487, 0
  %v506 = vsel %vm73, %v488, 0
  %v509 = vsel %vm73, %v489, 0
  %511 = vmatpush.bf16.msra.mxu0 0
  %512 = vmatpush.bf16.msra.mxu0 0
  %513 = vmatpush.bf16.msra.mxu0 0
  %514 = vmatpush.bf16.msra.mxu0 0
  %515 = vmatpush.bf16.msra.mxu0 0
  %516 = vmatpush.bf16.msra.mxu0 0
  %517 = vmatpush.bf16.msra.mxu0 0
  %518 = vmatpush.bf16.msra.mxu0 %v494
  %519 = vmatmul.bf16.gmra.mxu0 %v491
  %v520 = vpop.f32.mrf.mxu0
  %v521 = vadd.f32 0.0, %v520
  %v522 = vpop.f32.mrf.mxu0
  %523 = vdwg.mxu0
  %524 = vmatpush.bf16.msra.mxu0 0
  %525 = vmatpush.bf16.msra.mxu0 0
  %526 = vmatpush.bf16.msra.mxu0 0
  %527 = vmatpush.bf16.msra.mxu0 0
  %528 = vmatpush.bf16.msra.mxu0 0
  %529 = vmatpush.bf16.msra.mxu0 0
  %530 = vmatpush.bf16.msra.mxu0 0
  %531 = vmatpush.bf16.msra.mxu0 %v497
  %532 = vmatmul.bf16.gmra.mxu0 %v491
  %v533 = vpop.f32.mrf.mxu0
  %v534 = vadd.f32 0.0, %v533
  %v535 = vpop.f32.mrf.mxu0
  %536 = vdwg.mxu0
  %537 = vmatpush.bf16.msra.mxu0 0
  %538 = vmatpush.bf16.msra.mxu0 0
  %539 = vmatpush.bf16.msra.mxu0 0
  %540 = vmatpush.bf16.msra.mxu0 0
  %541 = vmatpush.bf16.msra.mxu0 0
  %542 = vmatpush.bf16.msra.mxu0 0
  %543 = vmatpush.bf16.msra.mxu0 0
  %544 = vmatpush.bf16.msra.mxu0 %v500
  %545 = vmatmul.bf16.gmra.mxu0 %v491
  %v546 = vpop.f32.mrf.mxu0
  %v547 = vadd.f32 0.0, %v546
  %v548 = vpop.f32.mrf.mxu0
  %549 = vdwg.mxu0
  %550 = vmatpush.bf16.msra.mxu0 0
  %551 = vmatpush.bf16.msra.mxu0 0
  %552 = vmatpush.bf16.msra.mxu0 0
  %553 = vmatpush.bf16.msra.mxu0 0
  %554 = vmatpush.bf16.msra.mxu0 0
  %555 = vmatpush.bf16.msra.mxu0 0
  %556 = vmatpush.bf16.msra.mxu0 0
  %557 = vmatpush.bf16.msra.mxu0 %v503
  %558 = vmatmul.bf16.gmra.mxu0 %v491
  %v559 = vpop.f32.mrf.mxu0
  %v560 = vadd.f32 0.0, %v559
  %v561 = vpop.f32.mrf.mxu0
  %562 = vdwg.mxu0
  %563 = vmatpush.bf16.msra.mxu0 0
  %564 = vmatpush.bf16.msra.mxu0 0
  %565 = vmatpush.bf16.msra.mxu0 0
  %566 = vmatpush.bf16.msra.mxu0 0
  %567 = vmatpush.bf16.msra.mxu0 0
  %568 = vmatpush.bf16.msra.mxu0 0
  %569 = vmatpush.bf16.msra.mxu0 0
  %570 = vmatpush.bf16.msra.mxu0 %v506
  %571 = vmatmul.bf16.gmra.mxu0 %v491
  %v572 = vpop.f32.mrf.mxu0
  %v573 = vadd.f32 0.0, %v572
  %v574 = vpop.f32.mrf.mxu0
  %575 = vdwg.mxu0
  %576 = vmatpush.bf16.msra.mxu0 0
  %577 = vmatpush.bf16.msra.mxu0 0
  %578 = vmatpush.bf16.msra.mxu0 0
  %579 = vmatpush.bf16.msra.mxu0 0
  %580 = vmatpush.bf16.msra.mxu0 0
  %581 = vmatpush.bf16.msra.mxu0 0
  %582 = vmatpush.bf16.msra.mxu0 0
  %583 = vmatpush.bf16.msra.mxu0 %v509
  %584 = vmatmul.bf16.gmra.mxu0 %v491
  %v585 = vpop.f32.mrf.mxu0
  %v586 = vadd.f32 0.0, %v585
  %v587 = vpop.f32.mrf.mxu0
  %588 = vdwg.mxu0
  %v589 = vadd.f32 %v440, %v521
  %v590 = vadd.f32 %v441, %v534
  %v591 = vadd.f32 %v442, %v547
  %v592 = vadd.f32 %v443, %v560
  %v593 = vadd.f32 %v444, %v573
  %v594 = vadd.f32 %v445, %v586
  %v595 = vld [vmem:[%s0 + $0x2] sm:$0xff]
  %v596 = vld [vmem:[%s0 + $0xa] sm:$0xf]
  %s597 = scalar_lea.vmem %s1, 8
  %v598 = vld [vmem:[%s597] sm:$0x3]
  %600 = vst [vmem:[#allocation1] ss:$4 sm:$0xff] %v595
  %s602 = scalar_lea.vmem [#allocation1], 32
  %603 = vst [vmem:[%s602] ss:$4 sm:$0xff] %v596
  %v604 = vld.sshfl [vmem:[#allocation1] sm:$0xff pattern:$0x73625140]
  %v605 = vld.sshfl [vmem:[#allocation1 + $0x8] sm:$0xff pattern:$0x73625140]
  %v606 = vld.sshfl [vmem:[#allocation1 + $0x10] sm:$0xff pattern:$0x73625140]
  %v607 = vld.sshfl [vmem:[#allocation1 + $0x18] sm:$0xff pattern:$0x73625140]
  %v608 = vld.sshfl [vmem:[#allocation1 + $0x20] sm:$0xff pattern:$0x73625140]
  %v609 = vld.sshfl [vmem:[#allocation1 + $0x28] sm:$0xff pattern:$0x73625140]
  %v611 = vsel %vm69, %v598, 0
  %v613 = vsel %vm73, %v604, 0
  %v615 = vsel %vm73, %v605, 0
  %v617 = vsel %vm73, %v606, 0
  %v619 = vsel %vm73, %v607, 0
  %v621 = vsel %vm73, %v608, 0
  %v623 = vsel %vm73, %v609, 0
  %625 = vmatpush.bf16.msra.mxu0 0
  %626 = vmatpush.bf16.msra.mxu0 0
  %627 = vmatpush.bf16.msra.mxu0 0
  %628 = vmatpush.bf16.msra.mxu0 0
  %629 = vmatpush.bf16.msra.mxu0 0
  %630 = vmatpush.bf16.msra.mxu0 0
  %631 = vmatpush.bf16.msra.mxu0 0
  %632 = vmatpush.bf16.msra.mxu0 %v613
  %633 = vmatmul.bf16.gmra.mxu0 %v611
  %v634 = vpop.f32.mrf.mxu0
  %v635 = vadd.f32 0.0, %v634
  %v636 = vpop.f32.mrf.mxu0
  %637 = vdwg.mxu0
  %638 = vmatpush.bf16.msra.mxu0 0
  %639 = vmatpush.bf16.msra.mxu0 0
  %640 = vmatpush.bf16.msra.mxu0 0
  %641 = vmatpush.bf16.msra.mxu0 0
  %642 = vmatpush.bf16.msra.mxu0 0
  %643 = vmatpush.bf16.msra.mxu0 0
  %644 = vmatpush.bf16.msra.mxu0 0
  %645 = vmatpush.bf16.msra.mxu0 %v615
  %646 = vmatmul.bf16.gmra.mxu0 %v611
  %v647 = vpop.f32.mrf.mxu0
  %v648 = vadd.f32 0.0, %v647
  %v649 = vpop.f32.mrf.mxu0
  %650 = vdwg.mxu0
  %651 = vmatpush.bf16.msra.mxu0 0
  %652 = vmatpush.bf16.msra.mxu0 0
  %653 = vmatpush.bf16.msra.mxu0 0
  %654 = vmatpush.bf16.msra.mxu0 0
  %655 = vmatpush.bf16.msra.mxu0 0
  %656 = vmatpush.bf16.msra.mxu0 0
  %657 = vmatpush.bf16.msra.mxu0 0
  %658 = vmatpush.bf16.msra.mxu0 %v617
  %659 = vmatmul.bf16.gmra.mxu0 %v611
  %v660 = vpop.f32.mrf.mxu0
  %v661 = vadd.f32 0.0, %v660
  %v662 = vpop.f32.mrf.mxu0
  %663 = vdwg.mxu0
  %664 = vmatpush.bf16.msra.mxu0 0
  %665 = vmatpush.bf16.msra.mxu0 0
  %666 = vmatpush.bf16.msra.mxu0 0
  %667 = vmatpush.bf16.msra.mxu0 0
  %668 = vmatpush.bf16.msra.mxu0 0
  %669 = vmatpush.bf16.msra.mxu0 0
  %670 = vmatpush.bf16.msra.mxu0 0
  %671 = vmatpush.bf16.msra.mxu0 %v619
  %672 = vmatmul.bf16.gmra.mxu0 %v611
  %v673 = vpop.f32.mrf.mxu0
  %v674 = vadd.f32 0.0, %v673
  %v675 = vpop.f32.mrf.mxu0
  %676 = vdwg.mxu0
  %677 = vmatpush.bf16.msra.mxu0 0
  %678 = vmatpush.bf16.msra.mxu0 0
  %679 = vmatpush.bf16.msra.mxu0 0
  %680 = vmatpush.bf16.msra.mxu0 0
  %681 = vmatpush.bf16.msra.mxu0 0
  %682 = vmatpush.bf16.msra.mxu0 0
  %683 = vmatpush.bf16.msra.mxu0 0
  %684 = vmatpush.bf16.msra.mxu0 %v621
  %685 = vmatmul.bf16.gmra.mxu0 %v611
  %v686 = vpop.f32.mrf.mxu0
  %v687 = vadd.f32 0.0, %v686
  %v688 = vpop.f32.mrf.mxu0
  %689 = vdwg.mxu0
  %690 = vmatpush.bf16.msra.mxu0 0
  %691 = vmatpush.bf16.msra.mxu0 0
  %692 = vmatpush.bf16.msra.mxu0 0
  %693 = vmatpush.bf16.msra.mxu0 0
  %694 = vmatpush.bf16.msra.mxu0 0
  %695 = vmatpush.bf16.msra.mxu0 0
  %696 = vmatpush.bf16.msra.mxu0 0
  %697 = vmatpush.bf16.msra.mxu0 %v623
  %698 = vmatmul.bf16.gmra.mxu0 %v611
  %v699 = vpop.f32.mrf.mxu0
  %v700 = vadd.f32 0.0, %v699
  %v701 = vpop.f32.mrf.mxu0
  %702 = vdwg.mxu0
  %v703 = vadd.f32 %v589, %v635
  %v704 = vadd.f32 %v590, %v648
  %v705 = vadd.f32 %v591, %v661
  %v706 = vadd.f32 %v592, %v674
  %v707 = vadd.f32 %v593, %v687
  %v708 = vadd.f32 %v594, %v700
  %v709 = vld [vmem:[%s0 + $0x2] sm:$0xff]
  %v710 = vld [vmem:[%s0 + $0xa] sm:$0xf]
  %s711 = scalar_lea.vmem %s1, 10
  %v712 = vld [vmem:[%s711] sm:$0x3]
  %714 = vst [vmem:[#allocation1] ss:$4 sm:$0xff] %v709
  %s716 = scalar_lea.vmem [#allocation1], 32
  %717 = vst [vmem:[%s716] ss:$4 sm:$0xff] %v710
  %v718 = vld.sshfl [vmem:[#allocation1] sm:$0xff pattern:$0x73625140]
  %v720 = vld.sshfl [vmem:[#allocation1 + $0x8] sm:$0xff pattern:$0x73625140]
  %v722 = vld.sshfl [vmem:[#allocation1 + $0x10] sm:$0xff pattern:$0x73625140]
  %v724 = vld.sshfl [vmem:[#allocation1 + $0x18] sm:$0xff pattern:$0x73625140]
  %v726 = vld.sshfl [vmem:[#allocation1 + $0x20] sm:$0xff pattern:$0x73625140]
  %v728 = vld.sshfl [vmem:[#allocation1 + $0x28] sm:$0xff pattern:$0x73625140]
  %730 = vrot.lane.b32.xlu0 %v718, 127
  %v731 = vpop.permute.xlu0 %730
  %732 = vrot.lane.b32.xlu0 %v720, 127
  %v733 = vpop.permute.xlu0 %732
  %734 = vrot.lane.b32.xlu0 %v722, 127
  %v735 = vpop.permute.xlu0 %734
  %736 = vrot.lane.b32.xlu0 %v724, 127
  %v737 = vpop.permute.xlu0 %736
  %738 = vrot.lane.b32.xlu0 %v726, 127
  %v739 = vpop.permute.xlu0 %738
  %740 = vrot.lane.b32.xlu0 %v728, 127
  %v741 = vpop.permute.xlu0 %740
  %vm742 = vcmask 1039360
  %v743 = vsel %vm742, %v731, %v733
  %v744 = vsel %vm742, %v733, %v735
  %v745 = vsel %vm742, %v735, %v737
  %v746 = vsel %vm742, %v737, %v739
  %v747 = vsel %vm742, %v739, %v741
  %v749 = vsel %vm69, %v712, 0
  %v752 = vsel %vm73, %v743, 0
  %v755 = vsel %vm73, %v744, 0
  %v758 = vsel %vm73, %v745, 0
  %v761 = vsel %vm73, %v746, 0
  %v764 = vsel %vm73, %v747, 0
  %v767 = vsel %vm73, %v741, 0
  %769 = vmatpush.bf16.msra.mxu0 0
  %770 = vmatpush.bf16.msra.mxu0 0
  %771 = vmatpush.bf16.msra.mxu0 0
  %772 = vmatpush.bf16.msra.mxu0 0
  %773 = vmatpush.bf16.msra.mxu0 0
  %774 = vmatpush.bf16.msra.mxu0 0
  %775 = vmatpush.bf16.msra.mxu0 0
  %776 = vmatpush.bf16.msra.mxu0 %v752
  %777 = vmatmul.bf16.gmra.mxu0 %v749
  %v778 = vpop.f32.mrf.mxu0
  %v779 = vadd.f32 0.0, %v778
  %v780 = vpop.f32.mrf.mxu0
  %781 = vdwg.mxu0
  %782 = vmatpush.bf16.msra.mxu0 0
  %783 = vmatpush.bf16.msra.mxu0 0
  %784 = vmatpush.bf16.msra.mxu0 0
  %785 = vmatpush.bf16.msra.mxu0 0
  %786 = vmatpush.bf16.msra.mxu0 0
  %787 = vmatpush.bf16.msra.mxu0 0
  %788 = vmatpush.bf16.msra.mxu0 0
  %789 = vmatpush.bf16.msra.mxu0 %v755
  %790 = vmatmul.bf16.gmra.mxu0 %v749
  %v791 = vpop.f32.mrf.mxu0
  %v792 = vadd.f32 0.0, %v791
  %v793 = vpop.f32.mrf.mxu0
  %794 = vdwg.mxu0
  %795 = vmatpush.bf16.msra.mxu0 0
  %796 = vmatpush.bf16.msra.mxu0 0
  %797 = vmatpush.bf16.msra.mxu0 0
  %798 = vmatpush.bf16.msra.mxu0 0
  %799 = vmatpush.bf16.msra.mxu0 0
  %800 = vmatpush.bf16.msra.mxu0 0
  %801 = vmatpush.bf16.msra.mxu0 0
  %802 = vmatpush.bf16.msra.mxu0 %v758
  %803 = vmatmul.bf16.gmra.mxu0 %v749
  %v804 = vpop.f32.mrf.mxu0
  %v805 = vadd.f32 0.0, %v804
  %v806 = vpop.f32.mrf.mxu0
  %807 = vdwg.mxu0
  %808 = vmatpush.bf16.msra.mxu0 0
  %809 = vmatpush.bf16.msra.mxu0 0
  %810 = vmatpush.bf16.msra.mxu0 0
  %811 = vmatpush.bf16.msra.mxu0 0
  %812 = vmatpush.bf16.msra.mxu0 0
  %813 = vmatpush.bf16.msra.mxu0 0
  %814 = vmatpush.bf16.msra.mxu0 0
  %815 = vmatpush.bf16.msra.mxu0 %v761
  %816 = vmatmul.bf16.gmra.mxu0 %v749
  %v817 = vpop.f32.mrf.mxu0
  %v818 = vadd.f32 0.0, %v817
  %v819 = vpop.f32.mrf.mxu0
  %820 = vdwg.mxu0
  %821 = vmatpush.bf16.msra.mxu0 0
  %822 = vmatpush.bf16.msra.mxu0 0
  %823 = vmatpush.bf16.msra.mxu0 0
  %824 = vmatpush.bf16.msra.mxu0 0
  %825 = vmatpush.bf16.msra.mxu0 0
  %826 = vmatpush.bf16.msra.mxu0 0
  %827 = vmatpush.bf16.msra.mxu0 0
  %828 = vmatpush.bf16.msra.mxu0 %v764
  %829 = vmatmul.bf16.gmra.mxu0 %v749
  %v830 = vpop.f32.mrf.mxu0
  %v831 = vadd.f32 0.0, %v830
  %v832 = vpop.f32.mrf.mxu0
  %833 = vdwg.mxu0
  %834 = vmatpush.bf16.msra.mxu0 0
  %835 = vmatpush.bf16.msra.mxu0 0
  %836 = vmatpush.bf16.msra.mxu0 0
  %837 = vmatpush.bf16.msra.mxu0 0
  %838 = vmatpush.bf16.msra.mxu0 0
  %839 = vmatpush.bf16.msra.mxu0 0
  %840 = vmatpush.bf16.msra.mxu0 0
  %841 = vmatpush.bf16.msra.mxu0 %v767
  %842 = vmatmul.bf16.gmra.mxu0 %v749
  %v843 = vpop.f32.mrf.mxu0
  %v844 = vadd.f32 0.0, %v843
  %v845 = vpop.f32.mrf.mxu0
  %846 = vdwg.mxu0
  %v847 = vadd.f32 %v703, %v779
  %v848 = vadd.f32 %v704, %v792
  %v849 = vadd.f32 %v705, %v805
  %v850 = vadd.f32 %v706, %v818
  %v851 = vadd.f32 %v707, %v831
  %v852 = vadd.f32 %v708, %v844
  %v853 = vld [vmem:[%s0 + $0x2] sm:$0xff]
  %v854 = vld [vmem:[%s0 + $0xa] sm:$0xf]
  %s855 = scalar_lea.vmem %s1, 12
  %v856 = vld [vmem:[%s855] sm:$0x3]
  %858 = vst [vmem:[#allocation1] ss:$4 sm:$0xff] %v853
  %s860 = scalar_lea.vmem [#allocation1], 32
  %861 = vst [vmem:[%s860] ss:$4 sm:$0xff] %v854
  %v862 = vld.sshfl [vmem:[#allocation1] sm:$0xff pattern:$0x73625140]
  %v864 = vld.sshfl [vmem:[#allocation1 + $0x8] sm:$0xff pattern:$0x73625140]
  %v866 = vld.sshfl [vmem:[#allocation1 + $0x10] sm:$0xff pattern:$0x73625140]
  %v868 = vld.sshfl [vmem:[#allocation1 + $0x18] sm:$0xff pattern:$0x73625140]
  %v870 = vld.sshfl [vmem:[#allocation1 + $0x20] sm:$0xff pattern:$0x73625140]
  %v872 = vld.sshfl [vmem:[#allocation1 + $0x28] sm:$0xff pattern:$0x73625140]
  %874 = vrot.lane.b32.xlu0 %v862, 111
  %v875 = vpop.permute.xlu0 %874
  %876 = vrot.lane.b32.xlu0 %v864, 111
  %v877 = vpop.permute.xlu0 %876
  %878 = vrot.lane.b32.xlu0 %v866, 111
  %v879 = vpop.permute.xlu0 %878
  %880 = vrot.lane.b32.xlu0 %v868, 111
  %v881 = vpop.permute.xlu0 %880
  %882 = vrot.lane.b32.xlu0 %v870, 111
  %v883 = vpop.permute.xlu0 %882
  %884 = vrot.lane.b32.xlu0 %v872, 111
  %v885 = vpop.permute.xlu0 %884
  %vm886 = vcmask 908288
  %v887 = vsel %vm886, %v875, %v877
  %v888 = vsel %vm886, %v877, %v879
  %v889 = vsel %vm886, %v879, %v881
  %v890 = vsel %vm886, %v881, %v883
  %v891 = vsel %vm886, %v883, %v885
  %v893 = vsel %vm69, %v856, 0
  %v896 = vsel %vm73, %v887, 0
  %v899 = vsel %vm73, %v888, 0
  %v902 = vsel %vm73, %v889, 0
  %v905 = vsel %vm73, %v890, 0
  %v908 = vsel %vm73, %v891, 0
  %v911 = vsel %vm73, %v885, 0
  %913 = vmatpush.bf16.msra.mxu0 0
  %914 = vmatpush.bf16.msra.mxu0 0
  %915 = vmatpush.bf16.msra.mxu0 0
  %916 = vmatpush.bf16.msra.mxu0 0
  %917 = vmatpush.bf16.msra.mxu0 0
  %918 = vmatpush.bf16.msra.mxu0 0
  %919 = vmatpush.bf16.msra.mxu0 0
  %920 = vmatpush.bf16.msra.mxu0 %v896
  %921 = vmatmul.bf16.gmra.mxu0 %v893
  %v922 = vpop.f32.mrf.mxu0
  %v923 = vadd.f32 0.0, %v922
  %v924 = vpop.f32.mrf.mxu0
  %925 = vdwg.mxu0
  %926 = vmatpush.bf16.msra.mxu0 0
  %927 = vmatpush.bf16.msra.mxu0 0
  %928 = vmatpush.bf16.msra.mxu0 0
  %929 = vmatpush.bf16.msra.mxu0 0
  %930 = vmatpush.bf16.msra.mxu0 0
  %931 = vmatpush.bf16.msra.mxu0 0
  %932 = vmatpush.bf16.msra.mxu0 0
  %933 = vmatpush.bf16.msra.mxu0 %v899
  %934 = vmatmul.bf16.gmra.mxu0 %v893
  %v935 = vpop.f32.mrf.mxu0
  %v936 = vadd.f32 0.0, %v935
  %v937 = vpop.f32.mrf.mxu0
  %938 = vdwg.mxu0
  %939 = vmatpush.bf16.msra.mxu0 0
  %940 = vmatpush.bf16.msra.mxu0 0
  %941 = vmatpush.bf16.msra.mxu0 0
  %942 = vmatpush.bf16.msra.mxu0 0
  %943 = vmatpush.bf16.msra.mxu0 0
  %944 = vmatpush.bf16.msra.mxu0 0
  %945 = vmatpush.bf16.msra.mxu0 0
  %946 = vmatpush.bf16.msra.mxu0 %v902
  %947 = vmatmul.bf16.gmra.mxu0 %v893
  %v948 = vpop.f32.mrf.mxu0
  %v949 = vadd.f32 0.0, %v948
  %v950 = vpop.f32.mrf.mxu0
  %951 = vdwg.mxu0
  %952 = vmatpush.bf16.msra.mxu0 0
  %953 = vmatpush.bf16.msra.mxu0 0
  %954 = vmatpush.bf16.msra.mxu0 0
  %955 = vmatpush.bf16.msra.mxu0 0
  %956 = vmatpush.bf16.msra.mxu0 0
  %957 = vmatpush.bf16.msra.mxu0 0
  %958 = vmatpush.bf16.msra.mxu0 0
  %959 = vmatpush.bf16.msra.mxu0 %v905
  %960 = vmatmul.bf16.gmra.mxu0 %v893
  %v961 = vpop.f32.mrf.mxu0
  %v962 = vadd.f32 0.0, %v961
  %v963 = vpop.f32.mrf.mxu0
  %964 = vdwg.mxu0
  %965 = vmatpush.bf16.msra.mxu0 0
  %966 = vmatpush.bf16.msra.mxu0 0
  %967 = vmatpush.bf16.msra.mxu0 0
  %968 = vmatpush.bf16.msra.mxu0 0
  %969 = vmatpush.bf16.msra.mxu0 0
  %970 = vmatpush.bf16.msra.mxu0 0
  %971 = vmatpush.bf16.msra.mxu0 0
  %972 = vmatpush.bf16.msra.mxu0 %v908
  %973 = vmatmul.bf16.gmra.mxu0 %v893
  %v974 = vpop.f32.mrf.mxu0
  %v975 = vadd.f32 0.0, %v974
  %v976 = vpop.f32.mrf.mxu0
  %977 = vdwg.mxu0
  %978 = vmatpush.bf16.msra.mxu0 0
  %979 = vmatpush.bf16.msra.mxu0 0
  %980 = vmatpush.bf16.msra.mxu0 0
  %981 = vmatpush.bf16.msra.mxu0 0
  %982 = vmatpush.bf16.msra.mxu0 0
  %983 = vmatpush.bf16.msra.mxu0 0
  %984 = vmatpush.bf16.msra.mxu0 0
  %985 = vmatpush.bf16.msra.mxu0 %v911
  %986 = vmatmul.bf16.gmra.mxu0 %v893
  %v987 = vpop.f32.mrf.mxu0
  %v988 = vadd.f32 0.0, %v987
  %v989 = vpop.f32.mrf.mxu0
  %990 = vdwg.mxu0
  %v991 = vadd.f32 %v847, %v923
  %v992 = vadd.f32 %v848, %v936
  %v993 = vadd.f32 %v849, %v949
  %v994 = vadd.f32 %v850, %v962
  %v995 = vadd.f32 %v851, %v975
  %v996 = vadd.f32 %v852, %v988
  %v997 = vld [vmem:[%s0 + $0x2] sm:$0xff]
  %v998 = vld [vmem:[%s0 + $0xa] sm:$0xf]
  %s999 = scalar_lea.vmem %s1, 14
  %v1000 = vld [vmem:[%s999] sm:$0x3]
  %1002 = vst [vmem:[#allocation1] ss:$4 sm:$0xff] %v997
  %s1004 = scalar_lea.vmem [#allocation1], 32
  %1005 = vst [vmem:[%s1004] ss:$4 sm:$0xff] %v998
  %v1006 = vld.sshfl [vmem:[#allocation1] sm:$0xff pattern:$0x73625140]
  %v1008 = vld.sshfl [vmem:[#allocation1 + $0x8] sm:$0xff pattern:$0x73625140]
  %v1010 = vld.sshfl [vmem:[#allocation1 + $0x10] sm:$0xff pattern:$0x73625140]
  %v1012 = vld.sshfl [vmem:[#allocation1 + $0x18] sm:$0xff pattern:$0x73625140]
  %v1014 = vld.sshfl [vmem:[#allocation1 + $0x20] sm:$0xff pattern:$0x73625140]
  %v1016 = vld.sshfl [vmem:[#allocation1 + $0x28] sm:$0xff pattern:$0x73625140]
  %1018 = vrot.lane.b32.xlu0 %v1006, 110
  %v1019 = vpop.permute.xlu0 %1018
  %1020 = vrot.lane.b32.xlu0 %v1008, 110
  %v1021 = vpop.permute.xlu0 %1020
  %1022 = vrot.lane.b32.xlu0 %v1010, 110
  %v1023 = vpop.permute.xlu0 %1022
  %1024 = vrot.lane.b32.xlu0 %v1012, 110
  %v1025 = vpop.permute.xlu0 %1024
  %1026 = vrot.lane.b32.xlu0 %v1014, 110
  %v1027 = vpop.permute.xlu0 %1026
  %1028 = vrot.lane.b32.xlu0 %v1016, 110
  %v1029 = vpop.permute.xlu0 %1028
  %vm1030 = vcmask 900096
  %v1031 = vsel %vm1030, %v1019, %v1021
  %v1032 = vsel %vm1030, %v1021, %v1023
  %v1033 = vsel %vm1030, %v1023, %v1025
  %v1034 = vsel %vm1030, %v1025, %v1027
  %v1035 = vsel %vm1030, %v1027, %v1029
  %v1037 = vsel %vm69, %v1000, 0
  %v1040 = vsel %vm73, %v1031, 0
  %v1043 = vsel %vm73, %v1032, 0
  %v1046 = vsel %vm73, %v1033, 0
  %v1049 = vsel %vm73, %v1034, 0
  %v1052 = vsel %vm73, %v1035, 0
  %v1055 = vsel %vm73, %v1029, 0
  %1057 = vmatpush.bf16.msra.mxu0 0
  %1058 = vmatpush.bf16.msra.mxu0 0
  %1059 = vmatpush.bf16.msra.mxu0 0
  %1060 = vmatpush.bf16.msra.mxu0 0
  %1061 = vmatpush.bf16.msra.mxu0 0
  %1062 = vmatpush.bf16.msra.mxu0 0
  %1063 = vmatpush.bf16.msra.mxu0 0
  %1064 = vmatpush.bf16.msra.mxu0 %v1040
  %1065 = vmatmul.bf16.gmra.mxu0 %v1037
  %v1066 = vpop.f32.mrf.mxu0
  %v1067 = vadd.f32 0.0, %v1066
  %v1068 = vpop.f32.mrf.mxu0
  %1069 = vdwg.mxu0
  %1070 = vmatpush.bf16.msra.mxu0 0
  %1071 = vmatpush.bf16.msra.mxu0 0
  %1072 = vmatpush.bf16.msra.mxu0 0
  %1073 = vmatpush.bf16.msra.mxu0 0
  %1074 = vmatpush.bf16.msra.mxu0 0
  %1075 = vmatpush.bf16.msra.mxu0 0
  %1076 = vmatpush.bf16.msra.mxu0 0
  %1077 = vmatpush.bf16.msra.mxu0 %v1043
  %1078 = vmatmul.bf16.gmra.mxu0 %v1037
  %v1079 = vpop.f32.mrf.mxu0
  %v1080 = vadd.f32 0.0, %v1079
  %v1081 = vpop.f32.mrf.mxu0
  %1082 = vdwg.mxu0
  %1083 = vmatpush.bf16.msra.mxu0 0
  %1084 = vmatpush.bf16.msra.mxu0 0
  %1085 = vmatpush.bf16.msra.mxu0 0
  %1086 = vmatpush.bf16.msra.mxu0 0
  %1087 = vmatpush.bf16.msra.mxu0 0
  %1088 = vmatpush.bf16.msra.mxu0 0
  %1089 = vmatpush.bf16.msra.mxu0 0
  %1090 = vmatpush.bf16.msra.mxu0 %v1046
  %1091 = vmatmul.bf16.gmra.mxu0 %v1037
  %v1092 = vpop.f32.mrf.mxu0
  %v1093 = vadd.f32 0.0, %v1092
  %v1094 = vpop.f32.mrf.mxu0
  %1095 = vdwg.mxu0
  %1096 = vmatpush.bf16.msra.mxu0 0
  %1097 = vmatpush.bf16.msra.mxu0 0
  %1098 = vmatpush.bf16.msra.mxu0 0
  %1099 = vmatpush.bf16.msra.mxu0 0
  %1100 = vmatpush.bf16.msra.mxu0 0
  %1101 = vmatpush.bf16.msra.mxu0 0
  %1102 = vmatpush.bf16.msra.mxu0 0
  %1103 = vmatpush.bf16.msra.mxu0 %v1049
  %1104 = vmatmul.bf16.gmra.mxu0 %v1037
  %v1105 = vpop.f32.mrf.mxu0
  %v1106 = vadd.f32 0.0, %v1105
  %v1107 = vpop.f32.mrf.mxu0
  %1108 = vdwg.mxu0
  %1109 = vmatpush.bf16.msra.mxu0 0
  %1110 = vmatpush.bf16.msra.mxu0 0
  %1111 = vmatpush.bf16.msra.mxu0 0
  %1112 = vmatpush.bf16.msra.mxu0 0
  %1113 = vmatpush.bf16.msra.mxu0 0
  %1114 = vmatpush.bf16.msra.mxu0 0
  %1115 = vmatpush.bf16.msra.mxu0 0
  %1116 = vmatpush.bf16.msra.mxu0 %v1052
  %1117 = vmatmul.bf16.gmra.mxu0 %v1037
  %v1118 = vpop.f32.mrf.mxu0
  %v1119 = vadd.f32 0.0, %v1118
  %v1120 = vpop.f32.mrf.mxu0
  %1121 = vdwg.mxu0
  %1122 = vmatpush.bf16.msra.mxu0 0
  %1123 = vmatpush.bf16.msra.mxu0 0
  %1124 = vmatpush.bf16.msra.mxu0 0
  %1125 = vmatpush.bf16.msra.mxu0 0
  %1126 = vmatpush.bf16.msra.mxu0 0
  %1127 = vmatpush.bf16.msra.mxu0 0
  %1128 = vmatpush.bf16.msra.mxu0 0
  %1129 = vmatpush.bf16.msra.mxu0 %v1055
  %1130 = vmatmul.bf16.gmra.mxu0 %v1037
  %v1131 = vpop.f32.mrf.mxu0
  %v1132 = vadd.f32 0.0, %v1131
  %v1133 = vpop.f32.mrf.mxu0
  %1134 = vdwg.mxu0
  %v1135 = vadd.f32 %v991, %v1067
  %v1136 = vadd.f32 %v992, %v1080
  %v1137 = vadd.f32 %v993, %v1093
  %v1138 = vadd.f32 %v994, %v1106
  %v1139 = vadd.f32 %v995, %v1119
  %v1140 = vadd.f32 %v996, %v1132
  %v1141 = vld [vmem:[%s0 + $0x2] sm:$0xff]
  %v1142 = vld [vmem:[%s0 + $0xa] sm:$0xf]
  %s1143 = scalar_lea.vmem %s1, 16
  %v1144 = vld [vmem:[%s1143] sm:$0x3]
  %1146 = vst [vmem:[#allocation1] ss:$4 sm:$0xff] %v1141
  %s1148 = scalar_lea.vmem [#allocation1], 32
  %1149 = vst [vmem:[%s1148] ss:$4 sm:$0xff] %v1142
  %v1150 = vld.sshfl [vmem:[#allocation1] sm:$0xff pattern:$0x73625140]
  %v1152 = vld.sshfl [vmem:[#allocation1 + $0x8] sm:$0xff pattern:$0x73625140]
  %v1154 = vld.sshfl [vmem:[#allocation1 + $0x10] sm:$0xff pattern:$0x73625140]
  %v1156 = vld.sshfl [vmem:[#allocation1 + $0x18] sm:$0xff pattern:$0x73625140]
  %v1158 = vld.sshfl [vmem:[#allocation1 + $0x20] sm:$0xff pattern:$0x73625140]
  %v1160 = vld.sshfl [vmem:[#allocation1 + $0x28] sm:$0xff pattern:$0x73625140]
  %1162 = vrot.lane.b32.xlu0 %v1150, 109
  %v1163 = vpop.permute.xlu0 %1162
  %1164 = vrot.lane.b32.xlu0 %v1152, 109
  %v1165 = vpop.permute.xlu0 %1164
  %1166 = vrot.lane.b32.xlu0 %v1154, 109
  %v1167 = vpop.permute.xlu0 %1166
  %1168 = vrot.lane.b32.xlu0 %v1156, 109
  %v1169 = vpop.permute.xlu0 %1168
  %1170 = vrot.lane.b32.xlu0 %v1158, 109
  %v1171 = vpop.permute.xlu0 %1170
  %1172 = vrot.lane.b32.xlu0 %v1160, 109
  %v1173 = vpop.permute.xlu0 %1172
  %vm1174 = vcmask 891904
  %v1175 = vsel %vm1174, %v1163, %v1165
  %v1176 = vsel %vm1174, %v1165, %v1167
  %v1177 = vsel %vm1174, %v1167, %v1169
  %v1178 = vsel %vm1174, %v1169, %v1171
  %v1179 = vsel %vm1174, %v1171, %v1173
  %v1181 = vsel %vm69, %v1144, 0
  %v1184 = vsel %vm73, %v1175, 0
  %v1187 = vsel %vm73, %v1176, 0
  %v1190 = vsel %vm73, %v1177, 0
  %v1193 = vsel %vm73, %v1178, 0
  %v1196 = vsel %vm73, %v1179, 0
  %v1199 = vsel %vm73, %v1173, 0
  %1201 = vmatpush.bf16.msra.mxu0 0
  %1202 = vmatpush.bf16.msra.mxu0 0
  %1203 = vmatpush.bf16.msra.mxu0 0
  %1204 = vmatpush.bf16.msra.mxu0 0
  %1205 = vmatpush.bf16.msra.mxu0 0
  %1206 = vmatpush.bf16.msra.mxu0 0
  %1207 = vmatpush.bf16.msra.mxu0 0
  %1208 = vmatpush.bf16.msra.mxu0 %v1184
  %1209 = vmatmul.bf16.gmra.mxu0 %v1181
  %v1210 = vpop.f32.mrf.mxu0
  %v1211 = vadd.f32 0.0, %v1210
  %v1212 = vpop.f32.mrf.mxu0
  %1213 = vdwg.mxu0
  %1214 = vmatpush.bf16.msra.mxu0 0
  %1215 = vmatpush.bf16.msra.mxu0 0
  %1216 = vmatpush.bf16.msra.mxu0 0
  %1217 = vmatpush.bf16.msra.mxu0 0
  %1218 = vmatpush.bf16.msra.mxu0 0
  %1219 = vmatpush.bf16.msra.mxu0 0
  %1220 = vmatpush.bf16.msra.mxu0 0
  %1221 = vmatpush.bf16.msra.mxu0 %v1187
  %1222 = vmatmul.bf16.gmra.mxu0 %v1181
  %v1223 = vpop.f32.mrf.mxu0
  %v1224 = vadd.f32 0.0, %v1223
  %v1225 = vpop.f32.mrf.mxu0
  %1226 = vdwg.mxu0
  %1227 = vmatpush.bf16.msra.mxu0 0
  %1228 = vmatpush.bf16.msra.mxu0 0
  %1229 = vmatpush.bf16.msra.mxu0 0
  %1230 = vmatpush.bf16.msra.mxu0 0
  %1231 = vmatpush.bf16.msra.mxu0 0
  %1232 = vmatpush.bf16.msra.mxu0 0
  %1233 = vmatpush.bf16.msra.mxu0 0
  %1234 = vmatpush.bf16.msra.mxu0 %v1190
  %1235 = vmatmul.bf16.gmra.mxu0 %v1181
  %v1236 = vpop.f32.mrf.mxu0
  %v1237 = vadd.f32 0.0, %v1236
  %v1238 = vpop.f32.mrf.mxu0
  %1239 = vdwg.mxu0
  %1240 = vmatpush.bf16.msra.mxu0 0
  %1241 = vmatpush.bf16.msra.mxu0 0
  %1242 = vmatpush.bf16.msra.mxu0 0
  %1243 = vmatpush.bf16.msra.mxu0 0
  %1244 = vmatpush.bf16.msra.mxu0 0
  %1245 = vmatpush.bf16.msra.mxu0 0
  %1246 = vmatpush.bf16.msra.mxu0 0
  %1247 = vmatpush.bf16.msra.mxu0 %v1193
  %1248 = vmatmul.bf16.gmra.mxu0 %v1181
  %v1249 = vpop.f32.mrf.mxu0
  %v1250 = vadd.f32 0.0, %v1249
  %v1251 = vpop.f32.mrf.mxu0
  %1252 = vdwg.mxu0
  %1253 = vmatpush.bf16.msra.mxu0 0
  %1254 = vmatpush.bf16.msra.mxu0 0
  %1255 = vmatpush.bf16.msra.mxu0 0
  %1256 = vmatpush.bf16.msra.mxu0 0
  %1257 = vmatpush.bf16.msra.mxu0 0
  %1258 = vmatpush.bf16.msra.mxu0 0
  %1259 = vmatpush.bf16.msra.mxu0 0
  %1260 = vmatpush.bf16.msra.mxu0 %v1196
  %1261 = vmatmul.bf16.gmra.mxu0 %v1181
  %v1262 = vpop.f32.mrf.mxu0
  %v1263 = vadd.f32 0.0, %v1262
  %v1264 = vpop.f32.mrf.mxu0
  %1265 = vdwg.mxu0
  %1266 = vmatpush.bf16.msra.mxu0 0
  %1267 = vmatpush.bf16.msra.mxu0 0
  %1268 = vmatpush.bf16.msra.mxu0 0
  %1269 = vmatpush.bf16.msra.mxu0 0
  %1270 = vmatpush.bf16.msra.mxu0 0
  %1271 = vmatpush.bf16.msra.mxu0 0
  %1272 = vmatpush.bf16.msra.mxu0 0
  %1273 = vmatpush.bf16.msra.mxu0 %v1199
  %1274 = vmatmul.bf16.gmra.mxu0 %v1181
  %v1275 = vpop.f32.mrf.mxu0
  %v1276 = vadd.f32 0.0, %v1275
  %v1277 = vpop.f32.mrf.mxu0
  %1278 = vdwg.mxu0
  %v1279 = vadd.f32 %v1135, %v1211
  %v1280 = vadd.f32 %v1136, %v1224
  %v1281 = vadd.f32 %v1137, %v1237
  %v1282 = vadd.f32 %v1138, %v1250
  %v1283 = vadd.f32 %v1139, %v1263
  %v1284 = vadd.f32 %v1140, %v1276
  %1286 = vset.pattern.permute.xlu0 0
  %1287 = vperm.xlu0 %1286, %v27
  %v1288 = vpop.permute.xlu0 %1287
  %v1290 = vadd.f32 %v1279, %v1288
  %v1291 = vadd.f32 %v1280, %v1288
  %v1292 = vadd.f32 %v1281, %v1288
  %v1293 = vadd.f32 %v1282, %v1288
  %v1294 = vadd.f32 %v1283, %v1288
  %v1295 = vadd.f32 %v1284, %v1288
  %v1297 = vperm.slane %v28, 0
  %v1298 = vperm.slane %v28, 1
  %v1299 = vperm.slane %v28, 2
  %v1300 = vperm.slane %v28, 3
  %v1301 = vperm.slane %v28, 4
  %v1302 = vperm.slane %v28, 5
  %v1309 = vmul.f32 %v1290, %v1297
  %v1310 = vmul.f32 %v1291, %v1298
  %v1311 = vmul.f32 %v1292, %v1299
  %v1312 = vmul.f32 %v1293, %v1300
  %v1313 = vmul.f32 %v1294, %v1301
  %v1314 = vmul.f32 %v1295, %v1302
  %vm1315 = vcmask 1043456
  %v1316 = vsel %vm1315, %v1309, 0.0
  %v1317 = vsel %vm1315, %v1310, 0.0
  %v1318 = vadd.f32 %v1316, %v1317
  %v1319 = vsel %vm1315, %v1311, 0.0
  %v1320 = vadd.f32 %v1318, %v1319
  %v1321 = vsel %vm1315, %v1312, 0.0
  %v1322 = vadd.f32 %v1320, %v1321
  %v1323 = vsel %vm1315, %v1313, 0.0
  %v1324 = vadd.f32 %v1322, %v1323
  %vm1325 = vcmask 60416
  %v1326 = vsel %vm1325, %v1314, 0.0
  %v1327 = vadd.f32 %v1324, %v1326
  %1328 = vadd.xlane.f32.xlu0 %v1327
  %v1329 = vpop.xlane.xlu0 %1328
  %v1330 = vmul.f32 %v1329, 0.001953125
  %v1331 = vsub.f32 %v1290, %v1330
  %v1332 = vsub.f32 %v1291, %v1330
  %v1333 = vsub.f32 %v1292, %v1330
  %v1334 = vsub.f32 %v1293, %v1330
  %v1335 = vsub.f32 %v1294, %v1330
  %v1336 = vsub.f32 %v1295, %v1330
  %v1337 = vmul.f32 %v1331, %v1331
  %v1338 = vmul.f32 %v1332, %v1332
  %v1339 = vmul.f32 %v1333, %v1333
  %v1340 = vmul.f32 %v1334, %v1334
  %v1341 = vmul.f32 %v1335, %v1335
  %v1342 = vmul.f32 %v1336, %v1336
  %v1343 = vmul.f32 %v1337, %v1297
  %v1344 = vmul.f32 %v1338, %v1298
  %v1345 = vmul.f32 %v1339, %v1299
  %v1346 = vmul.f32 %v1340, %v1300
  %v1347 = vmul.f32 %v1341, %v1301
  %v1348 = vmul.f32 %v1342, %v1302
  %v1349 = vsel %vm1315, %v1343, 0.0
  %v1350 = vsel %vm1315, %v1344, 0.0
  %v1351 = vadd.f32 %v1349, %v1350
  %v1352 = vsel %vm1315, %v1345, 0.0
  %v1353 = vadd.f32 %v1351, %v1352
  %v1354 = vsel %vm1315, %v1346, 0.0
  %v1355 = vadd.f32 %v1353, %v1354
  %v1356 = vsel %vm1315, %v1347, 0.0
  %v1357 = vadd.f32 %v1355, %v1356
  %v1358 = vsel %vm1325, %v1348, 0.0
  %v1359 = vadd.f32 %v1357, %v1358
  %1360 = vadd.xlane.f32.xlu0 %v1359
  %v1361 = vpop.xlane.xlu0 %1360
  %v1362 = vmul.f32 %v1361, 0.001953125
  %1363 = vset.pattern.permute.xlu0 3
  %1364 = vperm.xlu0 %1363, %v27
  %v1365 = vpop.permute.xlu0 %1364
  %v1367 = vmul.f32 %v1365, %v1331
  %v1368 = vmul.f32 %v1365, %v1332
  %v1369 = vmul.f32 %v1365, %v1333
  %v1370 = vmul.f32 %v1365, %v1334
  %v1371 = vmul.f32 %v1365, %v1335
  %v1372 = vmul.f32 %v1365, %v1336
  %v1373 = vadd.f32 %v1362, 1e-05
  %v1374 = vrsqrt.pop %v1373
  %v1375 = vmul.f32 %v1374, %v1373
  %v1376 = vmul.f32 %v1375, %v1374
  %v1377 = vmul.f32 0.5, %v1376
  %v1378 = vsub.f32 1.5, %v1377
  %v1379 = vmul.f32 %v1374, %v1378
  %vm1380 = vweird.f32 %v1373
  %vm1381 = vweird.f32 %v1374
  %vm1382 = vmor %vm1380, %vm1381
  %v1383 = vsel %vm1382, %v1374, %v1379
  %v1384 = vmul.f32 %v1367, %v1383
  %v1385 = vmul.f32 %v1368, %v1383
  %v1386 = vmul.f32 %v1369, %v1383
  %v1387 = vmul.f32 %v1370, %v1383
  %v1388 = vmul.f32 %v1371, %v1383
  %v1389 = vmul.f32 %v1372, %v1383
  %1390 = vset.pattern.permute.xlu0 4
  %1391 = vperm.xlu0 %1390, %v27
  %v1392 = vpop.permute.xlu0 %1391
  %v1394 = vadd.f32 %v1384, %v1392
  %v1395 = vadd.f32 %v1385, %v1392
  %v1396 = vadd.f32 %v1386, %v1392
  %v1397 = vadd.f32 %v1387, %v1392
  %v1398 = vadd.f32 %v1388, %v1392
  %v1399 = vadd.f32 %v1389, %v1392
  %v1400 = vmax.f32 %v1394, 0.0
  %v1401 = vmax.f32 %v1395, 0.0
  %v1402 = vmax.f32 %v1396, 0.0
  %v1403 = vmax.f32 %v1397, 0.0
  %v1404 = vmax.f32 %v1398, 0.0
  %v1405 = vmax.f32 %v1399, 0.0
  %v1406 = vmul.f32 %v1400, %v1297
  %v1407 = vmul.f32 %v1401, %v1298
  %v1408 = vmul.f32 %v1402, %v1299
  %v1409 = vmul.f32 %v1403, %v1300
  %v1410 = vmul.f32 %v1404, %v1301
  %v1411 = vmul.f32 %v1405, %v1302
  %1412 = vst [vmem:[#allocation2] sm:$0xff] 0.0
  %1413 = vst [vmem:[#allocation2 + $0x8] sm:$0xff] 0.0
  %1414 = vst [vmem:[#allocation2 + $0x10] sm:$0xff] 0.0
  %1415 = vst [vmem:[#allocation2 + $0x18] sm:$0xff] 0.0
  %v1422 = vrot.slane %v1407, 4
  %v1423 = vrot.slane %v1409, 4
  %v1424 = vrot.slane %v1411, 4
  %v1425 = vsel %vm1315, %v1406, %v1422
  %v1426 = vsel %vm1315, %v1408, %v1423
  %v1427 = vsel %vm1315, %v1410, %v1424
  %1431 = vst [vmem:[#allocation2 + $0x4] sm:$0xff] %v1425
  %1432 = vst [vmem:[#allocation2 + $0xc] sm:$0xff] %v1426
  %vm1433 = vcmask 64516
  %vm1434 = vmor %vm1433, %vm1315
  %1435 = vst.msk [vmem:[#allocation2 + $0x14] sm:$0xff] %vm1434, %v1427
  %v1436 = vld [vmem:[#allocation2] sm:$0xff]
  %v1437 = vld [vmem:[#allocation2 + $0x8] sm:$0xff]
  %v1438 = vld [vmem:[#allocation2 + $0x10] sm:$0xff]
  %1442 = vst [vmem:[#allocation1] ss:$2 sm:$0xff] %v1436
  %s1443 = scalar_lea.vmem [#allocation1], 16
  %1444 = vst [vmem:[%s1443] ss:$2 sm:$0xff] %v1437
  %s1445 = scalar_lea.vmem [#allocation1], 32
  %1446 = vst [vmem:[%s1445] ss:$2 sm:$0xff] %v1438
  %v1447 = vld.sshfl [vmem:[#allocation1] sm:$0xff pattern:$0x75316420]
  %v1448 = vld.sshfl [vmem:[#allocation1 + $0x8] sm:$0xff pattern:$0x75316420]
  %v1449 = vld.sshfl [vmem:[#allocation1 + $0x10] sm:$0xff pattern:$0x75316420]
  %v1450 = vld.sshfl [vmem:[#allocation1 + $0x18] sm:$0xff pattern:$0x75316420]
  %v1451 = vld.sshfl [vmem:[#allocation1 + $0x20] sm:$0xff pattern:$0x75316420]
  %v1452 = vld.sshfl [vmem:[#allocation1 + $0x28] sm:$0xff pattern:$0x75316420]
  %v1459 = vpack.c.bf16 %v1447, %v1447
  %v1460 = vpack.c.bf16 %v1448, %v1448
  %v1461 = vpack.c.bf16 %v1449, %v1449
  %v1462 = vpack.c.bf16 %v1450, %v1450
  %v1463 = vpack.c.bf16 %v1451, %v1451
  %v1464 = vpack.c.bf16 %v1452, %v1452
  %v1465 = vld [vmem:[%s2] sm:$0x3]
  %v1466 = vld [vmem:[#allocation2] sm:$0xff]
  %v1467 = vld [vmem:[#allocation2 + $0x8] sm:$0xff]
  %v1468 = vld [vmem:[#allocation2 + $0x10] sm:$0xff]
  %1472 = vst [vmem:[#allocation1] ss:$2 sm:$0xff] %v1466
  %s1473 = scalar_lea.vmem [#allocation1], 16
  %1474 = vst [vmem:[%s1473] ss:$2 sm:$0xff] %v1467
  %s1475 = scalar_lea.vmem [#allocation1], 32
  %1476 = vst [vmem:[%s1475] ss:$2 sm:$0xff] %v1468
  %v1477 = vld.sshfl [vmem:[#allocation1] sm:$0xff pattern:$0x75316420]
  %v1478 = vld.sshfl [vmem:[#allocation1 + $0x8] sm:$0xff pattern:$0x75316420]
  %v1479 = vld.sshfl [vmem:[#allocation1 + $0x10] sm:$0xff pattern:$0x75316420]
  %v1480 = vld.sshfl [vmem:[#allocation1 + $0x18] sm:$0xff pattern:$0x75316420]
  %v1481 = vld.sshfl [vmem:[#allocation1 + $0x20] sm:$0xff pattern:$0x75316420]
  %v1482 = vld.sshfl [vmem:[#allocation1 + $0x28] sm:$0xff pattern:$0x75316420]
  %v1489 = vpack.c.bf16 %v1477, %v1477
  %v1490 = vpack.c.bf16 %v1478, %v1478
  %v1491 = vpack.c.bf16 %v1479, %v1479
  %v1492 = vpack.c.bf16 %v1480, %v1480
  %v1493 = vpack.c.bf16 %v1481, %v1481
  %v1494 = vpack.c.bf16 %v1482, %v1482
  %s1495 = scalar_lea.vmem %s2, 2
  %v1496 = vld [vmem:[%s1495] sm:$0x3]
  %1503 = vrot.lane.b32.xlu0 %v1489, 18
  %v1504 = vpop.permute.xlu0 %1503
  %1505 = vrot.lane.b32.xlu0 %v1490, 18
  %v1506 = vpop.permute.xlu0 %1505
  %1507 = vrot.lane.b32.xlu0 %v1491, 18
  %v1508 = vpop.permute.xlu0 %1507
  %1509 = vrot.lane.b32.xlu0 %v1492, 18
  %v1510 = vpop.permute.xlu0 %1509
  %1511 = vrot.lane.b32.xlu0 %v1493, 18
  %v1512 = vpop.permute.xlu0 %1511
  %1513 = vrot.lane.b32.xlu0 %v1494, 18
  %v1514 = vpop.permute.xlu0 %1513
  %v1515 = vsel %vm63, %v1504, %v1506
  %v1516 = vsel %vm63, %v1506, %v1508
  %v1517 = vsel %vm63, %v1508, %v1510
  %v1518 = vsel %vm63, %v1510, %v1512
  %v1519 = vsel %vm63, %v1512, %v1514
  %v1521 = vsel %vm69, %v1496, 0
  %v1524 = vsel %vm73, %v1515, 0
  %v1527 = vsel %vm73, %v1516, 0
  %v1530 = vsel %vm73, %v1517, 0
  %v1533 = vsel %vm73, %v1518, 0
  %v1536 = vsel %vm73, %v1519, 0
  %v1539 = vsel %vm73, %v1514, 0
  %1541 = vmatpush.bf16.msra.mxu0 0
  %1542 = vmatpush.bf16.msra.mxu0 0
  %1543 = vmatpush.bf16.msra.mxu0 0
  %1544 = vmatpush.bf16.msra.mxu0 0
  %1545 = vmatpush.bf16.msra.mxu0 0
  %1546 = vmatpush.bf16.msra.mxu0 0
  %1547 = vmatpush.bf16.msra.mxu0 0
  %1548 = vmatpush.bf16.msra.mxu0 %v1524
  %1549 = vmatmul.bf16.gmra.mxu0 %v1521
  %v1550 = vpop.f32.mrf.mxu0
  %v1551 = vadd.f32 0.0, %v1550
  %v1552 = vpop.f32.mrf.mxu0
  %1553 = vdwg.mxu0
  %1554 = vmatpush.bf16.msra.mxu0 0
  %1555 = vmatpush.bf16.msra.mxu0 0
  %1556 = vmatpush.bf16.msra.mxu0 0
  %1557 = vmatpush.bf16.msra.mxu0 0
  %1558 = vmatpush.bf16.msra.mxu0 0
  %1559 = vmatpush.bf16.msra.mxu0 0
  %1560 = vmatpush.bf16.msra.mxu0 0
  %1561 = vmatpush.bf16.msra.mxu0 %v1527
  %1562 = vmatmul.bf16.gmra.mxu0 %v1521
  %v1563 = vpop.f32.mrf.mxu0
  %v1564 = vadd.f32 0.0, %v1563
  %v1565 = vpop.f32.mrf.mxu0
  %1566 = vdwg.mxu0
  %1567 = vmatpush.bf16.msra.mxu0 0
  %1568 = vmatpush.bf16.msra.mxu0 0
  %1569 = vmatpush.bf16.msra.mxu0 0
  %1570 = vmatpush.bf16.msra.mxu0 0
  %1571 = vmatpush.bf16.msra.mxu0 0
  %1572 = vmatpush.bf16.msra.mxu0 0
  %1573 = vmatpush.bf16.msra.mxu0 0
  %1574 = vmatpush.bf16.msra.mxu0 %v1530
  %1575 = vmatmul.bf16.gmra.mxu0 %v1521
  %v1576 = vpop.f32.mrf.mxu0
  %v1577 = vadd.f32 0.0, %v1576
  %v1578 = vpop.f32.mrf.mxu0
  %1579 = vdwg.mxu0
  %1580 = vmatpush.bf16.msra.mxu0 0
  %1581 = vmatpush.bf16.msra.mxu0 0
  %1582 = vmatpush.bf16.msra.mxu0 0
  %1583 = vmatpush.bf16.msra.mxu0 0
  %1584 = vmatpush.bf16.msra.mxu0 0
  %1585 = vmatpush.bf16.msra.mxu0 0
  %1586 = vmatpush.bf16.msra.mxu0 0
  %1587 = vmatpush.bf16.msra.mxu0 %v1533
  %1588 = vmatmul.bf16.gmra.mxu0 %v1521
  %v1589 = vpop.f32.mrf.mxu0
  %v1590 = vadd.f32 0.0, %v1589
  %v1591 = vpop.f32.mrf.mxu0
  %1592 = vdwg.mxu0
  %1593 = vmatpush.bf16.msra.mxu0 0
  %1594 = vmatpush.bf16.msra.mxu0 0
  %1595 = vmatpush.bf16.msra.mxu0 0
  %1596 = vmatpush.bf16.msra.mxu0 0
  %1597 = vmatpush.bf16.msra.mxu0 0
  %1598 = vmatpush.bf16.msra.mxu0 0
  %1599 = vmatpush.bf16.msra.mxu0 0
  %1600 = vmatpush.bf16.msra.mxu0 %v1536
  %1601 = vmatmul.bf16.gmra.mxu0 %v1521
  %v1602 = vpop.f32.mrf.mxu0
  %v1603 = vadd.f32 0.0, %v1602
  %v1604 = vpop.f32.mrf.mxu0
  %1605 = vdwg.mxu0
  %1606 = vmatpush.bf16.msra.mxu0 0
  %1607 = vmatpush.bf16.msra.mxu0 0
  %1608 = vmatpush.bf16.msra.mxu0 0
  %1609 = vmatpush.bf16.msra.mxu0 0
  %1610 = vmatpush.bf16.msra.mxu0 0
  %1611 = vmatpush.bf16.msra.mxu0 0
  %1612 = vmatpush.bf16.msra.mxu0 0
  %1613 = vmatpush.bf16.msra.mxu0 %v1539
  %1614 = vmatmul.bf16.gmra.mxu0 %v1521
  %v1615 = vpop.f32.mrf.mxu0
  %v1616 = vadd.f32 0.0, %v1615
  %v1617 = vpop.f32.mrf.mxu0
  %1618 = vdwg.mxu0
  %1625 = vrot.lane.b32.xlu0 %v1459, 19
  %v1626 = vpop.permute.xlu0 %1625
  %1627 = vrot.lane.b32.xlu0 %v1460, 19
  %v1628 = vpop.permute.xlu0 %1627
  %1629 = vrot.lane.b32.xlu0 %v1461, 19
  %v1630 = vpop.permute.xlu0 %1629
  %1631 = vrot.lane.b32.xlu0 %v1462, 19
  %v1632 = vpop.permute.xlu0 %1631
  %1633 = vrot.lane.b32.xlu0 %v1463, 19
  %v1634 = vpop.permute.xlu0 %1633
  %1635 = vrot.lane.b32.xlu0 %v1464, 19
  %v1636 = vpop.permute.xlu0 %1635
  %v1637 = vsel %vm197, %v1626, %v1628
  %v1638 = vsel %vm197, %v1628, %v1630
  %v1639 = vsel %vm197, %v1630, %v1632
  %v1640 = vsel %vm197, %v1632, %v1634
  %v1641 = vsel %vm197, %v1634, %v1636
  %v1643 = vsel %vm69, %v1465, 0
  %v1646 = vsel %vm73, %v1637, 0
  %v1649 = vsel %vm73, %v1638, 0
  %v1652 = vsel %vm73, %v1639, 0
  %v1655 = vsel %vm73, %v1640, 0
  %v1658 = vsel %vm73, %v1641, 0
  %v1661 = vsel %vm73, %v1636, 0
  %1663 = vmatpush.bf16.msra.mxu0 0
  %1664 = vmatpush.bf16.msra.mxu0 0
  %1665 = vmatpush.bf16.msra.mxu0 0
  %1666 = vmatpush.bf16.msra.mxu0 0
  %1667 = vmatpush.bf16.msra.mxu0 0
  %1668 = vmatpush.bf16.msra.mxu0 0
  %1669 = vmatpush.bf16.msra.mxu0 0
  %1670 = vmatpush.bf16.msra.mxu0 %v1646
  %1671 = vmatmul.bf16.gmra.mxu0 %v1643
  %v1672 = vpop.f32.mrf.mxu0
  %v1673 = vadd.f32 %v1551, %v1672
  %v1674 = vpop.f32.mrf.mxu0
  %1675 = vdwg.mxu0
  %1676 = vmatpush.bf16.msra.mxu0 0
  %1677 = vmatpush.bf16.msra.mxu0 0
  %1678 = vmatpush.bf16.msra.mxu0 0
  %1679 = vmatpush.bf16.msra.mxu0 0
  %1680 = vmatpush.bf16.msra.mxu0 0
  %1681 = vmatpush.bf16.msra.mxu0 0
  %1682 = vmatpush.bf16.msra.mxu0 0
  %1683 = vmatpush.bf16.msra.mxu0 %v1649
  %1684 = vmatmul.bf16.gmra.mxu0 %v1643
  %v1685 = vpop.f32.mrf.mxu0
  %v1686 = vadd.f32 %v1564, %v1685
  %v1687 = vpop.f32.mrf.mxu0
  %1688 = vdwg.mxu0
  %1689 = vmatpush.bf16.msra.mxu0 0
  %1690 = vmatpush.bf16.msra.mxu0 0
  %1691 = vmatpush.bf16.msra.mxu0 0
  %1692 = vmatpush.bf16.msra.mxu0 0
  %1693 = vmatpush.bf16.msra.mxu0 0
  %1694 = vmatpush.bf16.msra.mxu0 0
  %1695 = vmatpush.bf16.msra.mxu0 0
  %1696 = vmatpush.bf16.msra.mxu0 %v1652
  %1697 = vmatmul.bf16.gmra.mxu0 %v1643
  %v1698 = vpop.f32.mrf.mxu0
  %v1699 = vadd.f32 %v1577, %v1698
  %v1700 = vpop.f32.mrf.mxu0
  %1701 = vdwg.mxu0
  %1702 = vmatpush.bf16.msra.mxu0 0
  %1703 = vmatpush.bf16.msra.mxu0 0
  %1704 = vmatpush.bf16.msra.mxu0 0
  %1705 = vmatpush.bf16.msra.mxu0 0
  %1706 = vmatpush.bf16.msra.mxu0 0
  %1707 = vmatpush.bf16.msra.mxu0 0
  %1708 = vmatpush.bf16.msra.mxu0 0
  %1709 = vmatpush.bf16.msra.mxu0 %v1655
  %1710 = vmatmul.bf16.gmra.mxu0 %v1643
  %v1711 = vpop.f32.mrf.mxu0
  %v1712 = vadd.f32 %v1590, %v1711
  %v1713 = vpop.f32.mrf.mxu0
  %1714 = vdwg.mxu0
  %1715 = vmatpush.bf16.msra.mxu0 0
  %1716 = vmatpush.bf16.msra.mxu0 0
  %1717 = vmatpush.bf16.msra.mxu0 0
  %1718 = vmatpush.bf16.msra.mxu0 0
  %1719 = vmatpush.bf16.msra.mxu0 0
  %1720 = vmatpush.bf16.msra.mxu0 0
  %1721 = vmatpush.bf16.msra.mxu0 0
  %1722 = vmatpush.bf16.msra.mxu0 %v1658
  %1723 = vmatmul.bf16.gmra.mxu0 %v1643
  %v1724 = vpop.f32.mrf.mxu0
  %v1725 = vadd.f32 %v1603, %v1724
  %v1726 = vpop.f32.mrf.mxu0
  %1727 = vdwg.mxu0
  %1728 = vmatpush.bf16.msra.mxu0 0
  %1729 = vmatpush.bf16.msra.mxu0 0
  %1730 = vmatpush.bf16.msra.mxu0 0
  %1731 = vmatpush.bf16.msra.mxu0 0
  %1732 = vmatpush.bf16.msra.mxu0 0
  %1733 = vmatpush.bf16.msra.mxu0 0
  %1734 = vmatpush.bf16.msra.mxu0 0
  %1735 = vmatpush.bf16.msra.mxu0 %v1661
  %1736 = vmatmul.bf16.gmra.mxu0 %v1643
  %v1737 = vpop.f32.mrf.mxu0
  %v1738 = vadd.f32 %v1616, %v1737
  %v1739 = vpop.f32.mrf.mxu0
  %1740 = vdwg.mxu0
  %v1741 = vld [vmem:[#allocation2] sm:$0xff]
  %v1742 = vld [vmem:[#allocation2 + $0x8] sm:$0xff]
  %v1743 = vld [vmem:[#allocation2 + $0x10] sm:$0xff]
  %1747 = vst [vmem:[#allocation1] ss:$2 sm:$0xff] %v1741
  %s1748 = scalar_lea.vmem [#allocation1], 16
  %1749 = vst [vmem:[%s1748] ss:$2 sm:$0xff] %v1742
  %s1750 = scalar_lea.vmem [#allocation1], 32
  %1751 = vst [vmem:[%s1750] ss:$2 sm:$0xff] %v1743
  %v1752 = vld.sshfl [vmem:[#allocation1] sm:$0xff pattern:$0x75316420]
  %v1753 = vld.sshfl [vmem:[#allocation1 + $0x8] sm:$0xff pattern:$0x75316420]
  %v1754 = vld.sshfl [vmem:[#allocation1 + $0x10] sm:$0xff pattern:$0x75316420]
  %v1755 = vld.sshfl [vmem:[#allocation1 + $0x18] sm:$0xff pattern:$0x75316420]
  %v1756 = vld.sshfl [vmem:[#allocation1 + $0x20] sm:$0xff pattern:$0x75316420]
  %v1757 = vld.sshfl [vmem:[#allocation1 + $0x28] sm:$0xff pattern:$0x75316420]
  %v1764 = vpack.c.bf16 %v1752, %v1752
  %v1765 = vpack.c.bf16 %v1753, %v1753
  %v1766 = vpack.c.bf16 %v1754, %v1754
  %v1767 = vpack.c.bf16 %v1755, %v1755
  %v1768 = vpack.c.bf16 %v1756, %v1756
  %v1769 = vpack.c.bf16 %v1757, %v1757
  %s1770 = scalar_lea.vmem %s2, 4
  %v1771 = vld [vmem:[%s1770] sm:$0x3]
  %1778 = vrot.lane.b32.xlu0 %v1764, 17
  %v1779 = vpop.permute.xlu0 %1778
  %1780 = vrot.lane.b32.xlu0 %v1765, 17
  %v1781 = vpop.permute.xlu0 %1780
  %1782 = vrot.lane.b32.xlu0 %v1766, 17
  %v1783 = vpop.permute.xlu0 %1782
  %1784 = vrot.lane.b32.xlu0 %v1767, 17
  %v1785 = vpop.permute.xlu0 %1784
  %1786 = vrot.lane.b32.xlu0 %v1768, 17
  %v1787 = vpop.permute.xlu0 %1786
  %1788 = vrot.lane.b32.xlu0 %v1769, 17
  %v1789 = vpop.permute.xlu0 %1788
  %v1790 = vsel %vm335, %v1779, %v1781
  %v1791 = vsel %vm335, %v1781, %v1783
  %v1792 = vsel %vm335, %v1783, %v1785
  %v1793 = vsel %vm335, %v1785, %v1787
  %v1794 = vsel %vm335, %v1787, %v1789
  %v1796 = vsel %vm69, %v1771, 0
  %v1799 = vsel %vm73, %v1790, 0
  %v1802 = vsel %vm73, %v1791, 0
  %v1805 = vsel %vm73, %v1792, 0
  %v1808 = vsel %vm73, %v1793, 0
  %v1811 = vsel %vm73, %v1794, 0
  %v1814 = vsel %vm73, %v1789, 0
  %1816 = vmatpush.bf16.msra.mxu0 0
  %1817 = vmatpush.bf16.msra.mxu0 0
  %1818 = vmatpush.bf16.msra.mxu0 0
  %1819 = vmatpush.bf16.msra.mxu0 0
  %1820 = vmatpush.bf16.msra.mxu0 0
  %1821 = vmatpush.bf16.msra.mxu0 0
  %1822 = vmatpush.bf16.msra.mxu0 0
  %1823 = vmatpush.bf16.msra.mxu0 %v1799
  %1824 = vmatmul.bf16.gmra.mxu0 %v1796
  %v1825 = vpop.f32.mrf.mxu0
  %v1826 = vadd.f32 0.0, %v1825
  %v1827 = vpop.f32.mrf.mxu0
  %1828 = vdwg.mxu0
  %1829 = vmatpush.bf16.msra.mxu0 0
  %1830 = vmatpush.bf16.msra.mxu0 0
  %1831 = vmatpush.bf16.msra.mxu0 0
  %1832 = vmatpush.bf16.msra.mxu0 0
  %1833 = vmatpush.bf16.msra.mxu0 0
  %1834 = vmatpush.bf16.msra.mxu0 0
  %1835 = vmatpush.bf16.msra.mxu0 0
  %1836 = vmatpush.bf16.msra.mxu0 %v1802
  %1837 = vmatmul.bf16.gmra.mxu0 %v1796
  %v1838 = vpop.f32.mrf.mxu0
  %v1839 = vadd.f32 0.0, %v1838
  %v1840 = vpop.f32.mrf.mxu0
  %1841 = vdwg.mxu0
  %1842 = vmatpush.bf16.msra.mxu0 0
  %1843 = vmatpush.bf16.msra.mxu0 0
  %1844 = vmatpush.bf16.msra.mxu0 0
  %1845 = vmatpush.bf16.msra.mxu0 0
  %1846 = vmatpush.bf16.msra.mxu0 0
  %1847 = vmatpush.bf16.msra.mxu0 0
  %1848 = vmatpush.bf16.msra.mxu0 0
  %1849 = vmatpush.bf16.msra.mxu0 %v1805
  %1850 = vmatmul.bf16.gmra.mxu0 %v1796
  %v1851 = vpop.f32.mrf.mxu0
  %v1852 = vadd.f32 0.0, %v1851
  %v1853 = vpop.f32.mrf.mxu0
  %1854 = vdwg.mxu0
  %1855 = vmatpush.bf16.msra.mxu0 0
  %1856 = vmatpush.bf16.msra.mxu0 0
  %1857 = vmatpush.bf16.msra.mxu0 0
  %1858 = vmatpush.bf16.msra.mxu0 0
  %1859 = vmatpush.bf16.msra.mxu0 0
  %1860 = vmatpush.bf16.msra.mxu0 0
  %1861 = vmatpush.bf16.msra.mxu0 0
  %1862 = vmatpush.bf16.msra.mxu0 %v1808
  %1863 = vmatmul.bf16.gmra.mxu0 %v1796
  %v1864 = vpop.f32.mrf.mxu0
  %v1865 = vadd.f32 0.0, %v1864
  %v1866 = vpop.f32.mrf.mxu0
  %1867 = vdwg.mxu0
  %1868 = vmatpush.bf16.msra.mxu0 0
  %1869 = vmatpush.bf16.msra.mxu0 0
  %1870 = vmatpush.bf16.msra.mxu0 0
  %1871 = vmatpush.bf16.msra.mxu0 0
  %1872 = vmatpush.bf16.msra.mxu0 0
  %1873 = vmatpush.bf16.msra.mxu0 0
  %1874 = vmatpush.bf16.msra.mxu0 0
  %1875 = vmatpush.bf16.msra.mxu0 %v1811
  %1876 = vmatmul.bf16.gmra.mxu0 %v1796
  %v1877 = vpop.f32.mrf.mxu0
  %v1878 = vadd.f32 0.0, %v1877
  %v1879 = vpop.f32.mrf.mxu0
  %1880 = vdwg.mxu0
  %1881 = vmatpush.bf16.msra.mxu0 0
  %1882 = vmatpush.bf16.msra.mxu0 0
  %1883 = vmatpush.bf16.msra.mxu0 0
  %1884 = vmatpush.bf16.msra.mxu0 0
  %1885 = vmatpush.bf16.msra.mxu0 0
  %1886 = vmatpush.bf16.msra.mxu0 0
  %1887 = vmatpush.bf16.msra.mxu0 0
  %1888 = vmatpush.bf16.msra.mxu0 %v1814
  %1889 = vmatmul.bf16.gmra.mxu0 %v1796
  %v1890 = vpop.f32.mrf.mxu0
  %v1891 = vadd.f32 0.0, %v1890
  %v1892 = vpop.f32.mrf.mxu0
  %1893 = vdwg.mxu0
  %v1894 = vadd.f32 %v1673, %v1826
  %v1895 = vadd.f32 %v1686, %v1839
  %v1896 = vadd.f32 %v1699, %v1852
  %v1897 = vadd.f32 %v1712, %v1865
  %v1898 = vadd.f32 %v1725, %v1878
  %v1899 = vadd.f32 %v1738, %v1891
  %v1900 = vld [vmem:[#allocation2] sm:$0xff]
  %v1901 = vld [vmem:[#allocation2 + $0x8] sm:$0xff]
  %v1902 = vld [vmem:[#allocation2 + $0x10] sm:$0xff]
  %v1903 = vld [vmem:[#allocation2 + $0x18] sm:$0xf]
  %1908 = vst [vmem:[#allocation1] ss:$2 sm:$0xff] %v1900
  %s1909 = scalar_lea.vmem [#allocation1], 16
  %1910 = vst [vmem:[%s1909] ss:$2 sm:$0xff] %v1901
  %s1911 = scalar_lea.vmem [#allocation1], 32
  %1912 = vst [vmem:[%s1911] ss:$2 sm:$0xff] %v1902
  %s1913 = scalar_lea.vmem [#allocation1], 48
  %1914 = vst [vmem:[%s1913] ss:$2 sm:$0xff] %v1903
  %v1915 = vld.sshfl [vmem:[#allocation1] sm:$0xff pattern:$0x75316420]
  %v1916 = vld.sshfl [vmem:[#allocation1 + $0x8] sm:$0xff pattern:$0x75316420]
  %v1917 = vld.sshfl [vmem:[#allocation1 + $0x10] sm:$0xff pattern:$0x75316420]
  %v1918 = vld.sshfl [vmem:[#allocation1 + $0x18] sm:$0xff pattern:$0x75316420]
  %v1919 = vld.sshfl [vmem:[#allocation1 + $0x20] sm:$0xff pattern:$0x75316420]
  %v1920 = vld.sshfl [vmem:[#allocation1 + $0x28] sm:$0xff pattern:$0x75316420]
  %v1921 = vld.sshfl [vmem:[#allocation1 + $0x30] sm:$0xff pattern:$0x75316420]
  %v1929 = vpack.c.bf16 %v1915, %v1915
  %v1930 = vpack.c.bf16 %v1916, %v1916
  %v1931 = vpack.c.bf16 %v1917, %v1917
  %v1932 = vpack.c.bf16 %v1918, %v1918
  %v1933 = vpack.c.bf16 %v1919, %v1919
  %v1934 = vpack.c.bf16 %v1920, %v1920
  %v1935 = vpack.c.bf16 %v1921, %v1921
  %s1936 = scalar_lea.vmem %s2, 6
  %v1937 = vld [vmem:[%s1936] sm:$0x3]
  %1945 = vrot.lane.b32.xlu0 %v1929, 1
  %v1946 = vpop.permute.xlu0 %1945
  %1947 = vrot.lane.b32.xlu0 %v1930, 1
  %v1948 = vpop.permute.xlu0 %1947
  %1949 = vrot.lane.b32.xlu0 %v1931, 1
  %v1950 = vpop.permute.xlu0 %1949
  %1951 = vrot.lane.b32.xlu0 %v1932, 1
  %v1952 = vpop.permute.xlu0 %1951
  %1953 = vrot.lane.b32.xlu0 %v1933, 1
  %v1954 = vpop.permute.xlu0 %1953
  %1955 = vrot.lane.b32.xlu0 %v1934, 1
  %v1956 = vpop.permute.xlu0 %1955
  %1957 = vrot.lane.b32.xlu0 %v1935, 1
  %v1958 = vpop.permute.xlu0 %1957
  %v1959 = vsel %vm483, %v1946, %v1948
  %v1960 = vsel %vm483, %v1948, %v1950
  %v1961 = vsel %vm483, %v1950, %v1952
  %v1962 = vsel %vm483, %v1952, %v1954
  %v1963 = vsel %vm483, %v1954, %v1956
  %v1964 = vsel %vm483, %v1956, %v1958
  %v1966 = vsel %vm69, %v1937, 0
  %v1969 = vsel %vm73, %v1959, 0
  %v1972 = vsel %vm73, %v1960, 0
  %v1975 = vsel %vm73, %v1961, 0
  %v1978 = vsel %vm73, %v1962, 0
  %v1981 = vsel %vm73, %v1963, 0
  %v1984 = vsel %vm73, %v1964, 0
  %1986 = vmatpush.bf16.msra.mxu0 0
  %1987 = vmatpush.bf16.msra.mxu0 0
  %1988 = vmatpush.bf16.msra.mxu0 0
  %1989 = vmatpush.bf16.msra.mxu0 0
  %1990 = vmatpush.bf16.msra.mxu0 0
  %1991 = vmatpush.bf16.msra.mxu0 0
  %1992 = vmatpush.bf16.msra.mxu0 0
  %1993 = vmatpush.bf16.msra.mxu0 %v1969
  %1994 = vmatmul.bf16.gmra.mxu0 %v1966
  %v1995 = vpop.f32.mrf.mxu0
  %v1996 = vadd.f32 0.0, %v1995
  %v1997 = vpop.f32.mrf.mxu0
  %1998 = vdwg.mxu0
  %1999 = vmatpush.bf16.msra.mxu0 0
  %2000 = vmatpush.bf16.msra.mxu0 0
  %2001 = vmatpush.bf16.msra.mxu0 0
  %2002 = vmatpush.bf16.msra.mxu0 0
  %2003 = vmatpush.bf16.msra.mxu0 0
  %2004 = vmatpush.bf16.msra.mxu0 0
  %2005 = vmatpush.bf16.msra.mxu0 0
  %2006 = vmatpush.bf16.msra.mxu0 %v1972
  %2007 = vmatmul.bf16.gmra.mxu0 %v1966
  %v2008 = vpop.f32.mrf.mxu0
  %v2009 = vadd.f32 0.0, %v2008
  %v2010 = vpop.f32.mrf.mxu0
  %2011 = vdwg.mxu0
  %2012 = vmatpush.bf16.msra.mxu0 0
  %2013 = vmatpush.bf16.msra.mxu0 0
  %2014 = vmatpush.bf16.msra.mxu0 0
  %2015 = vmatpush.bf16.msra.mxu0 0
  %2016 = vmatpush.bf16.msra.mxu0 0
  %2017 = vmatpush.bf16.msra.mxu0 0
  %2018 = vmatpush.bf16.msra.mxu0 0
  %2019 = vmatpush.bf16.msra.mxu0 %v1975
  %2020 = vmatmul.bf16.gmra.mxu0 %v1966
  %v2021 = vpop.f32.mrf.mxu0
  %v2022 = vadd.f32 0.0, %v2021
  %v2023 = vpop.f32.mrf.mxu0
  %2024 = vdwg.mxu0
  %2025 = vmatpush.bf16.msra.mxu0 0
  %2026 = vmatpush.bf16.msra.mxu0 0
  %2027 = vmatpush.bf16.msra.mxu0 0
  %2028 = vmatpush.bf16.msra.mxu0 0
  %2029 = vmatpush.bf16.msra.mxu0 0
  %2030 = vmatpush.bf16.msra.mxu0 0
  %2031 = vmatpush.bf16.msra.mxu0 0
  %2032 = vmatpush.bf16.msra.mxu0 %v1978
  %2033 = vmatmul.bf16.gmra.mxu0 %v1966
  %v2034 = vpop.f32.mrf.mxu0
  %v2035 = vadd.f32 0.0, %v2034
  %v2036 = vpop.f32.mrf.mxu0
  %2037 = vdwg.mxu0
  %2038 = vmatpush.bf16.msra.mxu0 0
  %2039 = vmatpush.bf16.msra.mxu0 0
  %2040 = vmatpush.bf16.msra.mxu0 0
  %2041 = vmatpush.bf16.msra.mxu0 0
  %2042 = vmatpush.bf16.msra.mxu0 0
  %2043 = vmatpush.bf16.msra.mxu0 0
  %2044 = vmatpush.bf16.msra.mxu0 0
  %2045 = vmatpush.bf16.msra.mxu0 %v1981
  %2046 = vmatmul.bf16.gmra.mxu0 %v1966
  %v2047 = vpop.f32.mrf.mxu0
  %v2048 = vadd.f32 0.0, %v2047
  %v2049 = vpop.f32.mrf.mxu0
  %2050 = vdwg.mxu0
  %2051 = vmatpush.bf16.msra.mxu0 0
  %2052 = vmatpush.bf16.msra.mxu0 0
  %2053 = vmatpush.bf16.msra.mxu0 0
  %2054 = vmatpush.bf16.msra.mxu0 0
  %2055 = vmatpush.bf16.msra.mxu0 0
  %2056 = vmatpush.bf16.msra.mxu0 0
  %2057 = vmatpush.bf16.msra.mxu0 0
  %2058 = vmatpush.bf16.msra.mxu0 %v1984
  %2059 = vmatmul.bf16.gmra.mxu0 %v1966
  %v2060 = vpop.f32.mrf.mxu0
  %v2061 = vadd.f32 0.0, %v2060
  %v2062 = vpop.f32.mrf.mxu0
  %2063 = vdwg.mxu0
  %v2064 = vadd.f32 %v1894, %v1996
  %v2065 = vadd.f32 %v1895, %v2009
  %v2066 = vadd.f32 %v1896, %v2022
  %v2067 = vadd.f32 %v1897, %v2035
  %v2068 = vadd.f32 %v1898, %v2048
  %v2069 = vadd.f32 %v1899, %v2061
  %v2070 = vld [vmem:[#allocation2 + $0x4] sm:$0xff]
  %v2071 = vld [vmem:[#allocation2 + $0xc] sm:$0xff]
  %v2072 = vld [vmem:[#allocation2 + $0x14] sm:$0xff]
  %2076 = vst [vmem:[#allocation1] ss:$2 sm:$0xff] %v2070
  %s2077 = scalar_lea.vmem [#allocation1], 16
  %2078 = vst [vmem:[%s2077] ss:$2 sm:$0xff] %v2071
  %s2079 = scalar_lea.vmem [#allocation1], 32
  %2080 = vst [vmem:[%s2079] ss:$2 sm:$0xff] %v2072
  %v2081 = vld.sshfl [vmem:[#allocation1] sm:$0xff pattern:$0x75316420]
  %v2082 = vld.sshfl [vmem:[#allocation1 + $0x8] sm:$0xff pattern:$0x75316420]
  %v2083 = vld.sshfl [vmem:[#allocation1 + $0x10] sm:$0xff pattern:$0x75316420]
  %v2084 = vld.sshfl [vmem:[#allocation1 + $0x18] sm:$0xff pattern:$0x75316420]
  %v2085 = vld.sshfl [vmem:[#allocation1 + $0x20] sm:$0xff pattern:$0x75316420]
  %v2086 = vld.sshfl [vmem:[#allocation1 + $0x28] sm:$0xff pattern:$0x75316420]
  %v2093 = vpack.c.bf16 %v2081, %v2081
  %v2094 = vpack.c.bf16 %v2082, %v2082
  %v2095 = vpack.c.bf16 %v2083, %v2083
  %v2096 = vpack.c.bf16 %v2084, %v2084
  %v2097 = vpack.c.bf16 %v2085, %v2085
  %v2098 = vpack.c.bf16 %v2086, %v2086
  %s2099 = scalar_lea.vmem %s2, 8
  %v2100 = vld [vmem:[%s2099] sm:$0x3]
  %v2102 = vsel %vm69, %v2100, 0
  %v2105 = vsel %vm73, %v2093, 0
  %v2108 = vsel %vm73, %v2094, 0
  %v2111 = vsel %vm73, %v2095, 0
  %v2114 = vsel %vm73, %v2096, 0
  %v2117 = vsel %vm73, %v2097, 0
  %v2120 = vsel %vm73, %v2098, 0
  %2122 = vmatpush.bf16.msra.mxu0 0
  %2123 = vmatpush.bf16.msra.mxu0 0
  %2124 = vmatpush.bf16.msra.mxu0 0
  %2125 = vmatpush.bf16.msra.mxu0 0
  %2126 = vmatpush.bf16.msra.mxu0 0
  %2127 = vmatpush.bf16.msra.mxu0 0
  %2128 = vmatpush.bf16.msra.mxu0 0
  %2129 = vmatpush.bf16.msra.mxu0 %v2105
  %2130 = vmatmul.bf16.gmra.mxu0 %v2102
  %v2131 = vpop.f32.mrf.mxu0
  %v2132 = vadd.f32 0.0, %v2131
  %v2133 = vpop.f32.mrf.mxu0
  %2134 = vdwg.mxu0
  %2135 = vmatpush.bf16.msra.mxu0 0
  %2136 = vmatpush.bf16.msra.mxu0 0
  %2137 = vmatpush.bf16.msra.mxu0 0
  %2138 = vmatpush.bf16.msra.mxu0 0
  %2139 = vmatpush.bf16.msra.mxu0 0
  %2140 = vmatpush.bf16.msra.mxu0 0
  %2141 = vmatpush.bf16.msra.mxu0 0
  %2142 = vmatpush.bf16.msra.mxu0 %v2108
  %2143 = vmatmul.bf16.gmra.mxu0 %v2102
  %v2144 = vpop.f32.mrf.mxu0
  %v2145 = vadd.f32 0.0, %v2144
  %v2146 = vpop.f32.mrf.mxu0
  %2147 = vdwg.mxu0
  %2148 = vmatpush.bf16.msra.mxu0 0
  %2149 = vmatpush.bf16.msra.mxu0 0
  %2150 = vmatpush.bf16.msra.mxu0 0
  %2151 = vmatpush.bf16.msra.mxu0 0
  %2152 = vmatpush.bf16.msra.mxu0 0
  %2153 = vmatpush.bf16.msra.mxu0 0
  %2154 = vmatpush.bf16.msra.mxu0 0
  %2155 = vmatpush.bf16.msra.mxu0 %v2111
  %2156 = vmatmul.bf16.gmra.mxu0 %v2102
  %v2157 = vpop.f32.mrf.mxu0
  %v2158 = vadd.f32 0.0, %v2157
  %v2159 = vpop.f32.mrf.mxu0
  %2160 = vdwg.mxu0
  %2161 = vmatpush.bf16.msra.mxu0 0
  %2162 = vmatpush.bf16.msra.mxu0 0
  %2163 = vmatpush.bf16.msra.mxu0 0
  %2164 = vmatpush.bf16.msra.mxu0 0
  %2165 = vmatpush.bf16.msra.mxu0 0
  %2166 = vmatpush.bf16.msra.mxu0 0
  %2167 = vmatpush.bf16.msra.mxu0 0
  %2168 = vmatpush.bf16.msra.mxu0 %v2114
  %2169 = vmatmul.bf16.gmra.mxu0 %v2102
  %v2170 = vpop.f32.mrf.mxu0
  %v2171 = vadd.f32 0.0, %v2170
  %v2172 = vpop.f32.mrf.mxu0
  %2173 = vdwg.mxu0
  %2174 = vmatpush.bf16.msra.mxu0 0
  %2175 = vmatpush.bf16.msra.mxu0 0
  %2176 = vmatpush.bf16.msra.mxu0 0
  %2177 = vmatpush.bf16.msra.mxu0 0
  %2178 = vmatpush.bf16.msra.mxu0 0
  %2179 = vmatpush.bf16.msra.mxu0 0
  %2180 = vmatpush.bf16.msra.mxu0 0
  %2181 = vmatpush.bf16.msra.mxu0 %v2117
  %2182 = vmatmul.bf16.gmra.mxu0 %v2102
  %v2183 = vpop.f32.mrf.mxu0
  %v2184 = vadd.f32 0.0, %v2183
  %v2185 = vpop.f32.mrf.mxu0
  %2186 = vdwg.mxu0
  %2187 = vmatpush.bf16.msra.mxu0 0
  %2188 = vmatpush.bf16.msra.mxu0 0
  %2189 = vmatpush.bf16.msra.mxu0 0
  %2190 = vmatpush.bf16.msra.mxu0 0
  %2191 = vmatpush.bf16.msra.mxu0 0
  %2192 = vmatpush.bf16.msra.mxu0 0
  %2193 = vmatpush.bf16.msra.mxu0 0
  %2194 = vmatpush.bf16.msra.mxu0 %v2120
  %2195 = vmatmul.bf16.gmra.mxu0 %v2102
  %v2196 = vpop.f32.mrf.mxu0
  %v2197 = vadd.f32 0.0, %v2196
  %v2198 = vpop.f32.mrf.mxu0
  %2199 = vdwg.mxu0
  %v2200 = vadd.f32 %v2064, %v2132
  %v2201 = vadd.f32 %v2065, %v2145
  %v2202 = vadd.f32 %v2066, %v2158
  %v2203 = vadd.f32 %v2067, %v2171
  %v2204 = vadd.f32 %v2068, %v2184
  %v2205 = vadd.f32 %v2069, %v2197
  %v2206 = vld [vmem:[#allocation2 + $0x4] sm:$0xff]
  %v2207 = vld [vmem:[#allocation2 + $0xc] sm:$0xff]
  %v2208 = vld [vmem:[#allocation2 + $0x14] sm:$0xff]
  %2212 = vst [vmem:[#allocation1] ss:$2 sm:$0xff] %v2206
  %s2213 = scalar_lea.vmem [#allocation1], 16
  %2214 = vst [vmem:[%s2213] ss:$2 sm:$0xff] %v2207
  %s2215 = scalar_lea.vmem [#allocation1], 32
  %2216 = vst [vmem:[%s2215] ss:$2 sm:$0xff] %v2208
  %v2217 = vld.sshfl [vmem:[#allocation1] sm:$0xff pattern:$0x75316420]
  %v2218 = vld.sshfl [vmem:[#allocation1 + $0x8] sm:$0xff pattern:$0x75316420]
  %v2219 = vld.sshfl [vmem:[#allocation1 + $0x10] sm:$0xff pattern:$0x75316420]
  %v2220 = vld.sshfl [vmem:[#allocation1 + $0x18] sm:$0xff pattern:$0x75316420]
  %v2221 = vld.sshfl [vmem:[#allocation1 + $0x20] sm:$0xff pattern:$0x75316420]
  %v2222 = vld.sshfl [vmem:[#allocation1 + $0x28] sm:$0xff pattern:$0x75316420]
  %v2229 = vpack.c.bf16 %v2217, %v2217
  %v2230 = vpack.c.bf16 %v2218, %v2218
  %v2231 = vpack.c.bf16 %v2219, %v2219
  %v2232 = vpack.c.bf16 %v2220, %v2220
  %v2233 = vpack.c.bf16 %v2221, %v2221
  %v2234 = vpack.c.bf16 %v2222, %v2222
  %s2235 = scalar_lea.vmem %s2, 10
  %v2236 = vld [vmem:[%s2235] sm:$0x3]
  %2243 = vrot.lane.b32.xlu0 %v2229, 127
  %v2244 = vpop.permute.xlu0 %2243
  %2245 = vrot.lane.b32.xlu0 %v2230, 127
  %v2246 = vpop.permute.xlu0 %2245
  %2247 = vrot.lane.b32.xlu0 %v2231, 127
  %v2248 = vpop.permute.xlu0 %2247
  %2249 = vrot.lane.b32.xlu0 %v2232, 127
  %v2250 = vpop.permute.xlu0 %2249
  %2251 = vrot.lane.b32.xlu0 %v2233, 127
  %v2252 = vpop.permute.xlu0 %2251
  %2253 = vrot.lane.b32.xlu0 %v2234, 127
  %v2254 = vpop.permute.xlu0 %2253
  %v2255 = vsel %vm742, %v2244, %v2246
  %v2256 = vsel %vm742, %v2246, %v2248
  %v2257 = vsel %vm742, %v2248, %v2250
  %v2258 = vsel %vm742, %v2250, %v2252
  %v2259 = vsel %vm742, %v2252, %v2254
  %v2261 = vsel %vm69, %v2236, 0
  %v2264 = vsel %vm73, %v2255, 0
  %v2267 = vsel %vm73, %v2256, 0
  %v2270 = vsel %vm73, %v2257, 0
  %v2273 = vsel %vm73, %v2258, 0
  %v2276 = vsel %vm73, %v2259, 0
  %v2279 = vsel %vm73, %v2254, 0
  %2281 = vmatpush.bf16.msra.mxu0 0
  %2282 = vmatpush.bf16.msra.mxu0 0
  %2283 = vmatpush.bf16.msra.mxu0 0
  %2284 = vmatpush.bf16.msra.mxu0 0
  %2285 = vmatpush.bf16.msra.mxu0 0
  %2286 = vmatpush.bf16.msra.mxu0 0
  %2287 = vmatpush.bf16.msra.mxu0 0
  %2288 = vmatpush.bf16.msra.mxu0 %v2264
  %2289 = vmatmul.bf16.gmra.mxu0 %v2261
  %v2290 = vpop.f32.mrf.mxu0
  %v2291 = vadd.f32 0.0, %v2290
  %v2292 = vpop.f32.mrf.mxu0
  %2293 = vdwg.mxu0
  %2294 = vmatpush.bf16.msra.mxu0 0
  %2295 = vmatpush.bf16.msra.mxu0 0
  %2296 = vmatpush.bf16.msra.mxu0 0
  %2297 = vmatpush.bf16.msra.mxu0 0
  %2298 = vmatpush.bf16.msra.mxu0 0
  %2299 = vmatpush.bf16.msra.mxu0 0
  %2300 = vmatpush.bf16.msra.mxu0 0
  %2301 = vmatpush.bf16.msra.mxu0 %v2267
  %2302 = vmatmul.bf16.gmra.mxu0 %v2261
  %v2303 = vpop.f32.mrf.mxu0
  %v2304 = vadd.f32 0.0, %v2303
  %v2305 = vpop.f32.mrf.mxu0
  %2306 = vdwg.mxu0
  %2307 = vmatpush.bf16.msra.mxu0 0
  %2308 = vmatpush.bf16.msra.mxu0 0
  %2309 = vmatpush.bf16.msra.mxu0 0
  %2310 = vmatpush.bf16.msra.mxu0 0
  %2311 = vmatpush.bf16.msra.mxu0 0
  %2312 = vmatpush.bf16.msra.mxu0 0
  %2313 = vmatpush.bf16.msra.mxu0 0
  %2314 = vmatpush.bf16.msra.mxu0 %v2270
  %2315 = vmatmul.bf16.gmra.mxu0 %v2261
  %v2316 = vpop.f32.mrf.mxu0
  %v2317 = vadd.f32 0.0, %v2316
  %v2318 = vpop.f32.mrf.mxu0
  %2319 = vdwg.mxu0
  %2320 = vmatpush.bf16.msra.mxu0 0
  %2321 = vmatpush.bf16.msra.mxu0 0
  %2322 = vmatpush.bf16.msra.mxu0 0
  %2323 = vmatpush.bf16.msra.mxu0 0
  %2324 = vmatpush.bf16.msra.mxu0 0
  %2325 = vmatpush.bf16.msra.mxu0 0
  %2326 = vmatpush.bf16.msra.mxu0 0
  %2327 = vmatpush.bf16.msra.mxu0 %v2273
  %2328 = vmatmul.bf16.gmra.mxu0 %v2261
  %v2329 = vpop.f32.mrf.mxu0
  %v2330 = vadd.f32 0.0, %v2329
  %v2331 = vpop.f32.mrf.mxu0
  %2332 = vdwg.mxu0
  %2333 = vmatpush.bf16.msra.mxu0 0
  %2334 = vmatpush.bf16.msra.mxu0 0
  %2335 = vmatpush.bf16.msra.mxu0 0
  %2336 = vmatpush.bf16.msra.mxu0 0
  %2337 = vmatpush.bf16.msra.mxu0 0
  %2338 = vmatpush.bf16.msra.mxu0 0
  %2339 = vmatpush.bf16.msra.mxu0 0
  %2340 = vmatpush.bf16.msra.mxu0 %v2276
  %2341 = vmatmul.bf16.gmra.mxu0 %v2261
  %v2342 = vpop.f32.mrf.mxu0
  %v2343 = vadd.f32 0.0, %v2342
  %v2344 = vpop.f32.mrf.mxu0
  %2345 = vdwg.mxu0
  %2346 = vmatpush.bf16.msra.mxu0 0
  %2347 = vmatpush.bf16.msra.mxu0 0
  %2348 = vmatpush.bf16.msra.mxu0 0
  %2349 = vmatpush.bf16.msra.mxu0 0
  %2350 = vmatpush.bf16.msra.mxu0 0
  %2351 = vmatpush.bf16.msra.mxu0 0
  %2352 = vmatpush.bf16.msra.mxu0 0
  %2353 = vmatpush.bf16.msra.mxu0 %v2279
  %2354 = vmatmul.bf16.gmra.mxu0 %v2261
  %v2355 = vpop.f32.mrf.mxu0
  %v2356 = vadd.f32 0.0, %v2355
  %v2357 = vpop.f32.mrf.mxu0
  %2358 = vdwg.mxu0
  %v2359 = vadd.f32 %v2200, %v2291
  %v2360 = vadd.f32 %v2201, %v2304
  %v2361 = vadd.f32 %v2202, %v2317
  %v2362 = vadd.f32 %v2203, %v2330
  %v2363 = vadd.f32 %v2204, %v2343
  %v2364 = vadd.f32 %v2205, %v2356
  %v2365 = vld [vmem:[#allocation2 + $0x4] sm:$0xff]
  %v2366 = vld [vmem:[#allocation2 + $0xc] sm:$0xff]
  %v2367 = vld [vmem:[#allocation2 + $0x14] sm:$0xff]
  %2371 = vst [vmem:[#allocation1] ss:$2 sm:$0xff] %v2365
  %s2372 = scalar_lea.vmem [#allocation1], 16
  %2373 = vst [vmem:[%s2372] ss:$2 sm:$0xff] %v2366
  %s2374 = scalar_lea.vmem [#allocation1], 32
  %2375 = vst [vmem:[%s2374] ss:$2 sm:$0xff] %v2367
  %v2376 = vld.sshfl [vmem:[#allocation1] sm:$0xff pattern:$0x75316420]
  %v2377 = vld.sshfl [vmem:[#allocation1 + $0x8] sm:$0xff pattern:$0x75316420]
  %v2378 = vld.sshfl [vmem:[#allocation1 + $0x10] sm:$0xff pattern:$0x75316420]
  %v2379 = vld.sshfl [vmem:[#allocation1 + $0x18] sm:$0xff pattern:$0x75316420]
  %v2380 = vld.sshfl [vmem:[#allocation1 + $0x20] sm:$0xff pattern:$0x75316420]
  %v2381 = vld.sshfl [vmem:[#allocation1 + $0x28] sm:$0xff pattern:$0x75316420]
  %v2388 = vpack.c.bf16 %v2376, %v2376
  %v2389 = vpack.c.bf16 %v2377, %v2377
  %v2390 = vpack.c.bf16 %v2378, %v2378
  %v2391 = vpack.c.bf16 %v2379, %v2379
  %v2392 = vpack.c.bf16 %v2380, %v2380
  %v2393 = vpack.c.bf16 %v2381, %v2381
  %s2394 = scalar_lea.vmem %s2, 12
  %v2395 = vld [vmem:[%s2394] sm:$0x3]
  %2402 = vrot.lane.b32.xlu0 %v2388, 111
  %v2403 = vpop.permute.xlu0 %2402
  %2404 = vrot.lane.b32.xlu0 %v2389, 111
  %v2405 = vpop.permute.xlu0 %2404
  %2406 = vrot.lane.b32.xlu0 %v2390, 111
  %v2407 = vpop.permute.xlu0 %2406
  %2408 = vrot.lane.b32.xlu0 %v2391, 111
  %v2409 = vpop.permute.xlu0 %2408
  %2410 = vrot.lane.b32.xlu0 %v2392, 111
  %v2411 = vpop.permute.xlu0 %2410
  %2412 = vrot.lane.b32.xlu0 %v2393, 111
  %v2413 = vpop.permute.xlu0 %2412
  %v2414 = vsel %vm886, %v2403, %v2405
  %v2415 = vsel %vm886, %v2405, %v2407
  %v2416 = vsel %vm886, %v2407, %v2409
  %v2417 = vsel %vm886, %v2409, %v2411
  %v2418 = vsel %vm886, %v2411, %v2413
  %v2420 = vsel %vm69, %v2395, 0
  %v2423 = vsel %vm73, %v2414, 0
  %v2426 = vsel %vm73, %v2415, 0
  %v2429 = vsel %vm73, %v2416, 0
  %v2432 = vsel %vm73, %v2417, 0
  %v2435 = vsel %vm73, %v2418, 0
  %v2438 = vsel %vm73, %v2413, 0
  %2440 = vmatpush.bf16.msra.mxu0 0
  %2441 = vmatpush.bf16.msra.mxu0 0
  %2442 = vmatpush.bf16.msra.mxu0 0
  %2443 = vmatpush.bf16.msra.mxu0 0
  %2444 = vmatpush.bf16.msra.mxu0 0
  %2445 = vmatpush.bf16.msra.mxu0 0
  %2446 = vmatpush.bf16.msra.mxu0 0
  %2447 = vmatpush.bf16.msra.mxu0 %v2423
  %2448 = vmatmul.bf16.gmra.mxu0 %v2420
  %v2449 = vpop.f32.mrf.mxu0
  %v2450 = vadd.f32 0.0, %v2449
  %v2451 = vpop.f32.mrf.mxu0
  %2452 = vdwg.mxu0
  %2453 = vmatpush.bf16.msra.mxu0 0
  %2454 = vmatpush.bf16.msra.mxu0 0
  %2455 = vmatpush.bf16.msra.mxu0 0
  %2456 = vmatpush.bf16.msra.mxu0 0
  %2457 = vmatpush.bf16.msra.mxu0 0
  %2458 = vmatpush.bf16.msra.mxu0 0
  %2459 = vmatpush.bf16.msra.mxu0 0
  %2460 = vmatpush.bf16.msra.mxu0 %v2426
  %2461 = vmatmul.bf16.gmra.mxu0 %v2420
  %v2462 = vpop.f32.mrf.mxu0
  %v2463 = vadd.f32 0.0, %v2462
  %v2464 = vpop.f32.mrf.mxu0
  %2465 = vdwg.mxu0
  %2466 = vmatpush.bf16.msra.mxu0 0
  %2467 = vmatpush.bf16.msra.mxu0 0
  %2468 = vmatpush.bf16.msra.mxu0 0
  %2469 = vmatpush.bf16.msra.mxu0 0
  %2470 = vmatpush.bf16.msra.mxu0 0
  %2471 = vmatpush.bf16.msra.mxu0 0
  %2472 = vmatpush.bf16.msra.mxu0 0
  %2473 = vmatpush.bf16.msra.mxu0 %v2429
  %2474 = vmatmul.bf16.gmra.mxu0 %v2420
  %v2475 = vpop.f32.mrf.mxu0
  %v2476 = vadd.f32 0.0, %v2475
  %v2477 = vpop.f32.mrf.mxu0
  %2478 = vdwg.mxu0
  %2479 = vmatpush.bf16.msra.mxu0 0
  %2480 = vmatpush.bf16.msra.mxu0 0
  %2481 = vmatpush.bf16.msra.mxu0 0
  %2482 = vmatpush.bf16.msra.mxu0 0
  %2483 = vmatpush.bf16.msra.mxu0 0
  %2484 = vmatpush.bf16.msra.mxu0 0
  %2485 = vmatpush.bf16.msra.mxu0 0
  %2486 = vmatpush.bf16.msra.mxu0 %v2432
  %2487 = vmatmul.bf16.gmra.mxu0 %v2420
  %v2488 = vpop.f32.mrf.mxu0
  %v2489 = vadd.f32 0.0, %v2488
  %v2490 = vpop.f32.mrf.mxu0
  %2491 = vdwg.mxu0
  %2492 = vmatpush.bf16.msra.mxu0 0
  %2493 = vmatpush.bf16.msra.mxu0 0
  %2494 = vmatpush.bf16.msra.mxu0 0
  %2495 = vmatpush.bf16.msra.mxu0 0
  %2496 = vmatpush.bf16.msra.mxu0 0
  %2497 = vmatpush.bf16.msra.mxu0 0
  %2498 = vmatpush.bf16.msra.mxu0 0
  %2499 = vmatpush.bf16.msra.mxu0 %v2435
  %2500 = vmatmul.bf16.gmra.mxu0 %v2420
  %v2501 = vpop.f32.mrf.mxu0
  %v2502 = vadd.f32 0.0, %v2501
  %v2503 = vpop.f32.mrf.mxu0
  %2504 = vdwg.mxu0
  %2505 = vmatpush.bf16.msra.mxu0 0
  %2506 = vmatpush.bf16.msra.mxu0 0
  %2507 = vmatpush.bf16.msra.mxu0 0
  %2508 = vmatpush.bf16.msra.mxu0 0
  %2509 = vmatpush.bf16.msra.mxu0 0
  %2510 = vmatpush.bf16.msra.mxu0 0
  %2511 = vmatpush.bf16.msra.mxu0 0
  %2512 = vmatpush.bf16.msra.mxu0 %v2438
  %2513 = vmatmul.bf16.gmra.mxu0 %v2420
  %v2514 = vpop.f32.mrf.mxu0
  %v2515 = vadd.f32 0.0, %v2514
  %v2516 = vpop.f32.mrf.mxu0
  %2517 = vdwg.mxu0
  %v2518 = vadd.f32 %v2359, %v2450
  %v2519 = vadd.f32 %v2360, %v2463
  %v2520 = vadd.f32 %v2361, %v2476
  %v2521 = vadd.f32 %v2362, %v2489
  %v2522 = vadd.f32 %v2363, %v2502
  %v2523 = vadd.f32 %v2364, %v2515
  %v2524 = vld [vmem:[#allocation2 + $0x4] sm:$0xff]
  %v2525 = vld [vmem:[#allocation2 + $0xc] sm:$0xff]
  %v2526 = vld [vmem:[#allocation2 + $0x14] sm:$0xff]
  %2530 = vst [vmem:[#allocation1] ss:$2 sm:$0xff] %v2524
  %s2531 = scalar_lea.vmem [#allocation1], 16
  %2532 = vst [vmem:[%s2531] ss:$2 sm:$0xff] %v2525
  %s2533 = scalar_lea.vmem [#allocation1], 32
  %2534 = vst [vmem:[%s2533] ss:$2 sm:$0xff] %v2526
  %v2535 = vld.sshfl [vmem:[#allocation1] sm:$0xff pattern:$0x75316420]
  %v2536 = vld.sshfl [vmem:[#allocation1 + $0x8] sm:$0xff pattern:$0x75316420]
  %v2537 = vld.sshfl [vmem:[#allocation1 + $0x10] sm:$0xff pattern:$0x75316420]
  %v2538 = vld.sshfl [vmem:[#allocation1 + $0x18] sm:$0xff pattern:$0x75316420]
  %v2539 = vld.sshfl [vmem:[#allocation1 + $0x20] sm:$0xff pattern:$0x75316420]
  %v2540 = vld.sshfl [vmem:[#allocation1 + $0x28] sm:$0xff pattern:$0x75316420]
  %v2547 = vpack.c.bf16 %v2535, %v2535
  %v2548 = vpack.c.bf16 %v2536, %v2536
  %v2549 = vpack.c.bf16 %v2537, %v2537
  %v2550 = vpack.c.bf16 %v2538, %v2538
  %v2551 = vpack.c.bf16 %v2539, %v2539
  %v2552 = vpack.c.bf16 %v2540, %v2540
  %s2553 = scalar_lea.vmem %s2, 14
  %v2554 = vld [vmem:[%s2553] sm:$0x3]
  %2561 = vrot.lane.b32.xlu0 %v2547, 110
  %v2562 = vpop.permute.xlu0 %2561
  %2563 = vrot.lane.b32.xlu0 %v2548, 110
  %v2564 = vpop.permute.xlu0 %2563
  %2565 = vrot.lane.b32.xlu0 %v2549, 110
  %v2566 = vpop.permute.xlu0 %2565
  %2567 = vrot.lane.b32.xlu0 %v2550, 110
  %v2568 = vpop.permute.xlu0 %2567
  %2569 = vrot.lane.b32.xlu0 %v2551, 110
  %v2570 = vpop.permute.xlu0 %2569
  %2571 = vrot.lane.b32.xlu0 %v2552, 110
  %v2572 = vpop.permute.xlu0 %2571
  %v2573 = vsel %vm1030, %v2562, %v2564
  %v2574 = vsel %vm1030, %v2564, %v2566
  %v2575 = vsel %vm1030, %v2566, %v2568
  %v2576 = vsel %vm1030, %v2568, %v2570
  %v2577 = vsel %vm1030, %v2570, %v2572
  %v2579 = vsel %vm69, %v2554, 0
  %v2582 = vsel %vm73, %v2573, 0
  %v2585 = vsel %vm73, %v2574, 0
  %v2588 = vsel %vm73, %v2575, 0
  %v2591 = vsel %vm73, %v2576, 0
  %v2594 = vsel %vm73, %v2577, 0
  %v2597 = vsel %vm73, %v2572, 0
  %2599 = vmatpush.bf16.msra.mxu0 0
  %2600 = vmatpush.bf16.msra.mxu0 0
  %2601 = vmatpush.bf16.msra.mxu0 0
  %2602 = vmatpush.bf16.msra.mxu0 0
  %2603 = vmatpush.bf16.msra.mxu0 0
  %2604 = vmatpush.bf16.msra.mxu0 0
  %2605 = vmatpush.bf16.msra.mxu0 0
  %2606 = vmatpush.bf16.msra.mxu0 %v2582
  %2607 = vmatmul.bf16.gmra.mxu0 %v2579
  %v2608 = vpop.f32.mrf.mxu0
  %v2609 = vadd.f32 0.0, %v2608
  %v2610 = vpop.f32.mrf.mxu0
  %2611 = vdwg.mxu0
  %2612 = vmatpush.bf16.msra.mxu0 0
  %2613 = vmatpush.bf16.msra.mxu0 0
  %2614 = vmatpush.bf16.msra.mxu0 0
  %2615 = vmatpush.bf16.msra.mxu0 0
  %2616 = vmatpush.bf16.msra.mxu0 0
  %2617 = vmatpush.bf16.msra.mxu0 0
  %2618 = vmatpush.bf16.msra.mxu0 0
  %2619 = vmatpush.bf16.msra.mxu0 %v2585
  %2620 = vmatmul.bf16.gmra.mxu0 %v2579
  %v2621 = vpop.f32.mrf.mxu0
  %v2622 = vadd.f32 0.0, %v2621
  %v2623 = vpop.f32.mrf.mxu0
  %2624 = vdwg.mxu0
  %2625 = vmatpush.bf16.msra.mxu0 0
  %2626 = vmatpush.bf16.msra.mxu0 0
  %2627 = vmatpush.bf16.msra.mxu0 0
  %2628 = vmatpush.bf16.msra.mxu0 0
  %2629 = vmatpush.bf16.msra.mxu0 0
  %2630 = vmatpush.bf16.msra.mxu0 0
  %2631 = vmatpush.bf16.msra.mxu0 0
  %2632 = vmatpush.bf16.msra.mxu0 %v2588
  %2633 = vmatmul.bf16.gmra.mxu0 %v2579
  %v2634 = vpop.f32.mrf.mxu0
  %v2635 = vadd.f32 0.0, %v2634
  %v2636 = vpop.f32.mrf.mxu0
  %2637 = vdwg.mxu0
  %2638 = vmatpush.bf16.msra.mxu0 0
  %2639 = vmatpush.bf16.msra.mxu0 0
  %2640 = vmatpush.bf16.msra.mxu0 0
  %2641 = vmatpush.bf16.msra.mxu0 0
  %2642 = vmatpush.bf16.msra.mxu0 0
  %2643 = vmatpush.bf16.msra.mxu0 0
  %2644 = vmatpush.bf16.msra.mxu0 0
  %2645 = vmatpush.bf16.msra.mxu0 %v2591
  %2646 = vmatmul.bf16.gmra.mxu0 %v2579
  %v2647 = vpop.f32.mrf.mxu0
  %v2648 = vadd.f32 0.0, %v2647
  %v2649 = vpop.f32.mrf.mxu0
  %2650 = vdwg.mxu0
  %2651 = vmatpush.bf16.msra.mxu0 0
  %2652 = vmatpush.bf16.msra.mxu0 0
  %2653 = vmatpush.bf16.msra.mxu0 0
  %2654 = vmatpush.bf16.msra.mxu0 0
  %2655 = vmatpush.bf16.msra.mxu0 0
  %2656 = vmatpush.bf16.msra.mxu0 0
  %2657 = vmatpush.bf16.msra.mxu0 0
  %2658 = vmatpush.bf16.msra.mxu0 %v2594
  %2659 = vmatmul.bf16.gmra.mxu0 %v2579
  %v2660 = vpop.f32.mrf.mxu0
  %v2661 = vadd.f32 0.0, %v2660
  %v2662 = vpop.f32.mrf.mxu0
  %2663 = vdwg.mxu0
  %2664 = vmatpush.bf16.msra.mxu0 0
  %2665 = vmatpush.bf16.msra.mxu0 0
  %2666 = vmatpush.bf16.msra.mxu0 0
  %2667 = vmatpush.bf16.msra.mxu0 0
  %2668 = vmatpush.bf16.msra.mxu0 0
  %2669 = vmatpush.bf16.msra.mxu0 0
  %2670 = vmatpush.bf16.msra.mxu0 0
  %2671 = vmatpush.bf16.msra.mxu0 %v2597
  %2672 = vmatmul.bf16.gmra.mxu0 %v2579
  %v2673 = vpop.f32.mrf.mxu0
  %v2674 = vadd.f32 0.0, %v2673
  %v2675 = vpop.f32.mrf.mxu0
  %2676 = vdwg.mxu0
  %v2677 = vadd.f32 %v2518, %v2609
  %v2678 = vadd.f32 %v2519, %v2622
  %v2679 = vadd.f32 %v2520, %v2635
  %v2680 = vadd.f32 %v2521, %v2648
  %v2681 = vadd.f32 %v2522, %v2661
  %v2682 = vadd.f32 %v2523, %v2674
  %v2683 = vld [vmem:[#allocation2 + $0x4] sm:$0xff]
  %v2684 = vld [vmem:[#allocation2 + $0xc] sm:$0xff]
  %v2685 = vld [vmem:[#allocation2 + $0x14] sm:$0xff]
  %2689 = vst [vmem:[#allocation1] ss:$2 sm:$0xff] %v2683
  %s2690 = scalar_lea.vmem [#allocation1], 16
  %2691 = vst [vmem:[%s2690] ss:$2 sm:$0xff] %v2684
  %s2692 = scalar_lea.vmem [#allocation1], 32
  %2693 = vst [vmem:[%s2692] ss:$2 sm:$0xff] %v2685
  %v2694 = vld.sshfl [vmem:[#allocation1] sm:$0xff pattern:$0x75316420]
  %v2695 = vld.sshfl [vmem:[#allocation1 + $0x8] sm:$0xff pattern:$0x75316420]
  %v2696 = vld.sshfl [vmem:[#allocation1 + $0x10] sm:$0xff pattern:$0x75316420]
  %v2697 = vld.sshfl [vmem:[#allocation1 + $0x18] sm:$0xff pattern:$0x75316420]
  %v2698 = vld.sshfl [vmem:[#allocation1 + $0x20] sm:$0xff pattern:$0x75316420]
  %v2699 = vld.sshfl [vmem:[#allocation1 + $0x28] sm:$0xff pattern:$0x75316420]
  %v2706 = vpack.c.bf16 %v2694, %v2694
  %v2707 = vpack.c.bf16 %v2695, %v2695
  %v2708 = vpack.c.bf16 %v2696, %v2696
  %v2709 = vpack.c.bf16 %v2697, %v2697
  %v2710 = vpack.c.bf16 %v2698, %v2698
  %v2711 = vpack.c.bf16 %v2699, %v2699
  %s2712 = scalar_lea.vmem %s2, 16
  %v2713 = vld [vmem:[%s2712] sm:$0x3]
  %2720 = vrot.lane.b32.xlu0 %v2706, 109
  %v2721 = vpop.permute.xlu0 %2720
  %2722 = vrot.lane.b32.xlu0 %v2707, 109
  %v2723 = vpop.permute.xlu0 %2722
  %2724 = vrot.lane.b32.xlu0 %v2708, 109
  %v2725 = vpop.permute.xlu0 %2724
  %2726 = vrot.lane.b32.xlu0 %v2709, 109
  %v2727 = vpop.permute.xlu0 %2726
  %2728 = vrot.lane.b32.xlu0 %v2710, 109
  %v2729 = vpop.permute.xlu0 %2728
  %2730 = vrot.lane.b32.xlu0 %v2711, 109
  %v2731 = vpop.permute.xlu0 %2730
  %v2732 = vsel %vm1174, %v2721, %v2723
  %v2733 = vsel %vm1174, %v2723, %v2725
  %v2734 = vsel %vm1174, %v2725, %v2727
  %v2735 = vsel %vm1174, %v2727, %v2729
  %v2736 = vsel %vm1174, %v2729, %v2731
  %v2738 = vsel %vm69, %v2713, 0
  %v2741 = vsel %vm73, %v2732, 0
  %v2744 = vsel %vm73, %v2733, 0
  %v2747 = vsel %vm73, %v2734, 0
  %v2750 = vsel %vm73, %v2735, 0
  %v2753 = vsel %vm73, %v2736, 0
  %v2756 = vsel %vm73, %v2731, 0
  %2758 = vmatpush.bf16.msra.mxu0 0
  %2759 = vmatpush.bf16.msra.mxu0 0
  %2760 = vmatpush.bf16.msra.mxu0 0
  %2761 = vmatpush.bf16.msra.mxu0 0
  %2762 = vmatpush.bf16.msra.mxu0 0
  %2763 = vmatpush.bf16.msra.mxu0 0
  %2764 = vmatpush.bf16.msra.mxu0 0
  %2765 = vmatpush.bf16.msra.mxu0 %v2741
  %2766 = vmatmul.bf16.gmra.mxu0 %v2738
  %v2767 = vpop.f32.mrf.mxu0
  %v2768 = vadd.f32 0.0, %v2767
  %v2769 = vpop.f32.mrf.mxu0
  %2770 = vdwg.mxu0
  %2771 = vmatpush.bf16.msra.mxu0 0
  %2772 = vmatpush.bf16.msra.mxu0 0
  %2773 = vmatpush.bf16.msra.mxu0 0
  %2774 = vmatpush.bf16.msra.mxu0 0
  %2775 = vmatpush.bf16.msra.mxu0 0
  %2776 = vmatpush.bf16.msra.mxu0 0
  %2777 = vmatpush.bf16.msra.mxu0 0
  %2778 = vmatpush.bf16.msra.mxu0 %v2744
  %2779 = vmatmul.bf16.gmra.mxu0 %v2738
  %v2780 = vpop.f32.mrf.mxu0
  %v2781 = vadd.f32 0.0, %v2780
  %v2782 = vpop.f32.mrf.mxu0
  %2783 = vdwg.mxu0
  %2784 = vmatpush.bf16.msra.mxu0 0
  %2785 = vmatpush.bf16.msra.mxu0 0
  %2786 = vmatpush.bf16.msra.mxu0 0
  %2787 = vmatpush.bf16.msra.mxu0 0
  %2788 = vmatpush.bf16.msra.mxu0 0
  %2789 = vmatpush.bf16.msra.mxu0 0
  %2790 = vmatpush.bf16.msra.mxu0 0
  %2791 = vmatpush.bf16.msra.mxu0 %v2747
  %2792 = vmatmul.bf16.gmra.mxu0 %v2738
  %v2793 = vpop.f32.mrf.mxu0
  %v2794 = vadd.f32 0.0, %v2793
  %v2795 = vpop.f32.mrf.mxu0
  %2796 = vdwg.mxu0
  %2797 = vmatpush.bf16.msra.mxu0 0
  %2798 = vmatpush.bf16.msra.mxu0 0
  %2799 = vmatpush.bf16.msra.mxu0 0
  %2800 = vmatpush.bf16.msra.mxu0 0
  %2801 = vmatpush.bf16.msra.mxu0 0
  %2802 = vmatpush.bf16.msra.mxu0 0
  %2803 = vmatpush.bf16.msra.mxu0 0
  %2804 = vmatpush.bf16.msra.mxu0 %v2750
  %2805 = vmatmul.bf16.gmra.mxu0 %v2738
  %v2806 = vpop.f32.mrf.mxu0
  %v2807 = vadd.f32 0.0, %v2806
  %v2808 = vpop.f32.mrf.mxu0
  %2809 = vdwg.mxu0
  %2810 = vmatpush.bf16.msra.mxu0 0
  %2811 = vmatpush.bf16.msra.mxu0 0
  %2812 = vmatpush.bf16.msra.mxu0 0
  %2813 = vmatpush.bf16.msra.mxu0 0
  %2814 = vmatpush.bf16.msra.mxu0 0
  %2815 = vmatpush.bf16.msra.mxu0 0
  %2816 = vmatpush.bf16.msra.mxu0 0
  %2817 = vmatpush.bf16.msra.mxu0 %v2753
  %2818 = vmatmul.bf16.gmra.mxu0 %v2738
  %v2819 = vpop.f32.mrf.mxu0
  %v2820 = vadd.f32 0.0, %v2819
  %v2821 = vpop.f32.mrf.mxu0
  %2822 = vdwg.mxu0
  %2823 = vmatpush.bf16.msra.mxu0 0
  %2824 = vmatpush.bf16.msra.mxu0 0
  %2825 = vmatpush.bf16.msra.mxu0 0
  %2826 = vmatpush.bf16.msra.mxu0 0
  %2827 = vmatpush.bf16.msra.mxu0 0
  %2828 = vmatpush.bf16.msra.mxu0 0
  %2829 = vmatpush.bf16.msra.mxu0 0
  %2830 = vmatpush.bf16.msra.mxu0 %v2756
  %2831 = vmatmul.bf16.gmra.mxu0 %v2738
  %v2832 = vpop.f32.mrf.mxu0
  %v2833 = vadd.f32 0.0, %v2832
  %v2834 = vpop.f32.mrf.mxu0
  %2835 = vdwg.mxu0
  %v2836 = vadd.f32 %v2677, %v2768
  %v2837 = vadd.f32 %v2678, %v2781
  %v2838 = vadd.f32 %v2679, %v2794
  %v2839 = vadd.f32 %v2680, %v2807
  %v2840 = vadd.f32 %v2681, %v2820
  %v2841 = vadd.f32 %v2682, %v2833
  %v2842 = vpack.c.bf16 %v2836, %v2836
  %v2843 = vpack.c.bf16 %v2837, %v2837
  %v2844 = vpack.c.bf16 %v2838, %v2838
  %v2845 = vpack.c.bf16 %v2839, %v2839
  %v2846 = vpack.c.bf16 %v2840, %v2840
  %v2847 = vpack.c.bf16 %v2841, %v2841
  %v2848 = vld [vmem:[%s4] sm:$0xf]
  %v2849 = vld [vmem:[%s4 + $0x4] sm:$0xf]
  %v2850 = vld [vmem:[%s4 + $0x8] sm:$0xf]
  %v2851 = vld [vmem:[%s4 + $0xc] sm:$0xf]
  %v2852 = vld [vmem:[%s4 + $0x10] sm:$0xf]
  %v2853 = vld [vmem:[%s4 + $0x14] sm:$0xf]
  %v2854 = vld [vmem:[%s4 + $0x18] sm:$0xf]
  %v2855 = vld [vmem:[%s4 + $0x1c] sm:$0xf]
  %v2856 = vld [vmem:[%s4 + $0x20] sm:$0xf]
  %v2857 = vld [vmem:[%s4 + $0x24] sm:$0xf]
  %v2858 = vld [vmem:[%s4 + $0x28] sm:$0xf]
  %v2859 = vld [vmem:[%s4 + $0x2c] sm:$0xf]
  %v2860 = vld [vmem:[%s4 + $0x30] sm:$0xf]
  %v2861 = vld [vmem:[%s4 + $0x34] sm:$0xf]
  %v2862 = vld [vmem:[%s4 + $0x38] sm:$0xf]
  %v2863 = vld [vmem:[%s4 + $0x3c] sm:$0xf]
  %v2864 = vld [vmem:[%s4 + $0x40] sm:$0xf]
  %v2865 = vld [vmem:[%s4 + $0x44] sm:$0xf]
  %v2866 = vld [vmem:[%s4 + $0x48] sm:$0xf]
  %v2867 = vld [vmem:[%s4 + $0x4c] sm:$0xf]
  %v2868 = vld [vmem:[%s4 + $0x50] sm:$0xf]
  %v2869 = vld [vmem:[%s4 + $0x54] sm:$0xf]
  %v2870 = vld [vmem:[%s4 + $0x58] sm:$0xf]
  %v2871 = vld [vmem:[%s4 + $0x5c] sm:$0xf]
  %v2872 = vld [vmem:[%s4 + $0x60] sm:$0xf]
  %v2873 = vld [vmem:[%s4 + $0x64] sm:$0xf]
  %v2874 = vld [vmem:[%s4 + $0x68] sm:$0xf]
  %v2875 = vld [vmem:[%s4 + $0x6c] sm:$0xf]
  %v2876 = vld [vmem:[%s4 + $0x70] sm:$0xf]
  %v2877 = vld [vmem:[%s4 + $0x74] sm:$0xf]
  %v2878 = vld [vmem:[%s4 + $0x78] sm:$0xf]
  %v2879 = vld [vmem:[%s4 + $0x7c] sm:$0xf]
  %v2880 = vld [vmem:[%s4 + $0x80] sm:$0xf]
  %v2881 = vld [vmem:[%s4 + $0x84] sm:$0xf]
  %v2882 = vld [vmem:[%s4 + $0x88] sm:$0xf]
  %v2883 = vld [vmem:[%s4 + $0x8c] sm:$0xf]
  %v2884 = vld [vmem:[%s4 + $0x90] sm:$0xf]
  %v2885 = vld [vmem:[%s4 + $0x94] sm:$0xf]
  %v2886 = vld [vmem:[%s4 + $0x98] sm:$0xf]
  %v2887 = vld [vmem:[%s4 + $0x9c] sm:$0xf]
  %v2888 = vld [vmem:[%s4 + $0xa0] sm:$0xf]
  %v2889 = vld [vmem:[%s4 + $0xa4] sm:$0xf]
  %v2890 = vld [vmem:[%s4 + $0xa8] sm:$0xf]
  %v2891 = vld [vmem:[%s4 + $0xac] sm:$0xf]
  %v2892 = vld [vmem:[%s4 + $0xb0] sm:$0xf]
  %v2893 = vld [vmem:[%s4 + $0xb4] sm:$0xf]
  %v2894 = vld [vmem:[%s4 + $0xb8] sm:$0xf]
  %v2895 = vld [vmem:[%s4 + $0xbc] sm:$0xf]
  %v2896 = vld [vmem:[%s4 + $0xc0] sm:$0xf]
  %v2897 = vld [vmem:[%s4 + $0xc4] sm:$0xf]
  %v2898 = vld [vmem:[%s4 + $0xc8] sm:$0xf]
  %v2899 = vld [vmem:[%s4 + $0xcc] sm:$0xf]
  %v2900 = vld [vmem:[%s4 + $0xd0] sm:$0xf]
  %v2901 = vld [vmem:[%s4 + $0xd4] sm:$0xf]
  %v2902 = vld [vmem:[%s4 + $0xd8] sm:$0xf]
  %v2903 = vld [vmem:[%s4 + $0xdc] sm:$0xf]
  %v2904 = vld [vmem:[%s4 + $0xe0] sm:$0xf]
  %v2905 = vld [vmem:[%s4 + $0xe4] sm:$0xf]
  %v2906 = vld [vmem:[%s4 + $0xe8] sm:$0xf]
  %v2907 = vld [vmem:[%s4 + $0xec] sm:$0xf]
  %v2908 = vld [vmem:[%s4 + $0xf0] sm:$0xf]
  %v2909 = vld [vmem:[%s4 + $0xf4] sm:$0xf]
  %v2910 = vld [vmem:[%s4 + $0xf8] sm:$0xf]
  %v2911 = vld [vmem:[%s4 + $0xfc] sm:$0xf]
  %v2912 = vld [vmem:[%s4 + $0x100] sm:$0xf]
  %v2913 = vld [vmem:[%s4 + $0x104] sm:$0xf]
  %v2914 = vld [vmem:[%s4 + $0x108] sm:$0xf]
  %v2915 = vld [vmem:[%s4 + $0x10c] sm:$0xf]
  %v2916 = vld [vmem:[%s4 + $0x110] sm:$0xf]
  %v2917 = vld [vmem:[%s4 + $0x114] sm:$0xf]
  %v2918 = vld [vmem:[%s4 + $0x118] sm:$0xf]
  %v2919 = vld [vmem:[%s4 + $0x11c] sm:$0xf]
  %v2920 = vld [vmem:[%s4 + $0x120] sm:$0xf]
  %v2921 = vld [vmem:[%s4 + $0x124] sm:$0xf]
  %v2922 = vld [vmem:[%s4 + $0x128] sm:$0xf]
  %v2923 = vld [vmem:[%s4 + $0x12c] sm:$0xf]
  %v2924 = vld [vmem:[%s4 + $0x130] sm:$0xf]
  %v2925 = vld [vmem:[%s4 + $0x134] sm:$0xf]
  %v2926 = vld [vmem:[%s4 + $0x138] sm:$0xf]
  %v2927 = vld [vmem:[%s4 + $0x13c] sm:$0xf]
  %v2928 = vld [vmem:[%s4 + $0x140] sm:$0xf]
  %2929 = vset.pattern.permute.xlu0 1
  %2930 = vperm.xlu0 %2929, %v27
  %v2931 = vpop.permute.xlu0 %2930
  %v3014 = vunpack.c.l.b16 %v2848
  %v3015 = vunpack.c.l.b16 %v2849
  %v3016 = vunpack.c.l.b16 %v2850
  %v3017 = vunpack.c.l.b16 %v2851
  %v3018 = vunpack.c.l.b16 %v2852
  %v3019 = vunpack.c.l.b16 %v2853
  %v3020 = vunpack.c.l.b16 %v2854
  %v3021 = vunpack.c.l.b16 %v2855
  %v3022 = vunpack.c.l.b16 %v2856
  %v3023 = vunpack.c.l.b16 %v2857
  %v3024 = vunpack.c.l.b16 %v2858
  %v3025 = vunpack.c.l.b16 %v2859
  %v3026 = vunpack.c.l.b16 %v2860
  %v3027 = vunpack.c.l.b16 %v2861
  %v3028 = vunpack.c.l.b16 %v2862
  %v3029 = vunpack.c.l.b16 %v2863
  %v3030 = vunpack.c.l.b16 %v2864
  %v3031 = vunpack.c.l.b16 %v2865
  %v3032 = vunpack.c.l.b16 %v2866
  %v3033 = vunpack.c.l.b16 %v2867
  %v3034 = vunpack.c.l.b16 %v2868
  %v3035 = vunpack.c.l.b16 %v2869
  %v3036 = vunpack.c.l.b16 %v2870
  %v3037 = vunpack.c.l.b16 %v2871
  %v3038 = vunpack.c.l.b16 %v2872
  %v3039 = vunpack.c.l.b16 %v2873
  %v3040 = vunpack.c.l.b16 %v2874
  %v3041 = vunpack.c.l.b16 %v2875
  %v3042 = vunpack.c.l.b16 %v2876
  %v3043 = vunpack.c.l.b16 %v2877
  %v3044 = vunpack.c.l.b16 %v2878
  %v3045 = vunpack.c.l.b16 %v2879
  %v3046 = vunpack.c.l.b16 %v2880
  %v3047 = vunpack.c.l.b16 %v2881
  %v3048 = vunpack.c.l.b16 %v2882
  %v3049 = vunpack.c.l.b16 %v2883
  %v3050 = vunpack.c.l.b16 %v2884
  %v3051 = vunpack.c.l.b16 %v2885
  %v3052 = vunpack.c.l.b16 %v2886
  %v3053 = vunpack.c.l.b16 %v2887
  %v3054 = vunpack.c.l.b16 %v2888
  %v3055 = vunpack.c.l.b16 %v2889
  %v3056 = vunpack.c.l.b16 %v2890
  %v3057 = vunpack.c.l.b16 %v2891
  %v3058 = vunpack.c.l.b16 %v2892
  %v3059 = vunpack.c.l.b16 %v2893
  %v3060 = vunpack.c.l.b16 %v2894
  %v3061 = vunpack.c.l.b16 %v2895
  %v3062 = vunpack.c.l.b16 %v2896
  %v3063 = vunpack.c.l.b16 %v2897
  %v3064 = vunpack.c.l.b16 %v2898
  %v3065 = vunpack.c.l.b16 %v2899
  %v3066 = vunpack.c.l.b16 %v2900
  %v3067 = vunpack.c.l.b16 %v2901
  %v3068 = vunpack.c.l.b16 %v2902
  %v3069 = vunpack.c.l.b16 %v2903
  %v3070 = vunpack.c.l.b16 %v2904
  %v3071 = vunpack.c.l.b16 %v2905
  %v3072 = vunpack.c.l.b16 %v2906
  %v3073 = vunpack.c.l.b16 %v2907
  %v3074 = vunpack.c.l.b16 %v2908
  %v3075 = vunpack.c.l.b16 %v2909
  %v3076 = vunpack.c.l.b16 %v2910
  %v3077 = vunpack.c.l.b16 %v2911
  %v3078 = vunpack.c.l.b16 %v2912
  %v3079 = vunpack.c.l.b16 %v2913
  %v3080 = vunpack.c.l.b16 %v2914
  %v3081 = vunpack.c.l.b16 %v2915
  %v3082 = vunpack.c.l.b16 %v2916
  %v3083 = vunpack.c.l.b16 %v2917
  %v3084 = vunpack.c.l.b16 %v2918
  %v3085 = vunpack.c.l.b16 %v2919
  %v3086 = vunpack.c.l.b16 %v2920
  %v3087 = vunpack.c.l.b16 %v2921
  %v3088 = vunpack.c.l.b16 %v2922
  %v3089 = vunpack.c.l.b16 %v2923
  %v3090 = vunpack.c.l.b16 %v2924
  %v3091 = vunpack.c.l.b16 %v2925
  %v3092 = vunpack.c.l.b16 %v2926
  %v3093 = vunpack.c.l.b16 %v2927
  %v3094 = vunpack.c.l.b16 %v2928
  %v3095 = vpack.c.b16 %v3015, %v3014
  %v3096 = vpack.c.b16 %v3017, %v3016
  %v3097 = vpack.c.b16 %v3019, %v3018
  %v3098 = vpack.c.b16 %v3021, %v3020
  %v3099 = vpack.c.b16 %v3023, %v3022
  %v3100 = vpack.c.b16 %v3025, %v3024
  %v3101 = vpack.c.b16 %v3027, %v3026
  %v3102 = vpack.c.b16 %v3029, %v3028
  %v3103 = vpack.c.b16 %v3031, %v3030
  %v3104 = vpack.c.b16 %v3033, %v3032
  %v3105 = vpack.c.b16 %v3035, %v3034
  %v3106 = vpack.c.b16 %v3037, %v3036
  %v3107 = vpack.c.b16 %v3039, %v3038
  %v3108 = vpack.c.b16 %v3041, %v3040
  %v3109 = vpack.c.b16 %v3043, %v3042
  %v3110 = vpack.c.b16 %v3045, %v3044
  %v3111 = vpack.c.b16 %v3047, %v3046
  %v3112 = vpack.c.b16 %v3049, %v3048
  %v3113 = vpack.c.b16 %v3051, %v3050
  %v3114 = vpack.c.b16 %v3053, %v3052
  %v3115 = vpack.c.b16 %v3055, %v3054
  %v3116 = vpack.c.b16 %v3057, %v3056
  %v3117 = vpack.c.b16 %v3059, %v3058
  %v3118 = vpack.c.b16 %v3061, %v3060
  %v3119 = vpack.c.b16 %v3063, %v3062
  %v3120 = vpack.c.b16 %v3065, %v3064
  %v3121 = vpack.c.b16 %v3067, %v3066
  %v3122 = vpack.c.b16 %v3069, %v3068
  %v3123 = vpack.c.b16 %v3071, %v3070
  %v3124 = vpack.c.b16 %v3073, %v3072
  %v3125 = vpack.c.b16 %v3075, %v3074
  %v3126 = vpack.c.b16 %v3077, %v3076
  %v3127 = vpack.c.b16 %v3079, %v3078
  %v3128 = vpack.c.b16 %v3081, %v3080
  %v3129 = vpack.c.b16 %v3083, %v3082
  %v3130 = vpack.c.b16 %v3085, %v3084
  %v3131 = vpack.c.b16 %v3087, %v3086
  %v3132 = vpack.c.b16 %v3089, %v3088
  %v3133 = vpack.c.b16 %v3091, %v3090
  %v3134 = vpack.c.b16 %v3093, %v3092
  %v3135 = vpack.c.b16 %v3094, %v3094
  %vm3176 = vcmask 64512
  %v3178 = vsel %vm3176, %v2847, 0
  %v3181 = vsel %vm1315, %v3135, 0
  %3183 = vmatpush.bf16.msra.mxu0 %v3102
  %3184 = vmatpush.bf16.msra.mxu0 %v3101
  %3185 = vmatpush.bf16.msra.mxu0 %v3100
  %3186 = vmatpush.bf16.msra.mxu0 %v3099
  %3187 = vmatpush.bf16.msra.mxu0 %v3098
  %3188 = vmatpush.bf16.msra.mxu0 %v3097
  %3189 = vmatpush.bf16.msra.mxu0 %v3096
  %3190 = vmatpush.bf16.msra.mxu0 %v3095
  %3191 = vmatmul.bf16.gmra.mxu0 %v2842
  %v3192 = vpop.f32.mrf.mxu0
  %v3193 = vadd.f32 %v2931, %v3192
  %v3194 = vpop.f32.mrf.mxu0
  %3195 = vdwg.mxu0
  %3196 = vmatpush.bf16.msra.mxu0 %v3110
  %3197 = vmatpush.bf16.msra.mxu0 %v3109
  %3198 = vmatpush.bf16.msra.mxu0 %v3108
  %3199 = vmatpush.bf16.msra.mxu0 %v3107
  %3200 = vmatpush.bf16.msra.mxu0 %v3106
  %3201 = vmatpush.bf16.msra.mxu0 %v3105
  %3202 = vmatpush.bf16.msra.mxu0 %v3104
  %3203 = vmatpush.bf16.msra.mxu0 %v3103
  %3204 = vmatmul.bf16.gmra.mxu0 %v2843
  %v3205 = vpop.f32.mrf.mxu0
  %v3206 = vadd.f32 %v3193, %v3205
  %v3207 = vpop.f32.mrf.mxu0
  %3208 = vdwg.mxu0
  %3209 = vmatpush.bf16.msra.mxu0 %v3118
  %3210 = vmatpush.bf16.msra.mxu0 %v3117
  %3211 = vmatpush.bf16.msra.mxu0 %v3116
  %3212 = vmatpush.bf16.msra.mxu0 %v3115
  %3213 = vmatpush.bf16.msra.mxu0 %v3114
  %3214 = vmatpush.bf16.msra.mxu0 %v3113
  %3215 = vmatpush.bf16.msra.mxu0 %v3112
  %3216 = vmatpush.bf16.msra.mxu0 %v3111
  %3217 = vmatmul.bf16.gmra.mxu0 %v2844
  %v3218 = vpop.f32.mrf.mxu0
  %v3219 = vadd.f32 %v3206, %v3218
  %v3220 = vpop.f32.mrf.mxu0
  %3221 = vdwg.mxu0
  %3222 = vmatpush.bf16.msra.mxu0 %v3126
  %3223 = vmatpush.bf16.msra.mxu0 %v3125
  %3224 = vmatpush.bf16.msra.mxu0 %v3124
  %3225 = vmatpush.bf16.msra.mxu0 %v3123
  %3226 = vmatpush.bf16.msra.mxu0 %v3122
  %3227 = vmatpush.bf16.msra.mxu0 %v3121
  %3228 = vmatpush.bf16.msra.mxu0 %v3120
  %3229 = vmatpush.bf16.msra.mxu0 %v3119
  %3230 = vmatmul.bf16.gmra.mxu0 %v2845
  %v3231 = vpop.f32.mrf.mxu0
  %v3232 = vadd.f32 %v3219, %v3231
  %v3233 = vpop.f32.mrf.mxu0
  %3234 = vdwg.mxu0
  %3235 = vmatpush.bf16.msra.mxu0 %v3134
  %3236 = vmatpush.bf16.msra.mxu0 %v3133
  %3237 = vmatpush.bf16.msra.mxu0 %v3132
  %3238 = vmatpush.bf16.msra.mxu0 %v3131
  %3239 = vmatpush.bf16.msra.mxu0 %v3130
  %3240 = vmatpush.bf16.msra.mxu0 %v3129
  %3241 = vmatpush.bf16.msra.mxu0 %v3128
  %3242 = vmatpush.bf16.msra.mxu0 %v3127
  %3243 = vmatmul.bf16.gmra.mxu0 %v2846
  %v3244 = vpop.f32.mrf.mxu0
  %v3245 = vadd.f32 %v3232, %v3244
  %v3246 = vpop.f32.mrf.mxu0
  %3247 = vdwg.mxu0
  %3248 = vmatpush.bf16.msra.mxu0 0
  %3249 = vmatpush.bf16.msra.mxu0 0
  %3250 = vmatpush.bf16.msra.mxu0 0
  %3251 = vmatpush.bf16.msra.mxu0 0
  %3252 = vmatpush.bf16.msra.mxu0 0
  %3253 = vmatpush.bf16.msra.mxu0 0
  %3254 = vmatpush.bf16.msra.mxu0 0
  %3255 = vmatpush.bf16.msra.mxu0 %v3181
  %3256 = vmatmul.bf16.gmra.mxu0 %v3178
  %v3257 = vpop.f32.mrf.mxu0
  %v3258 = vadd.f32 %v3245, %v3257
  %v3259 = vpop.f32.mrf.mxu0
  %3260 = vdwg.mxu0
  %v3261 = vsel %vm1315, %v3258, 0.0
  %3262 = vadd.xlane.f32.xlu0 %v3261
  %v3263 = vpop.xlane.xlu0 %3262
  %v3264 = vmul.f32 %v3263, 0.0078125
  %v3265 = vsub.f32 %v3258, %v3264
  %v3266 = vmul.f32 %v3265, %v3265
  %v3267 = vsel %vm1315, %v3266, 0.0
  %3268 = vadd.xlane.f32.xlu0 %v3267
  %v3269 = vpop.xlane.xlu0 %3268
  %v3270 = vmul.f32 %v3269, 0.0078125
  %v3271 = vmul.f32 %v1365, %v3265
  %v3272 = vadd.f32 %v3270, 1e-05
  %v3273 = vrsqrt.pop %v3272
  %v3274 = vmul.f32 %v3273, %v3272
  %v3275 = vmul.f32 %v3274, %v3273
  %v3276 = vmul.f32 0.5, %v3275
  %v3277 = vsub.f32 1.5, %v3276
  %v3278 = vmul.f32 %v3273, %v3277
  %vm3279 = vweird.f32 %v3272
  %vm3280 = vweird.f32 %v3273
  %vm3281 = vmor %vm3279, %vm3280
  %v3282 = vsel %vm3281, %v3273, %v3278
  %v3283 = vmul.f32 %v3271, %v3282
  %v3284 = vadd.f32 %v3283, %v1392
  %v3285 = vmax.f32 %v3284, 0.0
  %v3286 = vpack.c.bf16 %v3285, %v3285
  %v3287 = vld [vmem:[%s3] sm:$0x3]
  %3288 = vset.pattern.permute.xlu0 2
  %3289 = vperm.xlu0 %3288, %v27
  %v3290 = vpop.permute.xlu0 %3289
  %v3293 = vsel %vm69, %v3287, 0
  %v3296 = vsel %vm73, %v3286, 0
  %3298 = vmatpush.bf16.msra.mxu0 0
  %3299 = vmatpush.bf16.msra.mxu0 0
  %3300 = vmatpush.bf16.msra.mxu0 0
  %3301 = vmatpush.bf16.msra.mxu0 0
  %3302 = vmatpush.bf16.msra.mxu0 0
  %3303 = vmatpush.bf16.msra.mxu0 0
  %3304 = vmatpush.bf16.msra.mxu0 0
  %3305 = vmatpush.bf16.msra.mxu0 %v3296
  %3306 = vmatmul.bf16.gmra.mxu0 %v3293
  %v3307 = vpop.f32.mrf.mxu0
  %v3308 = vadd.f32 %v3290, %v3307
  %v3309 = vpop.f32.mrf.mxu0
  %3310 = vdwg.mxu0
  %s3311 = scalar_lea.vmem %s3, 2
  %v3312 = vld [vmem:[%s3311] sm:$0x3]
  %v3314 = vsel %vm69, %v3312, 0
  %3316 = vmatpush.bf16.msra.mxu0 0
  %3317 = vmatpush.bf16.msra.mxu0 0
  %3318 = vmatpush.bf16.msra.mxu0 0
  %3319 = vmatpush.bf16.msra.mxu0 0
  %3320 = vmatpush.bf16.msra.mxu0 0
  %3321 = vmatpush.bf16.msra.mxu0 0
  %3322 = vmatpush.bf16.msra.mxu0 0
  %3323 = vmatpush.bf16.msra.mxu0 %v3296
  %3324 = vmatmul.bf16.gmra.mxu0 %v3314
  %v3325 = vpop.f32.mrf.mxu0
  %v3326 = vadd.f32 %v3290, %v3325
  %v3327 = vpop.f32.mrf.mxu0
  %3328 = vdwg.mxu0
  %s3329 = scalar_lea.vmem %s3, 4
  %v3330 = vld [vmem:[%s3329] sm:$0x3]
  %v3332 = vsel %vm69, %v3330, 0
  %3334 = vmatpush.bf16.msra.mxu0 0
  %3335 = vmatpush.bf16.msra.mxu0 0
  %3336 = vmatpush.bf16.msra.mxu0 0
  %3337 = vmatpush.bf16.msra.mxu0 0
  %3338 = vmatpush.bf16.msra.mxu0 0
  %3339 = vmatpush.bf16.msra.mxu0 0
  %3340 = vmatpush.bf16.msra.mxu0 0
  %3341 = vmatpush.bf16.msra.mxu0 %v3296
  %3342 = vmatmul.bf16.gmra.mxu0 %v3332
  %v3343 = vpop.f32.mrf.mxu0
  %v3344 = vadd.f32 %v3290, %v3343
  %v3345 = vpop.f32.mrf.mxu0
  %3346 = vdwg.mxu0
  %s3347 = scalar_lea.vmem %s3, 6
  %v3348 = vld [vmem:[%s3347] sm:$0x3]
  %v3350 = vsel %vm69, %v3348, 0
  %3352 = vmatpush.bf16.msra.mxu0 0
  %3353 = vmatpush.bf16.msra.mxu0 0
  %3354 = vmatpush.bf16.msra.mxu0 0
  %3355 = vmatpush.bf16.msra.mxu0 0
  %3356 = vmatpush.bf16.msra.mxu0 0
  %3357 = vmatpush.bf16.msra.mxu0 0
  %3358 = vmatpush.bf16.msra.mxu0 0
  %3359 = vmatpush.bf16.msra.mxu0 %v3296
  %3360 = vmatmul.bf16.gmra.mxu0 %v3350
  %v3361 = vpop.f32.mrf.mxu0
  %v3362 = vadd.f32 %v3290, %v3361
  %v3363 = vpop.f32.mrf.mxu0
  %3364 = vdwg.mxu0
  %v3365 = vsel %vm1315, %v3308, 0.0
  %3366 = vadd.xlane.f32.xlu0 %v3365
  %v3367 = vpop.xlane.xlu0 %3366
  %v3368 = vadd.f32 %v3367, 0.0
  %v3369 = vsel %vm1315, %v3326, 0.0
  %3370 = vadd.xlane.f32.xlu0 %v3369
  %v3371 = vpop.xlane.xlu0 %3370
  %v3372 = vadd.f32 %v3368, %v3371
  %v3373 = vsel %vm1315, %v3344, 0.0
  %3374 = vadd.xlane.f32.xlu0 %v3373
  %v3375 = vpop.xlane.xlu0 %3374
  %v3376 = vadd.f32 %v3372, %v3375
  %v3377 = vsel %vm1315, %v3362, 0.0
  %3378 = vadd.xlane.f32.xlu0 %v3377
  %v3379 = vpop.xlane.xlu0 %3378
  %v3380 = vadd.f32 %v3376, %v3379
  %v3381 = vmul.f32 %v3380, 0.001953125
  %v3382 = vsub.f32 %v3308, %v3381
  %v3383 = vsub.f32 %v3326, %v3381
  %v3384 = vsub.f32 %v3344, %v3381
  %v3385 = vsub.f32 %v3362, %v3381
  %v3386 = vmul.f32 %v3382, %v3382
  %v3387 = vsel %vm1315, %v3386, 0.0
  %3388 = vadd.xlane.f32.xlu0 %v3387
  %v3389 = vpop.xlane.xlu0 %3388
  %v3390 = vadd.f32 %v3389, 0.0
  %v3391 = vmul.f32 %v3383, %v3383
  %v3392 = vsel %vm1315, %v3391, 0.0
  %3393 = vadd.xlane.f32.xlu0 %v3392
  %v3394 = vpop.xlane.xlu0 %3393
  %v3395 = vadd.f32 %v3390, %v3394
  %v3396 = vmul.f32 %v3384, %v3384
  %v3397 = vsel %vm1315, %v3396, 0.0
  %3398 = vadd.xlane.f32.xlu0 %v3397
  %v3399 = vpop.xlane.xlu0 %3398
  %v3400 = vadd.f32 %v3395, %v3399
  %v3401 = vmul.f32 %v3385, %v3385
  %v3402 = vsel %vm1315, %v3401, 0.0
  %3403 = vadd.xlane.f32.xlu0 %v3402
  %v3404 = vpop.xlane.xlu0 %3403
  %v3405 = vadd.f32 %v3400, %v3404
  %v3406 = vmul.f32 %v3405, 0.001953125
  %v3407 = vadd.f32 %v3406, 1e-05
  %v3408 = vrsqrt.pop %v3407
  %v3409 = vmul.f32 %v3408, %v3407
  %v3410 = vmul.f32 %v3409, %v3408
  %v3411 = vmul.f32 0.5, %v3410
  %v3412 = vsub.f32 1.5, %v3411
  %v3413 = vmul.f32 %v3408, %v3412
  %vm3414 = vweird.f32 %v3407
  %vm3415 = vweird.f32 %v3408
  %vm3416 = vmor %vm3414, %vm3415
  %v3417 = vsel %vm3416, %v3408, %v3413
  %v3418 = vmul.f32 %v1365, %v3382
  %v3419 = vmul.f32 %v3418, %v3417
  %v3420 = vadd.f32 %v3419, %v1392
  %v3421 = vmax.f32 %v3420, 0.0
  %3422 = vst [vmem:[%s7] sm:$0xf] %v3421
  %v3423 = vmul.f32 %v1365, %v3383
  %v3424 = vmul.f32 %v3423, %v3417
  %v3425 = vadd.f32 %v3424, %v1392
  %v3426 = vmax.f32 %v3425, 0.0
  %s3427 = scalar_lea.vmem %s7, 4
  %3428 = vst [vmem:[%s3427] sm:$0xf] %v3426
  %v3429 = vmul.f32 %v1365, %v3384
  %v3430 = vmul.f32 %v3429, %v3417
  %v3431 = vadd.f32 %v3430, %v1392
  %v3432 = vmax.f32 %v3431, 0.0
  %s3433 = scalar_lea.vmem %s7, 8
  %3434 = vst [vmem:[%s3433] sm:$0xf] %v3432
  %v3435 = vmul.f32 %v1365, %v3385
  %v3436 = vmul.f32 %v3435, %v3417
  %v3437 = vadd.f32 %v3436, %v1392
  %v3438 = vmax.f32 %v3437, 0.0
  %s3439 = scalar_lea.vmem %s7, 12
  %3440 = vst [vmem:[%s3439] sm:$0xf] %v3438
  // Predicated region
  $region30: #{image_block_forward.1} parent=0 // pred_check
    _
  $region31: #{image_block_forward.1} parent=0 // pred_check_branch
    %3442 = sbr.rel (0) target = $region33
  $region32: #{image_block_forward.1} parent=0 // pred_region
    _
  $region33: #{image_block_forward.1} parent=0 // pred_fallthru
    _
  // Predicated region
  $region34: #{image_block_forward.1} parent=0 // pred_check
    _
  $region35: #{image_block_forward.1} parent=0 // pred_check_branch
    %3444 = sbr.rel (0) target = $region37
  $region36: #{image_block_forward.1} parent=0 // pred_region
    _
  $region37: #{image_block_forward.1} parent=0 // pred_fallthru
    _

</llo_original>
